<compile_context>
chip_gen: v7x
topology: tpu7x:2x2x1
jax: 0.10.0
libtpu: 0.0.40
codegen_flags: <defaults>
</compile_context>

<pallas_src>
import functools

import jax
import jax.numpy as jnp
from jax.experimental import pallas as pl
from jax.experimental.pallas import tpu as pltpu

HIDDEN = 32
N_HEADS = 4
HEAD_DIM = HIDDEN // N_HEADS
INTER = 64
N_LAYERS = 2
VOCAB = 100
MAX_POS = 64
LN_EPS = 1e-12
NEG_INF = -10000.0


# ----------------------------- in-kernel helpers -----------------------------

def _layernorm(y, g, b):
    mean = jnp.mean(y, axis=-1, keepdims=True)
    cen = y - mean
    var = jnp.mean(cen * cen, axis=-1, keepdims=True)
    return cen * jax.lax.rsqrt(var + LN_EPS) * g + b


def _gelu(y):
    # tanh-approx GELU; HF bert-base-uncased uses exact erf GELU (diff < ~1e-3).
    # TODO(synk): switch to an erf-based GELU if bit-level parity with HF is required.
    return 0.5 * y * (1.0 + jnp.tanh(0.7978845608028654 * (y + 0.044715 * y * y * y)))


# ------------------------------ fused BERT kernel -----------------------------

def _bert_fused_kernel(emb_ref, bias_ref, emb_ln_g_ref, emb_ln_b_ref,
                       qkv_w_ref, qkv_b_ref, ao_w_ref, ao_b_ref,
                       attn_ln_g_ref, attn_ln_b_ref,
                       i_w_ref, i_b_ref, o_w_ref, o_b_ref,
                       out_ln_g_ref, out_ln_b_ref,
                       hid_ref, probs_ref, *, batch, seq):
    scale = 1.0 / (HEAD_DIM ** 0.5)
    bias = bias_ref[...]                                           # (B, 1, S)

    # Embedding LayerNorm.
    x = _layernorm(emb_ref[...], emb_ln_g_ref[...], emb_ln_b_ref[...])   # (B*S, H)

    for l in range(N_LAYERS):                         # static unroll (N_LAYERS=2)
        # ---- fused QKV projection: one (B*S, H) x (H, 3H) matmul ----
        qkv = (jnp.dot(x, qkv_w_ref[l], preferred_element_type=jnp.float32)
               + qkv_b_ref[l])                                     # (B*S, 3H)

        ctx_heads = []
        prob_heads = []
        for h in range(N_HEADS):                      # static unroll, in-kernel
            q = qkv[:, h * HEAD_DIM:(h + 1) * HEAD_DIM]
            k = qkv[:, HIDDEN + h * HEAD_DIM:HIDDEN + (h + 1) * HEAD_DIM]
            v = qkv[:, 2 * HIDDEN + h * HEAD_DIM:2 * HIDDEN + (h + 1) * HEAD_DIM]
            q3 = q.reshape(batch, seq, HEAD_DIM)
            k3 = k.reshape(batch, seq, HEAD_DIM)
            v3 = v.reshape(batch, seq, HEAD_DIM)

            # scores: contract head_dim directly (no explicit k.T / XLU transpose)
            s = jax.lax.dot_general(
                q3, k3, dimension_numbers=(((2,), (2,)), ((0,), (0,))),
                preferred_element_type=jnp.float32) * scale + bias        # (B, S, S)
            m = jnp.max(s, axis=-1, keepdims=True)
            e = jnp.exp(s - m)
            denom = jnp.sum(e, axis=-1, keepdims=True)
            p = e * pl.reciprocal(denom, approx=True)
            ctx = jax.lax.dot_general(
                p, v3, dimension_numbers=(((2,), (1,)), ((0,), (0,))),
                preferred_element_type=jnp.float32)                       # (B, S, Dh)

            ctx_heads.append(ctx.reshape(batch * seq, HEAD_DIM))
            if l == N_LAYERS - 1:
                prob_heads.append(p.reshape(batch * seq, seq))

        ctx2 = jnp.concatenate(ctx_heads, axis=-1)                        # (B*S, H)

        # ---- attention output projection + residual LayerNorm ----
        attn_out = (jnp.dot(ctx2, ao_w_ref[l], preferred_element_type=jnp.float32)
                    + ao_b_ref[l])
        x = _layernorm(attn_out + x, attn_ln_g_ref[l], attn_ln_b_ref[l])

        # ---- FFN + residual LayerNorm ----
        inter = (jnp.dot(x, i_w_ref[l], preferred_element_type=jnp.float32)
                 + i_b_ref[l])
        inter = _gelu(inter)
        ffn_out = (jnp.dot(inter, o_w_ref[l], preferred_element_type=jnp.float32)
                   + o_b_ref[l])
        x = _layernorm(ffn_out + x, out_ln_g_ref[l], out_ln_b_ref[l])

        if l == N_LAYERS - 1:
            # Lane-dense (B*S, NH*S) slab: slab[b*S + q, h*S + k] = P[b, h, q, k]
            probs_ref[...] = jnp.concatenate(prob_heads, axis=-1)

    hid_ref[...] = x


def _full_spec(shape):
    zeros = (0,) * len(shape)
    return pl.BlockSpec(shape, lambda i: zeros)


def bert_forward(tokens, packed):
    B, S = tokens.shape
    # attention_mask = (tokens > 0).float()  (as in the PyTorch forward)
    attention_mask = (tokens > 0).astype(jnp.float32)              # (B, S)
    bias = ((1.0 - attention_mask) * NEG_INF).reshape(B, 1, S)     # additive bias

    # Token/position/type embedding gather stays in the wrapper (tiny XLA gather);
    # everything downstream runs in the single fused Pallas kernel.
    pos = jnp.arange(S, dtype=jnp.int32)
    emb = (packed["word_emb"][tokens]
           + packed["pos_emb"][pos][None, :, :]
           + packed["type_emb"][0][None, None, :]).reshape(B * S, HIDDEN)

    ins = (emb, bias,
           packed["emb_ln_g"], packed["emb_ln_b"],
           packed["qkv_w"], packed["qkv_b"],
           packed["ao_w"], packed["ao_b"],
           packed["attn_ln_g"], packed["attn_ln_b"],
           packed["i_w"], packed["i_b"],
           packed["o_w"], packed["o_b"],
           packed["out_ln_g"], packed["out_ln_b"])

    hid, probs_slab = pl.pallas_call(
        functools.partial(_bert_fused_kernel, batch=B, seq=S),
        out_shape=(jax.ShapeDtypeStruct((B * S, HIDDEN), jnp.float32),
                   jax.ShapeDtypeStruct((B * S, N_HEADS * S), jnp.float32)),
        grid=(1,),
        in_specs=[_full_spec(a.shape) for a in ins],
        out_specs=(_full_spec((B * S, HIDDEN)),
                   _full_spec((B * S, N_HEADS * S))),
        # Single grid step: no megacore sharding (tiny grid, overhead-bound).
        compiler_params=pltpu.CompilerParams(
            dimension_semantics=("arbitrary",)),
    )(*ins)

    embds = hid.reshape(B, S, HIDDEN)
    probs = probs_slab.reshape(B, S, N_HEADS, S).transpose(0, 2, 1, 3)  # (B, NH, S, S)
    return embds, probs


# ------------------------------ params init -------------------------------

def init_params(key):
    def nrm(k, shape, scale=0.02):
        return scale * jax.random.normal(k, shape, dtype=jnp.float32)

    keys = iter(jax.random.split(key, 64))
    params = {
        "word_emb": nrm(next(keys), (VOCAB, HIDDEN)),
        "pos_emb": nrm(next(keys), (MAX_POS, HIDDEN)),
        "type_emb": nrm(next(keys), (2, HIDDEN)),
        "emb_ln_g": jnp.ones((HIDDEN,), jnp.float32),
        "emb_ln_b": jnp.zeros((HIDDEN,), jnp.float32),
        "layers": [],
    }
    for _ in range(N_LAYERS):
        lp = {
            "q_w": nrm(next(keys), (HIDDEN, HIDDEN)),
            "q_b": jnp.zeros((HIDDEN,), jnp.float32),
            "k_w": nrm(next(keys), (HIDDEN, HIDDEN)),
            "k_b": jnp.zeros((HIDDEN,), jnp.float32),
            "v_w": nrm(next(keys), (HIDDEN, HIDDEN)),
            "v_b": jnp.zeros((HIDDEN,), jnp.float32),
            "ao_w": nrm(next(keys), (HIDDEN, HIDDEN)),
            "ao_b": jnp.zeros((HIDDEN,), jnp.float32),
            "attn_ln_g": jnp.ones((HIDDEN,), jnp.float32),
            "attn_ln_b": jnp.zeros((HIDDEN,), jnp.float32),
            "i_w": nrm(next(keys), (HIDDEN, INTER)),
            "i_b": jnp.zeros((INTER,), jnp.float32),
            "o_w": nrm(next(keys), (INTER, HIDDEN)),
            "o_b": jnp.zeros((HIDDEN,), jnp.float32),
            "out_ln_g": jnp.ones((HIDDEN,), jnp.float32),
            "out_ln_b": jnp.zeros((HIDDEN,), jnp.float32),
        }
        params["layers"].append(lp)
    return params


def pack_params(params):
    """Fuse Q/K/V weights into (H, 3H) and stack per-layer tensors on a layer axis."""
    ls = params["layers"]
    return {
        "word_emb": params["word_emb"],
        "pos_emb": params["pos_emb"],
        "type_emb": params["type_emb"],
        "emb_ln_g": params["emb_ln_g"].reshape(1, HIDDEN),
        "emb_ln_b": params["emb_ln_b"].reshape(1, HIDDEN),
        "qkv_w": jnp.stack([jnp.concatenate([lp["q_w"], lp["k_w"], lp["v_w"]], axis=1)
                            for lp in ls]),                                   # (L, H, 3H)
        "qkv_b": jnp.stack([jnp.concatenate([lp["q_b"], lp["k_b"], lp["v_b"]])
                            .reshape(1, 3 * HIDDEN) for lp in ls]),           # (L, 1, 3H)
        "ao_w": jnp.stack([lp["ao_w"] for lp in ls]),                         # (L, H, H)
        "ao_b": jnp.stack([lp["ao_b"].reshape(1, HIDDEN) for lp in ls]),
        "attn_ln_g": jnp.stack([lp["attn_ln_g"].reshape(1, HIDDEN) for lp in ls]),
        "attn_ln_b": jnp.stack([lp["attn_ln_b"].reshape(1, HIDDEN) for lp in ls]),
        "i_w": jnp.stack([lp["i_w"] for lp in ls]),                           # (L, H, INTER)
        "i_b": jnp.stack([lp["i_b"].reshape(1, INTER) for lp in ls]),
        "o_w": jnp.stack([lp["o_w"] for lp in ls]),                           # (L, INTER, H)
        "o_b": jnp.stack([lp["o_b"].reshape(1, HIDDEN) for lp in ls]),
        "out_ln_g": jnp.stack([lp["out_ln_g"].reshape(1, HIDDEN) for lp in ls]),
        "out_ln_b": jnp.stack([lp["out_ln_b"].reshape(1, HIDDEN) for lp in ls]),
    }


if __name__ == "__main__":
    key = jax.random.PRNGKey(0)
    pkey, tkey = jax.random.split(key)
    params = init_params(pkey)
    packed = pack_params(params)

    B, S = 2, 8
    tokens = jax.random.randint(tkey, (B, S), 1, VOCAB, dtype=jnp.int32)
    tokens = tokens.at[:, 6:].set(0)   # simulate padding -> mask = 0 there

    fwd = jax.jit(bert_forward)
    embds, last_attn = fwd(tokens, packed)
    jax.block_until_ready(embds)
    jax.block_until_ready(last_attn)

    assert embds.shape == (B, S, HIDDEN)
    assert last_attn.shape == (B, N_HEADS, S, S)
    print("KERNEL_OK")
</pallas_src>

<mosaic_0001>
module attributes {stable_mosaic.version = 11 : i64} {
  func.func @_bert_fused_kernel(%arg0: i32, %arg1: memref<16x32xf32, #tpu.memory_space<vmem>>, %arg2: memref<2x1x8xf32, #tpu.memory_space<vmem>>, %arg3: memref<1x32xf32, #tpu.memory_space<vmem>>, %arg4: memref<1x32xf32, #tpu.memory_space<vmem>>, %arg5: memref<2x32x96xf32, #tpu.memory_space<vmem>>, %arg6: memref<2x1x96xf32, #tpu.memory_space<vmem>>, %arg7: memref<2x32x32xf32, #tpu.memory_space<vmem>>, %arg8: memref<2x1x32xf32, #tpu.memory_space<vmem>>, %arg9: memref<2x1x32xf32, #tpu.memory_space<vmem>>, %arg10: memref<2x1x32xf32, #tpu.memory_space<vmem>>, %arg11: memref<2x32x64xf32, #tpu.memory_space<vmem>>, %arg12: memref<2x1x64xf32, #tpu.memory_space<vmem>>, %arg13: memref<2x64x32xf32, #tpu.memory_space<vmem>>, %arg14: memref<2x1x32xf32, #tpu.memory_space<vmem>>, %arg15: memref<2x1x32xf32, #tpu.memory_space<vmem>>, %arg16: memref<2x1x32xf32, #tpu.memory_space<vmem>>, %arg17: memref<16x32xf32, #tpu.memory_space<vmem>>, %arg18: memref<16x32xf32, #tpu.memory_space<vmem>>) attributes {dimension_semantics = [#tpu.dimension_semantics<arbitrary>], iteration_bounds = array<i64: 1>, scalar_prefetch = 0 : i64, scratch_operands = 0 : i64, tpu.core_type = #tpu.core_type<tc>, window_params = [{pipeline_mode = #tpu.pipeline_mode<synchronous>, transform_indices = @transform_0, window_bounds = array<i64: 16, 32>}, {pipeline_mode = #tpu.pipeline_mode<synchronous>, transform_indices = @transform_1, window_bounds = array<i64: 2, 1, 8>}, {pipeline_mode = #tpu.pipeline_mode<synchronous>, transform_indices = @transform_2, window_bounds = array<i64: 1, 32>}, {pipeline_mode = #tpu.pipeline_mode<synchronous>, transform_indices = @transform_3, window_bounds = array<i64: 1, 32>}, {pipeline_mode = #tpu.pipeline_mode<synchronous>, transform_indices = @transform_4, window_bounds = array<i64: 2, 32, 96>}, {pipeline_mode = #tpu.pipeline_mode<synchronous>, transform_indices = @transform_5, window_bounds = array<i64: 2, 1, 96>}, {pipeline_mode = #tpu.pipeline_mode<synchronous>, transform_indices = @transform_6, window_bounds = array<i64: 2, 32, 32>}, {pipeline_mode = #tpu.pipeline_mode<synchronous>, transform_indices = @transform_7, window_bounds = array<i64: 2, 1, 32>}, {pipeline_mode = #tpu.pipeline_mode<synchronous>, transform_indices = @transform_8, window_bounds = array<i64: 2, 1, 32>}, {pipeline_mode = #tpu.pipeline_mode<synchronous>, transform_indices = @transform_9, window_bounds = array<i64: 2, 1, 32>}, {pipeline_mode = #tpu.pipeline_mode<synchronous>, transform_indices = @transform_10, window_bounds = array<i64: 2, 32, 64>}, {pipeline_mode = #tpu.pipeline_mode<synchronous>, transform_indices = @transform_11, window_bounds = array<i64: 2, 1, 64>}, {pipeline_mode = #tpu.pipeline_mode<synchronous>, transform_indices = @transform_12, window_bounds = array<i64: 2, 64, 32>}, {pipeline_mode = #tpu.pipeline_mode<synchronous>, transform_indices = @transform_13, window_bounds = array<i64: 2, 1, 32>}, {pipeline_mode = #tpu.pipeline_mode<synchronous>, transform_indices = @transform_14, window_bounds = array<i64: 2, 1, 32>}, {pipeline_mode = #tpu.pipeline_mode<synchronous>, transform_indices = @transform_15, window_bounds = array<i64: 2, 1, 32>}, {pipeline_mode = #tpu.pipeline_mode<synchronous>, transform_indices = @transform_16, window_bounds = array<i64: 16, 32>}, {pipeline_mode = #tpu.pipeline_mode<synchronous>, transform_indices = @transform_17, window_bounds = array<i64: 16, 32>}]} {
    %c0 = arith.constant 0 : index
    %c0_0 = arith.constant 0 : index
    %c0_1 = arith.constant 0 : index
    %0 = vector.load %arg2[%c0, %c0_0, %c0_1] : memref<2x1x8xf32, #tpu.memory_space<vmem>>, vector<2x1x8xf32>
    %c0_2 = arith.constant 0 : index
    %c0_3 = arith.constant 0 : index
    %1 = vector.load %arg1[%c0_2, %c0_3] : memref<16x32xf32, #tpu.memory_space<vmem>>, vector<16x32xf32>
    %c0_4 = arith.constant 0 : index
    %c0_5 = arith.constant 0 : index
    %2 = vector.load %arg3[%c0_4, %c0_5] : memref<1x32xf32, #tpu.memory_space<vmem>>, vector<1x32xf32>
    %c0_6 = arith.constant 0 : index
    %c0_7 = arith.constant 0 : index
    %3 = vector.load %arg4[%c0_6, %c0_7] : memref<1x32xf32, #tpu.memory_space<vmem>>, vector<1x32xf32>
    %cst = arith.constant dense<0.000000e+00> : vector<16xf32>
    %4 = vector.multi_reduction <add>, %1, %cst [1] : vector<16x32xf32> to vector<16xf32>
    %5 = vector.shape_cast %4 : vector<16xf32> to vector<16x1xf32>
    %cst_8 = arith.constant 3.200000e+01 : f32
    %6 = vector.broadcast %cst_8 : f32 to vector<16x1xf32>
    %7 = arith.divf %5, %6 : vector<16x1xf32>
    %8 = vector.broadcast %7 : vector<16x1xf32> to vector<16x32xf32>
    %9 = arith.subf %1, %8 : vector<16x32xf32>
    %10 = arith.mulf %9, %9 : vector<16x32xf32>
    %cst_9 = arith.constant dense<0.000000e+00> : vector<16xf32>
    %11 = vector.multi_reduction <add>, %10, %cst_9 [1] : vector<16x32xf32> to vector<16xf32>
    %12 = vector.shape_cast %11 : vector<16xf32> to vector<16x1xf32>
    %cst_10 = arith.constant 3.200000e+01 : f32
    %13 = vector.broadcast %cst_10 : f32 to vector<16x1xf32>
    %14 = arith.divf %12, %13 : vector<16x1xf32>
    %cst_11 = arith.constant 9.99999996E-13 : f32
    %15 = vector.broadcast %cst_11 : f32 to vector<16x1xf32>
    %16 = arith.addf %14, %15 : vector<16x1xf32>
    %17 = math.rsqrt %16 : vector<16x1xf32>
    %18 = vector.broadcast %17 : vector<16x1xf32> to vector<16x32xf32>
    %19 = arith.mulf %9, %18 : vector<16x32xf32>
    %20 = vector.broadcast %2 : vector<1x32xf32> to vector<16x32xf32>
    %21 = arith.mulf %19, %20 : vector<16x32xf32>
    %22 = vector.broadcast %3 : vector<1x32xf32> to vector<16x32xf32>
    %23 = arith.addf %21, %22 : vector<16x32xf32>
    %c0_12 = arith.constant 0 : index
    %c0_13 = arith.constant 0 : index
    %c0_14 = arith.constant 0 : index
    %24 = vector.load %arg5[%c0_12, %c0_13, %c0_14] : memref<2x32x96xf32, #tpu.memory_space<vmem>>, vector<1x32x96xf32>
    %25 = vector.shape_cast %24 : vector<1x32x96xf32> to vector<32x96xf32>
    %cst_15 = arith.constant dense<0.000000e+00> : vector<16x96xf32>
    %26 = tpu.matmul %23, %25, %cst_15 {dimension_numbers = #tpu.dot_dimension_numbers<[1], [0], [0], [1], [0, 0, 1, 1], [], []>} : vector<16x32xf32>, vector<32x96xf32>, vector<16x96xf32> -> vector<16x96xf32>
    %c0_16 = arith.constant 0 : index
    %c0_17 = arith.constant 0 : index
    %c0_18 = arith.constant 0 : index
    %27 = vector.load %arg6[%c0_16, %c0_17, %c0_18] : memref<2x1x96xf32, #tpu.memory_space<vmem>>, vector<1x1x96xf32>
    %28 = vector.shape_cast %27 : vector<1x1x96xf32> to vector<1x96xf32>
    %29 = vector.broadcast %28 : vector<1x96xf32> to vector<16x96xf32>
    %30 = arith.addf %26, %29 : vector<16x96xf32>
    %31 = vector.extract_strided_slice %30 {offsets = [0, 0], sizes = [16, 8], strides = [1, 1]} : vector<16x96xf32> to vector<16x8xf32>
    %32 = vector.extract_strided_slice %30 {offsets = [0, 32], sizes = [16, 8], strides = [1, 1]} : vector<16x96xf32> to vector<16x8xf32>
    %33 = vector.extract_strided_slice %30 {offsets = [0, 64], sizes = [16, 8], strides = [1, 1]} : vector<16x96xf32> to vector<16x8xf32>
    %34 = vector.shape_cast %31 : vector<16x8xf32> to vector<2x8x8xf32>
    %35 = vector.shape_cast %32 : vector<16x8xf32> to vector<2x8x8xf32>
    %36 = vector.shape_cast %33 : vector<16x8xf32> to vector<2x8x8xf32>
    %cst_19 = arith.constant dense<0.000000e+00> : vector<2x8x8xf32>
    %37 = tpu.matmul %34, %35, %cst_19 {dimension_numbers = #tpu.dot_dimension_numbers<[2], [2], [1], [1], [0, 0, 0, 1, 1, 1], [0], [0]>} : vector<2x8x8xf32>, vector<2x8x8xf32>, vector<2x8x8xf32> -> vector<2x8x8xf32>
    %cst_20 = arith.constant 0.353553385 : f32
    %38 = vector.broadcast %cst_20 : f32 to vector<2x8x8xf32>
    %39 = arith.mulf %37, %38 : vector<2x8x8xf32>
    %40 = vector.broadcast %0 : vector<2x1x8xf32> to vector<2x8x8xf32>
    %41 = arith.addf %39, %40 : vector<2x8x8xf32>
    %cst_21 = arith.constant dense<0xFF800000> : vector<2x8xf32>
    %42 = vector.multi_reduction <maximumf>, %41, %cst_21 [2] : vector<2x8x8xf32> to vector<2x8xf32>
    %43 = vector.shape_cast %42 : vector<2x8xf32> to vector<2x8x1xf32>
    %44 = vector.broadcast %43 : vector<2x8x1xf32> to vector<2x8x8xf32>
    %45 = arith.subf %41, %44 : vector<2x8x8xf32>
    %46 = math.exp %45 : vector<2x8x8xf32>
    %cst_22 = arith.constant dense<0.000000e+00> : vector<2x8xf32>
    %47 = vector.multi_reduction <add>, %46, %cst_22 [2] : vector<2x8x8xf32> to vector<2x8xf32>
    %48 = vector.shape_cast %47 : vector<2x8xf32> to vector<2x8x1xf32>
    %49 = tpu.reciprocal %48 {approx = true} : vector<2x8x1xf32> -> vector<2x8x1xf32>
    %50 = vector.broadcast %49 : vector<2x8x1xf32> to vector<2x8x8xf32>
    %51 = arith.mulf %46, %50 : vector<2x8x8xf32>
    %cst_23 = arith.constant dense<0.000000e+00> : vector<2x8x8xf32>
    %52 = tpu.matmul %51, %36, %cst_23 {dimension_numbers = #tpu.dot_dimension_numbers<[2], [1], [1], [2], [0, 0, 0, 1, 1, 2], [0], [0]>} : vector<2x8x8xf32>, vector<2x8x8xf32>, vector<2x8x8xf32> -> vector<2x8x8xf32>
    %53 = vector.shape_cast %52 : vector<2x8x8xf32> to vector<16x8xf32>
    %54 = vector.extract_strided_slice %30 {offsets = [0, 8], sizes = [16, 8], strides = [1, 1]} : vector<16x96xf32> to vector<16x8xf32>
    %55 = vector.extract_strided_slice %30 {offsets = [0, 40], sizes = [16, 8], strides = [1, 1]} : vector<16x96xf32> to vector<16x8xf32>
    %56 = vector.extract_strided_slice %30 {offsets = [0, 72], sizes = [16, 8], strides = [1, 1]} : vector<16x96xf32> to vector<16x8xf32>
    %57 = vector.shape_cast %54 : vector<16x8xf32> to vector<2x8x8xf32>
    %58 = vector.shape_cast %55 : vector<16x8xf32> to vector<2x8x8xf32>
    %59 = vector.shape_cast %56 : vector<16x8xf32> to vector<2x8x8xf32>
    %cst_24 = arith.constant dense<0.000000e+00> : vector<2x8x8xf32>
    %60 = tpu.matmul %57, %58, %cst_24 {dimension_numbers = #tpu.dot_dimension_numbers<[2], [2], [1], [1], [0, 0, 0, 1, 1, 1], [0], [0]>} : vector<2x8x8xf32>, vector<2x8x8xf32>, vector<2x8x8xf32> -> vector<2x8x8xf32>
    %cst_25 = arith.constant 0.353553385 : f32
    %61 = vector.broadcast %cst_25 : f32 to vector<2x8x8xf32>
    %62 = arith.mulf %60, %61 : vector<2x8x8xf32>
    %63 = vector.broadcast %0 : vector<2x1x8xf32> to vector<2x8x8xf32>
    %64 = arith.addf %62, %63 : vector<2x8x8xf32>
    %cst_26 = arith.constant dense<0xFF800000> : vector<2x8xf32>
    %65 = vector.multi_reduction <maximumf>, %64, %cst_26 [2] : vector<2x8x8xf32> to vector<2x8xf32>
    %66 = vector.shape_cast %65 : vector<2x8xf32> to vector<2x8x1xf32>
    %67 = vector.broadcast %66 : vector<2x8x1xf32> to vector<2x8x8xf32>
    %68 = arith.subf %64, %67 : vector<2x8x8xf32>
    %69 = math.exp %68 : vector<2x8x8xf32>
    %cst_27 = arith.constant dense<0.000000e+00> : vector<2x8xf32>
    %70 = vector.multi_reduction <add>, %69, %cst_27 [2] : vector<2x8x8xf32> to vector<2x8xf32>
    %71 = vector.shape_cast %70 : vector<2x8xf32> to vector<2x8x1xf32>
    %72 = tpu.reciprocal %71 {approx = true} : vector<2x8x1xf32> -> vector<2x8x1xf32>
    %73 = vector.broadcast %72 : vector<2x8x1xf32> to vector<2x8x8xf32>
    %74 = arith.mulf %69, %73 : vector<2x8x8xf32>
    %cst_28 = arith.constant dense<0.000000e+00> : vector<2x8x8xf32>
    %75 = tpu.matmul %74, %59, %cst_28 {dimension_numbers = #tpu.dot_dimension_numbers<[2], [1], [1], [2], [0, 0, 0, 1, 1, 2], [0], [0]>} : vector<2x8x8xf32>, vector<2x8x8xf32>, vector<2x8x8xf32> -> vector<2x8x8xf32>
    %76 = vector.shape_cast %75 : vector<2x8x8xf32> to vector<16x8xf32>
    %77 = vector.extract_strided_slice %30 {offsets = [0, 16], sizes = [16, 8], strides = [1, 1]} : vector<16x96xf32> to vector<16x8xf32>
    %78 = vector.extract_strided_slice %30 {offsets = [0, 48], sizes = [16, 8], strides = [1, 1]} : vector<16x96xf32> to vector<16x8xf32>
    %79 = vector.extract_strided_slice %30 {offsets = [0, 80], sizes = [16, 8], strides = [1, 1]} : vector<16x96xf32> to vector<16x8xf32>
    %80 = vector.shape_cast %77 : vector<16x8xf32> to vector<2x8x8xf32>
    %81 = vector.shape_cast %78 : vector<16x8xf32> to vector<2x8x8xf32>
    %82 = vector.shape_cast %79 : vector<16x8xf32> to vector<2x8x8xf32>
    %cst_29 = arith.constant dense<0.000000e+00> : vector<2x8x8xf32>
    %83 = tpu.matmul %80, %81, %cst_29 {dimension_numbers = #tpu.dot_dimension_numbers<[2], [2], [1], [1], [0, 0, 0, 1, 1, 1], [0], [0]>} : vector<2x8x8xf32>, vector<2x8x8xf32>, vector<2x8x8xf32> -> vector<2x8x8xf32>
    %cst_30 = arith.constant 0.353553385 : f32
    %84 = vector.broadcast %cst_30 : f32 to vector<2x8x8xf32>
    %85 = arith.mulf %83, %84 : vector<2x8x8xf32>
    %86 = vector.broadcast %0 : vector<2x1x8xf32> to vector<2x8x8xf32>
    %87 = arith.addf %85, %86 : vector<2x8x8xf32>
    %cst_31 = arith.constant dense<0xFF800000> : vector<2x8xf32>
    %88 = vector.multi_reduction <maximumf>, %87, %cst_31 [2] : vector<2x8x8xf32> to vector<2x8xf32>
    %89 = vector.shape_cast %88 : vector<2x8xf32> to vector<2x8x1xf32>
    %90 = vector.broadcast %89 : vector<2x8x1xf32> to vector<2x8x8xf32>
    %91 = arith.subf %87, %90 : vector<2x8x8xf32>
    %92 = math.exp %91 : vector<2x8x8xf32>
    %cst_32 = arith.constant dense<0.000000e+00> : vector<2x8xf32>
    %93 = vector.multi_reduction <add>, %92, %cst_32 [2] : vector<2x8x8xf32> to vector<2x8xf32>
    %94 = vector.shape_cast %93 : vector<2x8xf32> to vector<2x8x1xf32>
    %95 = tpu.reciprocal %94 {approx = true} : vector<2x8x1xf32> -> vector<2x8x1xf32>
    %96 = vector.broadcast %95 : vector<2x8x1xf32> to vector<2x8x8xf32>
    %97 = arith.mulf %92, %96 : vector<2x8x8xf32>
    %cst_33 = arith.constant dense<0.000000e+00> : vector<2x8x8xf32>
    %98 = tpu.matmul %97, %82, %cst_33 {dimension_numbers = #tpu.dot_dimension_numbers<[2], [1], [1], [2], [0, 0, 0, 1, 1, 2], [0], [0]>} : vector<2x8x8xf32>, vector<2x8x8xf32>, vector<2x8x8xf32> -> vector<2x8x8xf32>
    %99 = vector.shape_cast %98 : vector<2x8x8xf32> to vector<16x8xf32>
    %100 = vector.extract_strided_slice %30 {offsets = [0, 24], sizes = [16, 8], strides = [1, 1]} : vector<16x96xf32> to vector<16x8xf32>
    %101 = vector.extract_strided_slice %30 {offsets = [0, 56], sizes = [16, 8], strides = [1, 1]} : vector<16x96xf32> to vector<16x8xf32>
    %102 = vector.extract_strided_slice %30 {offsets = [0, 88], sizes = [16, 8], strides = [1, 1]} : vector<16x96xf32> to vector<16x8xf32>
    %103 = vector.shape_cast %100 : vector<16x8xf32> to vector<2x8x8xf32>
    %104 = vector.shape_cast %101 : vector<16x8xf32> to vector<2x8x8xf32>
    %105 = vector.shape_cast %102 : vector<16x8xf32> to vector<2x8x8xf32>
    %cst_34 = arith.constant dense<0.000000e+00> : vector<2x8x8xf32>
    %106 = tpu.matmul %103, %104, %cst_34 {dimension_numbers = #tpu.dot_dimension_numbers<[2], [2], [1], [1], [0, 0, 0, 1, 1, 1], [0], [0]>} : vector<2x8x8xf32>, vector<2x8x8xf32>, vector<2x8x8xf32> -> vector<2x8x8xf32>
    %cst_35 = arith.constant 0.353553385 : f32
    %107 = vector.broadcast %cst_35 : f32 to vector<2x8x8xf32>
    %108 = arith.mulf %106, %107 : vector<2x8x8xf32>
    %109 = vector.broadcast %0 : vector<2x1x8xf32> to vector<2x8x8xf32>
    %110 = arith.addf %108, %109 : vector<2x8x8xf32>
    %cst_36 = arith.constant dense<0xFF800000> : vector<2x8xf32>
    %111 = vector.multi_reduction <maximumf>, %110, %cst_36 [2] : vector<2x8x8xf32> to vector<2x8xf32>
    %112 = vector.shape_cast %111 : vector<2x8xf32> to vector<2x8x1xf32>
    %113 = vector.broadcast %112 : vector<2x8x1xf32> to vector<2x8x8xf32>
    %114 = arith.subf %110, %113 : vector<2x8x8xf32>
    %115 = math.exp %114 : vector<2x8x8xf32>
    %cst_37 = arith.constant dense<0.000000e+00> : vector<2x8xf32>
    %116 = vector.multi_reduction <add>, %115, %cst_37 [2] : vector<2x8x8xf32> to vector<2x8xf32>
    %117 = vector.shape_cast %116 : vector<2x8xf32> to vector<2x8x1xf32>
    %118 = tpu.reciprocal %117 {approx = true} : vector<2x8x1xf32> -> vector<2x8x1xf32>
    %119 = vector.broadcast %118 : vector<2x8x1xf32> to vector<2x8x8xf32>
    %120 = arith.mulf %115, %119 : vector<2x8x8xf32>
    %cst_38 = arith.constant dense<0.000000e+00> : vector<2x8x8xf32>
    %121 = tpu.matmul %120, %105, %cst_38 {dimension_numbers = #tpu.dot_dimension_numbers<[2], [1], [1], [2], [0, 0, 0, 1, 1, 2], [0], [0]>} : vector<2x8x8xf32>, vector<2x8x8xf32>, vector<2x8x8xf32> -> vector<2x8x8xf32>
    %122 = vector.shape_cast %121 : vector<2x8x8xf32> to vector<16x8xf32>
    %123 = tpu.concatenate %53, %76, %99, %122 in 1 : vector<16x8xf32>, vector<16x8xf32>, vector<16x8xf32>, vector<16x8xf32> -> vector<16x32xf32>
    %c0_39 = arith.constant 0 : index
    %c0_40 = arith.constant 0 : index
    %c0_41 = arith.constant 0 : index
    %124 = vector.load %arg7[%c0_39, %c0_40, %c0_41] : memref<2x32x32xf32, #tpu.memory_space<vmem>>, vector<1x32x32xf32>
    %125 = vector.shape_cast %124 : vector<1x32x32xf32> to vector<32x32xf32>
    %cst_42 = arith.constant dense<0.000000e+00> : vector<16x32xf32>
    %126 = tpu.matmul %123, %125, %cst_42 {dimension_numbers = #tpu.dot_dimension_numbers<[1], [0], [0], [1], [0, 0, 1, 1], [], []>} : vector<16x32xf32>, vector<32x32xf32>, vector<16x32xf32> -> vector<16x32xf32>
    %c0_43 = arith.constant 0 : index
    %c0_44 = arith.constant 0 : index
    %c0_45 = arith.constant 0 : index
    %127 = vector.load %arg8[%c0_43, %c0_44, %c0_45] : memref<2x1x32xf32, #tpu.memory_space<vmem>>, vector<1x1x32xf32>
    %128 = vector.shape_cast %127 : vector<1x1x32xf32> to vector<1x32xf32>
    %129 = vector.broadcast %128 : vector<1x32xf32> to vector<16x32xf32>
    %130 = arith.addf %126, %129 : vector<16x32xf32>
    %131 = arith.addf %130, %23 : vector<16x32xf32>
    %c0_46 = arith.constant 0 : index
    %c0_47 = arith.constant 0 : index
    %c0_48 = arith.constant 0 : index
    %132 = vector.load %arg9[%c0_46, %c0_47, %c0_48] : memref<2x1x32xf32, #tpu.memory_space<vmem>>, vector<1x1x32xf32>
    %133 = vector.shape_cast %132 : vector<1x1x32xf32> to vector<1x32xf32>
    %c0_49 = arith.constant 0 : index
    %c0_50 = arith.constant 0 : index
    %c0_51 = arith.constant 0 : index
    %134 = vector.load %arg10[%c0_49, %c0_50, %c0_51] : memref<2x1x32xf32, #tpu.memory_space<vmem>>, vector<1x1x32xf32>
    %135 = vector.shape_cast %134 : vector<1x1x32xf32> to vector<1x32xf32>
    %cst_52 = arith.constant dense<0.000000e+00> : vector<16xf32>
    %136 = vector.multi_reduction <add>, %131, %cst_52 [1] : vector<16x32xf32> to vector<16xf32>
    %137 = vector.shape_cast %136 : vector<16xf32> to vector<16x1xf32>
    %cst_53 = arith.constant 3.200000e+01 : f32
    %138 = vector.broadcast %cst_53 : f32 to vector<16x1xf32>
    %139 = arith.divf %137, %138 : vector<16x1xf32>
    %140 = vector.broadcast %139 : vector<16x1xf32> to vector<16x32xf32>
    %141 = arith.subf %131, %140 : vector<16x32xf32>
    %142 = arith.mulf %141, %141 : vector<16x32xf32>
    %cst_54 = arith.constant dense<0.000000e+00> : vector<16xf32>
    %143 = vector.multi_reduction <add>, %142, %cst_54 [1] : vector<16x32xf32> to vector<16xf32>
    %144 = vector.shape_cast %143 : vector<16xf32> to vector<16x1xf32>
    %cst_55 = arith.constant 3.200000e+01 : f32
    %145 = vector.broadcast %cst_55 : f32 to vector<16x1xf32>
    %146 = arith.divf %144, %145 : vector<16x1xf32>
    %cst_56 = arith.constant 9.99999996E-13 : f32
    %147 = vector.broadcast %cst_56 : f32 to vector<16x1xf32>
    %148 = arith.addf %146, %147 : vector<16x1xf32>
    %149 = math.rsqrt %148 : vector<16x1xf32>
    %150 = vector.broadcast %149 : vector<16x1xf32> to vector<16x32xf32>
    %151 = arith.mulf %141, %150 : vector<16x32xf32>
    %152 = vector.broadcast %133 : vector<1x32xf32> to vector<16x32xf32>
    %153 = arith.mulf %151, %152 : vector<16x32xf32>
    %154 = vector.broadcast %135 : vector<1x32xf32> to vector<16x32xf32>
    %155 = arith.addf %153, %154 : vector<16x32xf32>
    %c0_57 = arith.constant 0 : index
    %c0_58 = arith.constant 0 : index
    %c0_59 = arith.constant 0 : index
    %156 = vector.load %arg11[%c0_57, %c0_58, %c0_59] : memref<2x32x64xf32, #tpu.memory_space<vmem>>, vector<1x32x64xf32>
    %157 = vector.shape_cast %156 : vector<1x32x64xf32> to vector<32x64xf32>
    %cst_60 = arith.constant dense<0.000000e+00> : vector<16x64xf32>
    %158 = tpu.matmul %155, %157, %cst_60 {dimension_numbers = #tpu.dot_dimension_numbers<[1], [0], [0], [1], [0, 0, 1, 1], [], []>} : vector<16x32xf32>, vector<32x64xf32>, vector<16x64xf32> -> vector<16x64xf32>
    %c0_61 = arith.constant 0 : index
    %c0_62 = arith.constant 0 : index
    %c0_63 = arith.constant 0 : index
    %159 = vector.load %arg12[%c0_61, %c0_62, %c0_63] : memref<2x1x64xf32, #tpu.memory_space<vmem>>, vector<1x1x64xf32>
    %160 = vector.shape_cast %159 : vector<1x1x64xf32> to vector<1x64xf32>
    %161 = vector.broadcast %160 : vector<1x64xf32> to vector<16x64xf32>
    %162 = arith.addf %158, %161 : vector<16x64xf32>
    %cst_64 = arith.constant 5.000000e-01 : f32
    %163 = vector.broadcast %cst_64 : f32 to vector<16x64xf32>
    %164 = arith.mulf %163, %162 : vector<16x64xf32>
    %cst_65 = arith.constant 4.471500e-02 : f32
    %165 = vector.broadcast %cst_65 : f32 to vector<16x64xf32>
    %166 = arith.mulf %165, %162 : vector<16x64xf32>
    %167 = arith.mulf %166, %162 : vector<16x64xf32>
    %168 = arith.mulf %167, %162 : vector<16x64xf32>
    %169 = arith.addf %162, %168 : vector<16x64xf32>
    %cst_66 = arith.constant 0.797884583 : f32
    %170 = vector.broadcast %cst_66 : f32 to vector<16x64xf32>
    %171 = arith.mulf %170, %169 : vector<16x64xf32>
    %172 = math.tanh %171 : vector<16x64xf32>
    %cst_67 = arith.constant 1.000000e+00 : f32
    %173 = vector.broadcast %cst_67 : f32 to vector<16x64xf32>
    %174 = arith.addf %173, %172 : vector<16x64xf32>
    %175 = arith.mulf %164, %174 : vector<16x64xf32>
    %c0_68 = arith.constant 0 : index
    %c0_69 = arith.constant 0 : index
    %c0_70 = arith.constant 0 : index
    %176 = vector.load %arg13[%c0_68, %c0_69, %c0_70] : memref<2x64x32xf32, #tpu.memory_space<vmem>>, vector<1x64x32xf32>
    %177 = vector.shape_cast %176 : vector<1x64x32xf32> to vector<64x32xf32>
    %cst_71 = arith.constant dense<0.000000e+00> : vector<16x32xf32>
    %178 = tpu.matmul %175, %177, %cst_71 {dimension_numbers = #tpu.dot_dimension_numbers<[1], [0], [0], [1], [0, 0, 1, 1], [], []>} : vector<16x64xf32>, vector<64x32xf32>, vector<16x32xf32> -> vector<16x32xf32>
    %c0_72 = arith.constant 0 : index
    %c0_73 = arith.constant 0 : index
    %c0_74 = arith.constant 0 : index
    %179 = vector.load %arg14[%c0_72, %c0_73, %c0_74] : memref<2x1x32xf32, #tpu.memory_space<vmem>>, vector<1x1x32xf32>
    %180 = vector.shape_cast %179 : vector<1x1x32xf32> to vector<1x32xf32>
    %181 = vector.broadcast %180 : vector<1x32xf32> to vector<16x32xf32>
    %182 = arith.addf %178, %181 : vector<16x32xf32>
    %183 = arith.addf %182, %155 : vector<16x32xf32>
    %c0_75 = arith.constant 0 : index
    %c0_76 = arith.constant 0 : index
    %c0_77 = arith.constant 0 : index
    %184 = vector.load %arg15[%c0_75, %c0_76, %c0_77] : memref<2x1x32xf32, #tpu.memory_space<vmem>>, vector<1x1x32xf32>
    %185 = vector.shape_cast %184 : vector<1x1x32xf32> to vector<1x32xf32>
    %c0_78 = arith.constant 0 : index
    %c0_79 = arith.constant 0 : index
    %c0_80 = arith.constant 0 : index
    %186 = vector.load %arg16[%c0_78, %c0_79, %c0_80] : memref<2x1x32xf32, #tpu.memory_space<vmem>>, vector<1x1x32xf32>
    %187 = vector.shape_cast %186 : vector<1x1x32xf32> to vector<1x32xf32>
    %cst_81 = arith.constant dense<0.000000e+00> : vector<16xf32>
    %188 = vector.multi_reduction <add>, %183, %cst_81 [1] : vector<16x32xf32> to vector<16xf32>
    %189 = vector.shape_cast %188 : vector<16xf32> to vector<16x1xf32>
    %cst_82 = arith.constant 3.200000e+01 : f32
    %190 = vector.broadcast %cst_82 : f32 to vector<16x1xf32>
    %191 = arith.divf %189, %190 : vector<16x1xf32>
    %192 = vector.broadcast %191 : vector<16x1xf32> to vector<16x32xf32>
    %193 = arith.subf %183, %192 : vector<16x32xf32>
    %194 = arith.mulf %193, %193 : vector<16x32xf32>
    %cst_83 = arith.constant dense<0.000000e+00> : vector<16xf32>
    %195 = vector.multi_reduction <add>, %194, %cst_83 [1] : vector<16x32xf32> to vector<16xf32>
    %196 = vector.shape_cast %195 : vector<16xf32> to vector<16x1xf32>
    %cst_84 = arith.constant 3.200000e+01 : f32
    %197 = vector.broadcast %cst_84 : f32 to vector<16x1xf32>
    %198 = arith.divf %196, %197 : vector<16x1xf32>
    %cst_85 = arith.constant 9.99999996E-13 : f32
    %199 = vector.broadcast %cst_85 : f32 to vector<16x1xf32>
    %200 = arith.addf %198, %199 : vector<16x1xf32>
    %201 = math.rsqrt %200 : vector<16x1xf32>
    %202 = vector.broadcast %201 : vector<16x1xf32> to vector<16x32xf32>
    %203 = arith.mulf %193, %202 : vector<16x32xf32>
    %204 = vector.broadcast %185 : vector<1x32xf32> to vector<16x32xf32>
    %205 = arith.mulf %203, %204 : vector<16x32xf32>
    %206 = vector.broadcast %187 : vector<1x32xf32> to vector<16x32xf32>
    %207 = arith.addf %205, %206 : vector<16x32xf32>
    %c1 = arith.constant 1 : index
    %c0_86 = arith.constant 0 : index
    %c0_87 = arith.constant 0 : index
    %208 = vector.load %arg5[%c1, %c0_86, %c0_87] : memref<2x32x96xf32, #tpu.memory_space<vmem>>, vector<1x32x96xf32>
    %209 = vector.shape_cast %208 : vector<1x32x96xf32> to vector<32x96xf32>
    %cst_88 = arith.constant dense<0.000000e+00> : vector<16x96xf32>
    %210 = tpu.matmul %207, %209, %cst_88 {dimension_numbers = #tpu.dot_dimension_numbers<[1], [0], [0], [1], [0, 0, 1, 1], [], []>} : vector<16x32xf32>, vector<32x96xf32>, vector<16x96xf32> -> vector<16x96xf32>
    %c1_89 = arith.constant 1 : index
    %c0_90 = arith.constant 0 : index
    %c0_91 = arith.constant 0 : index
    %211 = vector.load %arg6[%c1_89, %c0_90, %c0_91] : memref<2x1x96xf32, #tpu.memory_space<vmem>>, vector<1x1x96xf32>
    %212 = vector.shape_cast %211 : vector<1x1x96xf32> to vector<1x96xf32>
    %213 = vector.broadcast %212 : vector<1x96xf32> to vector<16x96xf32>
    %214 = arith.addf %210, %213 : vector<16x96xf32>
    %215 = vector.extract_strided_slice %214 {offsets = [0, 0], sizes = [16, 8], strides = [1, 1]} : vector<16x96xf32> to vector<16x8xf32>
    %216 = vector.extract_strided_slice %214 {offsets = [0, 32], sizes = [16, 8], strides = [1, 1]} : vector<16x96xf32> to vector<16x8xf32>
    %217 = vector.extract_strided_slice %214 {offsets = [0, 64], sizes = [16, 8], strides = [1, 1]} : vector<16x96xf32> to vector<16x8xf32>
    %218 = vector.shape_cast %215 : vector<16x8xf32> to vector<2x8x8xf32>
    %219 = vector.shape_cast %216 : vector<16x8xf32> to vector<2x8x8xf32>
    %220 = vector.shape_cast %217 : vector<16x8xf32> to vector<2x8x8xf32>
    %cst_92 = arith.constant dense<0.000000e+00> : vector<2x8x8xf32>
    %221 = tpu.matmul %218, %219, %cst_92 {dimension_numbers = #tpu.dot_dimension_numbers<[2], [2], [1], [1], [0, 0, 0, 1, 1, 1], [0], [0]>} : vector<2x8x8xf32>, vector<2x8x8xf32>, vector<2x8x8xf32> -> vector<2x8x8xf32>
    %cst_93 = arith.constant 0.353553385 : f32
    %222 = vector.broadcast %cst_93 : f32 to vector<2x8x8xf32>
    %223 = arith.mulf %221, %222 : vector<2x8x8xf32>
    %224 = vector.broadcast %0 : vector<2x1x8xf32> to vector<2x8x8xf32>
    %225 = arith.addf %223, %224 : vector<2x8x8xf32>
    %cst_94 = arith.constant dense<0xFF800000> : vector<2x8xf32>
    %226 = vector.multi_reduction <maximumf>, %225, %cst_94 [2] : vector<2x8x8xf32> to vector<2x8xf32>
    %227 = vector.shape_cast %226 : vector<2x8xf32> to vector<2x8x1xf32>
    %228 = vector.broadcast %227 : vector<2x8x1xf32> to vector<2x8x8xf32>
    %229 = arith.subf %225, %228 : vector<2x8x8xf32>
    %230 = math.exp %229 : vector<2x8x8xf32>
    %cst_95 = arith.constant dense<0.000000e+00> : vector<2x8xf32>
    %231 = vector.multi_reduction <add>, %230, %cst_95 [2] : vector<2x8x8xf32> to vector<2x8xf32>
    %232 = vector.shape_cast %231 : vector<2x8xf32> to vector<2x8x1xf32>
    %233 = tpu.reciprocal %232 {approx = true} : vector<2x8x1xf32> -> vector<2x8x1xf32>
    %234 = vector.broadcast %233 : vector<2x8x1xf32> to vector<2x8x8xf32>
    %235 = arith.mulf %230, %234 : vector<2x8x8xf32>
    %cst_96 = arith.constant dense<0.000000e+00> : vector<2x8x8xf32>
    %236 = tpu.matmul %235, %220, %cst_96 {dimension_numbers = #tpu.dot_dimension_numbers<[2], [1], [1], [2], [0, 0, 0, 1, 1, 2], [0], [0]>} : vector<2x8x8xf32>, vector<2x8x8xf32>, vector<2x8x8xf32> -> vector<2x8x8xf32>
    %237 = vector.shape_cast %236 : vector<2x8x8xf32> to vector<16x8xf32>
    %238 = vector.shape_cast %235 : vector<2x8x8xf32> to vector<16x8xf32>
    %239 = vector.extract_strided_slice %214 {offsets = [0, 8], sizes = [16, 8], strides = [1, 1]} : vector<16x96xf32> to vector<16x8xf32>
    %240 = vector.extract_strided_slice %214 {offsets = [0, 40], sizes = [16, 8], strides = [1, 1]} : vector<16x96xf32> to vector<16x8xf32>
    %241 = vector.extract_strided_slice %214 {offsets = [0, 72], sizes = [16, 8], strides = [1, 1]} : vector<16x96xf32> to vector<16x8xf32>
    %242 = vector.shape_cast %239 : vector<16x8xf32> to vector<2x8x8xf32>
    %243 = vector.shape_cast %240 : vector<16x8xf32> to vector<2x8x8xf32>
    %244 = vector.shape_cast %241 : vector<16x8xf32> to vector<2x8x8xf32>
    %cst_97 = arith.constant dense<0.000000e+00> : vector<2x8x8xf32>
    %245 = tpu.matmul %242, %243, %cst_97 {dimension_numbers = #tpu.dot_dimension_numbers<[2], [2], [1], [1], [0, 0, 0, 1, 1, 1], [0], [0]>} : vector<2x8x8xf32>, vector<2x8x8xf32>, vector<2x8x8xf32> -> vector<2x8x8xf32>
    %cst_98 = arith.constant 0.353553385 : f32
    %246 = vector.broadcast %cst_98 : f32 to vector<2x8x8xf32>
    %247 = arith.mulf %245, %246 : vector<2x8x8xf32>
    %248 = vector.broadcast %0 : vector<2x1x8xf32> to vector<2x8x8xf32>
    %249 = arith.addf %247, %248 : vector<2x8x8xf32>
    %cst_99 = arith.constant dense<0xFF800000> : vector<2x8xf32>
    %250 = vector.multi_reduction <maximumf>, %249, %cst_99 [2] : vector<2x8x8xf32> to vector<2x8xf32>
    %251 = vector.shape_cast %250 : vector<2x8xf32> to vector<2x8x1xf32>
    %252 = vector.broadcast %251 : vector<2x8x1xf32> to vector<2x8x8xf32>
    %253 = arith.subf %249, %252 : vector<2x8x8xf32>
    %254 = math.exp %253 : vector<2x8x8xf32>
    %cst_100 = arith.constant dense<0.000000e+00> : vector<2x8xf32>
    %255 = vector.multi_reduction <add>, %254, %cst_100 [2] : vector<2x8x8xf32> to vector<2x8xf32>
    %256 = vector.shape_cast %255 : vector<2x8xf32> to vector<2x8x1xf32>
    %257 = tpu.reciprocal %256 {approx = true} : vector<2x8x1xf32> -> vector<2x8x1xf32>
    %258 = vector.broadcast %257 : vector<2x8x1xf32> to vector<2x8x8xf32>
    %259 = arith.mulf %254, %258 : vector<2x8x8xf32>
    %cst_101 = arith.constant dense<0.000000e+00> : vector<2x8x8xf32>
    %260 = tpu.matmul %259, %244, %cst_101 {dimension_numbers = #tpu.dot_dimension_numbers<[2], [1], [1], [2], [0, 0, 0, 1, 1, 2], [0], [0]>} : vector<2x8x8xf32>, vector<2x8x8xf32>, vector<2x8x8xf32> -> vector<2x8x8xf32>
    %261 = vector.shape_cast %260 : vector<2x8x8xf32> to vector<16x8xf32>
    %262 = vector.shape_cast %259 : vector<2x8x8xf32> to vector<16x8xf32>
    %263 = vector.extract_strided_slice %214 {offsets = [0, 16], sizes = [16, 8], strides = [1, 1]} : vector<16x96xf32> to vector<16x8xf32>
    %264 = vector.extract_strided_slice %214 {offsets = [0, 48], sizes = [16, 8], strides = [1, 1]} : vector<16x96xf32> to vector<16x8xf32>
    %265 = vector.extract_strided_slice %214 {offsets = [0, 80], sizes = [16, 8], strides = [1, 1]} : vector<16x96xf32> to vector<16x8xf32>
    %266 = vector.shape_cast %263 : vector<16x8xf32> to vector<2x8x8xf32>
    %267 = vector.shape_cast %264 : vector<16x8xf32> to vector<2x8x8xf32>
    %268 = vector.shape_cast %265 : vector<16x8xf32> to vector<2x8x8xf32>
    %cst_102 = arith.constant dense<0.000000e+00> : vector<2x8x8xf32>
    %269 = tpu.matmul %266, %267, %cst_102 {dimension_numbers = #tpu.dot_dimension_numbers<[2], [2], [1], [1], [0, 0, 0, 1, 1, 1], [0], [0]>} : vector<2x8x8xf32>, vector<2x8x8xf32>, vector<2x8x8xf32> -> vector<2x8x8xf32>
    %cst_103 = arith.constant 0.353553385 : f32
    %270 = vector.broadcast %cst_103 : f32 to vector<2x8x8xf32>
    %271 = arith.mulf %269, %270 : vector<2x8x8xf32>
    %272 = vector.broadcast %0 : vector<2x1x8xf32> to vector<2x8x8xf32>
    %273 = arith.addf %271, %272 : vector<2x8x8xf32>
    %cst_104 = arith.constant dense<0xFF800000> : vector<2x8xf32>
    %274 = vector.multi_reduction <maximumf>, %273, %cst_104 [2] : vector<2x8x8xf32> to vector<2x8xf32>
    %275 = vector.shape_cast %274 : vector<2x8xf32> to vector<2x8x1xf32>
    %276 = vector.broadcast %275 : vector<2x8x1xf32> to vector<2x8x8xf32>
    %277 = arith.subf %273, %276 : vector<2x8x8xf32>
    %278 = math.exp %277 : vector<2x8x8xf32>
    %cst_105 = arith.constant dense<0.000000e+00> : vector<2x8xf32>
    %279 = vector.multi_reduction <add>, %278, %cst_105 [2] : vector<2x8x8xf32> to vector<2x8xf32>
    %280 = vector.shape_cast %279 : vector<2x8xf32> to vector<2x8x1xf32>
    %281 = tpu.reciprocal %280 {approx = true} : vector<2x8x1xf32> -> vector<2x8x1xf32>
    %282 = vector.broadcast %281 : vector<2x8x1xf32> to vector<2x8x8xf32>
    %283 = arith.mulf %278, %282 : vector<2x8x8xf32>
    %cst_106 = arith.constant dense<0.000000e+00> : vector<2x8x8xf32>
    %284 = tpu.matmul %283, %268, %cst_106 {dimension_numbers = #tpu.dot_dimension_numbers<[2], [1], [1], [2], [0, 0, 0, 1, 1, 2], [0], [0]>} : vector<2x8x8xf32>, vector<2x8x8xf32>, vector<2x8x8xf32> -> vector<2x8x8xf32>
    %285 = vector.shape_cast %284 : vector<2x8x8xf32> to vector<16x8xf32>
    %286 = vector.shape_cast %283 : vector<2x8x8xf32> to vector<16x8xf32>
    %287 = vector.extract_strided_slice %214 {offsets = [0, 24], sizes = [16, 8], strides = [1, 1]} : vector<16x96xf32> to vector<16x8xf32>
    %288 = vector.extract_strided_slice %214 {offsets = [0, 56], sizes = [16, 8], strides = [1, 1]} : vector<16x96xf32> to vector<16x8xf32>
    %289 = vector.extract_strided_slice %214 {offsets = [0, 88], sizes = [16, 8], strides = [1, 1]} : vector<16x96xf32> to vector<16x8xf32>
    %290 = vector.shape_cast %287 : vector<16x8xf32> to vector<2x8x8xf32>
    %291 = vector.shape_cast %288 : vector<16x8xf32> to vector<2x8x8xf32>
    %292 = vector.shape_cast %289 : vector<16x8xf32> to vector<2x8x8xf32>
    %cst_107 = arith.constant dense<0.000000e+00> : vector<2x8x8xf32>
    %293 = tpu.matmul %290, %291, %cst_107 {dimension_numbers = #tpu.dot_dimension_numbers<[2], [2], [1], [1], [0, 0, 0, 1, 1, 1], [0], [0]>} : vector<2x8x8xf32>, vector<2x8x8xf32>, vector<2x8x8xf32> -> vector<2x8x8xf32>
    %cst_108 = arith.constant 0.353553385 : f32
    %294 = vector.broadcast %cst_108 : f32 to vector<2x8x8xf32>
    %295 = arith.mulf %293, %294 : vector<2x8x8xf32>
    %296 = vector.broadcast %0 : vector<2x1x8xf32> to vector<2x8x8xf32>
    %297 = arith.addf %295, %296 : vector<2x8x8xf32>
    %cst_109 = arith.constant dense<0xFF800000> : vector<2x8xf32>
    %298 = vector.multi_reduction <maximumf>, %297, %cst_109 [2] : vector<2x8x8xf32> to vector<2x8xf32>
    %299 = vector.shape_cast %298 : vector<2x8xf32> to vector<2x8x1xf32>
    %300 = vector.broadcast %299 : vector<2x8x1xf32> to vector<2x8x8xf32>
    %301 = arith.subf %297, %300 : vector<2x8x8xf32>
    %302 = math.exp %301 : vector<2x8x8xf32>
    %cst_110 = arith.constant dense<0.000000e+00> : vector<2x8xf32>
    %303 = vector.multi_reduction <add>, %302, %cst_110 [2] : vector<2x8x8xf32> to vector<2x8xf32>
    %304 = vector.shape_cast %303 : vector<2x8xf32> to vector<2x8x1xf32>
    %305 = tpu.reciprocal %304 {approx = true} : vector<2x8x1xf32> -> vector<2x8x1xf32>
    %306 = vector.broadcast %305 : vector<2x8x1xf32> to vector<2x8x8xf32>
    %307 = arith.mulf %302, %306 : vector<2x8x8xf32>
    %cst_111 = arith.constant dense<0.000000e+00> : vector<2x8x8xf32>
    %308 = tpu.matmul %307, %292, %cst_111 {dimension_numbers = #tpu.dot_dimension_numbers<[2], [1], [1], [2], [0, 0, 0, 1, 1, 2], [0], [0]>} : vector<2x8x8xf32>, vector<2x8x8xf32>, vector<2x8x8xf32> -> vector<2x8x8xf32>
    %309 = vector.shape_cast %308 : vector<2x8x8xf32> to vector<16x8xf32>
    %310 = vector.shape_cast %307 : vector<2x8x8xf32> to vector<16x8xf32>
    %311 = tpu.concatenate %237, %261, %285, %309 in 1 : vector<16x8xf32>, vector<16x8xf32>, vector<16x8xf32>, vector<16x8xf32> -> vector<16x32xf32>
    %c1_112 = arith.constant 1 : index
    %c0_113 = arith.constant 0 : index
    %c0_114 = arith.constant 0 : index
    %312 = vector.load %arg7[%c1_112, %c0_113, %c0_114] : memref<2x32x32xf32, #tpu.memory_space<vmem>>, vector<1x32x32xf32>
    %313 = vector.shape_cast %312 : vector<1x32x32xf32> to vector<32x32xf32>
    %cst_115 = arith.constant dense<0.000000e+00> : vector<16x32xf32>
    %314 = tpu.matmul %311, %313, %cst_115 {dimension_numbers = #tpu.dot_dimension_numbers<[1], [0], [0], [1], [0, 0, 1, 1], [], []>} : vector<16x32xf32>, vector<32x32xf32>, vector<16x32xf32> -> vector<16x32xf32>
    %c1_116 = arith.constant 1 : index
    %c0_117 = arith.constant 0 : index
    %c0_118 = arith.constant 0 : index
    %315 = vector.load %arg8[%c1_116, %c0_117, %c0_118] : memref<2x1x32xf32, #tpu.memory_space<vmem>>, vector<1x1x32xf32>
    %316 = vector.shape_cast %315 : vector<1x1x32xf32> to vector<1x32xf32>
    %317 = vector.broadcast %316 : vector<1x32xf32> to vector<16x32xf32>
    %318 = arith.addf %314, %317 : vector<16x32xf32>
    %319 = arith.addf %318, %207 : vector<16x32xf32>
    %c1_119 = arith.constant 1 : index
    %c0_120 = arith.constant 0 : index
    %c0_121 = arith.constant 0 : index
    %320 = vector.load %arg9[%c1_119, %c0_120, %c0_121] : memref<2x1x32xf32, #tpu.memory_space<vmem>>, vector<1x1x32xf32>
    %321 = vector.shape_cast %320 : vector<1x1x32xf32> to vector<1x32xf32>
    %c1_122 = arith.constant 1 : index
    %c0_123 = arith.constant 0 : index
    %c0_124 = arith.constant 0 : index
    %322 = vector.load %arg10[%c1_122, %c0_123, %c0_124] : memref<2x1x32xf32, #tpu.memory_space<vmem>>, vector<1x1x32xf32>
    %323 = vector.shape_cast %322 : vector<1x1x32xf32> to vector<1x32xf32>
    %cst_125 = arith.constant dense<0.000000e+00> : vector<16xf32>
    %324 = vector.multi_reduction <add>, %319, %cst_125 [1] : vector<16x32xf32> to vector<16xf32>
    %325 = vector.shape_cast %324 : vector<16xf32> to vector<16x1xf32>
    %cst_126 = arith.constant 3.200000e+01 : f32
    %326 = vector.broadcast %cst_126 : f32 to vector<16x1xf32>
    %327 = arith.divf %325, %326 : vector<16x1xf32>
    %328 = vector.broadcast %327 : vector<16x1xf32> to vector<16x32xf32>
    %329 = arith.subf %319, %328 : vector<16x32xf32>
    %330 = arith.mulf %329, %329 : vector<16x32xf32>
    %cst_127 = arith.constant dense<0.000000e+00> : vector<16xf32>
    %331 = vector.multi_reduction <add>, %330, %cst_127 [1] : vector<16x32xf32> to vector<16xf32>
    %332 = vector.shape_cast %331 : vector<16xf32> to vector<16x1xf32>
    %cst_128 = arith.constant 3.200000e+01 : f32
    %333 = vector.broadcast %cst_128 : f32 to vector<16x1xf32>
    %334 = arith.divf %332, %333 : vector<16x1xf32>
    %cst_129 = arith.constant 9.99999996E-13 : f32
    %335 = vector.broadcast %cst_129 : f32 to vector<16x1xf32>
    %336 = arith.addf %334, %335 : vector<16x1xf32>
    %337 = math.rsqrt %336 : vector<16x1xf32>
    %338 = vector.broadcast %337 : vector<16x1xf32> to vector<16x32xf32>
    %339 = arith.mulf %329, %338 : vector<16x32xf32>
    %340 = vector.broadcast %321 : vector<1x32xf32> to vector<16x32xf32>
    %341 = arith.mulf %339, %340 : vector<16x32xf32>
    %342 = vector.broadcast %323 : vector<1x32xf32> to vector<16x32xf32>
    %343 = arith.addf %341, %342 : vector<16x32xf32>
    %c1_130 = arith.constant 1 : index
    %c0_131 = arith.constant 0 : index
    %c0_132 = arith.constant 0 : index
    %344 = vector.load %arg11[%c1_130, %c0_131, %c0_132] : memref<2x32x64xf32, #tpu.memory_space<vmem>>, vector<1x32x64xf32>
    %345 = vector.shape_cast %344 : vector<1x32x64xf32> to vector<32x64xf32>
    %cst_133 = arith.constant dense<0.000000e+00> : vector<16x64xf32>
    %346 = tpu.matmul %343, %345, %cst_133 {dimension_numbers = #tpu.dot_dimension_numbers<[1], [0], [0], [1], [0, 0, 1, 1], [], []>} : vector<16x32xf32>, vector<32x64xf32>, vector<16x64xf32> -> vector<16x64xf32>
    %c1_134 = arith.constant 1 : index
    %c0_135 = arith.constant 0 : index
    %c0_136 = arith.constant 0 : index
    %347 = vector.load %arg12[%c1_134, %c0_135, %c0_136] : memref<2x1x64xf32, #tpu.memory_space<vmem>>, vector<1x1x64xf32>
    %348 = vector.shape_cast %347 : vector<1x1x64xf32> to vector<1x64xf32>
    %349 = vector.broadcast %348 : vector<1x64xf32> to vector<16x64xf32>
    %350 = arith.addf %346, %349 : vector<16x64xf32>
    %cst_137 = arith.constant 5.000000e-01 : f32
    %351 = vector.broadcast %cst_137 : f32 to vector<16x64xf32>
    %352 = arith.mulf %351, %350 : vector<16x64xf32>
    %cst_138 = arith.constant 4.471500e-02 : f32
    %353 = vector.broadcast %cst_138 : f32 to vector<16x64xf32>
    %354 = arith.mulf %353, %350 : vector<16x64xf32>
    %355 = arith.mulf %354, %350 : vector<16x64xf32>
    %356 = arith.mulf %355, %350 : vector<16x64xf32>
    %357 = arith.addf %350, %356 : vector<16x64xf32>
    %cst_139 = arith.constant 0.797884583 : f32
    %358 = vector.broadcast %cst_139 : f32 to vector<16x64xf32>
    %359 = arith.mulf %358, %357 : vector<16x64xf32>
    %360 = math.tanh %359 : vector<16x64xf32>
    %cst_140 = arith.constant 1.000000e+00 : f32
    %361 = vector.broadcast %cst_140 : f32 to vector<16x64xf32>
    %362 = arith.addf %361, %360 : vector<16x64xf32>
    %363 = arith.mulf %352, %362 : vector<16x64xf32>
    %c1_141 = arith.constant 1 : index
    %c0_142 = arith.constant 0 : index
    %c0_143 = arith.constant 0 : index
    %364 = vector.load %arg13[%c1_141, %c0_142, %c0_143] : memref<2x64x32xf32, #tpu.memory_space<vmem>>, vector<1x64x32xf32>
    %365 = vector.shape_cast %364 : vector<1x64x32xf32> to vector<64x32xf32>
    %cst_144 = arith.constant dense<0.000000e+00> : vector<16x32xf32>
    %366 = tpu.matmul %363, %365, %cst_144 {dimension_numbers = #tpu.dot_dimension_numbers<[1], [0], [0], [1], [0, 0, 1, 1], [], []>} : vector<16x64xf32>, vector<64x32xf32>, vector<16x32xf32> -> vector<16x32xf32>
    %c1_145 = arith.constant 1 : index
    %c0_146 = arith.constant 0 : index
    %c0_147 = arith.constant 0 : index
    %367 = vector.load %arg14[%c1_145, %c0_146, %c0_147] : memref<2x1x32xf32, #tpu.memory_space<vmem>>, vector<1x1x32xf32>
    %368 = vector.shape_cast %367 : vector<1x1x32xf32> to vector<1x32xf32>
    %369 = vector.broadcast %368 : vector<1x32xf32> to vector<16x32xf32>
    %370 = arith.addf %366, %369 : vector<16x32xf32>
    %371 = arith.addf %370, %343 : vector<16x32xf32>
    %c1_148 = arith.constant 1 : index
    %c0_149 = arith.constant 0 : index
    %c0_150 = arith.constant 0 : index
    %372 = vector.load %arg15[%c1_148, %c0_149, %c0_150] : memref<2x1x32xf32, #tpu.memory_space<vmem>>, vector<1x1x32xf32>
    %373 = vector.shape_cast %372 : vector<1x1x32xf32> to vector<1x32xf32>
    %c1_151 = arith.constant 1 : index
    %c0_152 = arith.constant 0 : index
    %c0_153 = arith.constant 0 : index
    %374 = vector.load %arg16[%c1_151, %c0_152, %c0_153] : memref<2x1x32xf32, #tpu.memory_space<vmem>>, vector<1x1x32xf32>
    %375 = vector.shape_cast %374 : vector<1x1x32xf32> to vector<1x32xf32>
    %cst_154 = arith.constant dense<0.000000e+00> : vector<16xf32>
    %376 = vector.multi_reduction <add>, %371, %cst_154 [1] : vector<16x32xf32> to vector<16xf32>
    %377 = vector.shape_cast %376 : vector<16xf32> to vector<16x1xf32>
    %cst_155 = arith.constant 3.200000e+01 : f32
    %378 = vector.broadcast %cst_155 : f32 to vector<16x1xf32>
    %379 = arith.divf %377, %378 : vector<16x1xf32>
    %380 = vector.broadcast %379 : vector<16x1xf32> to vector<16x32xf32>
    %381 = arith.subf %371, %380 : vector<16x32xf32>
    %382 = arith.mulf %381, %381 : vector<16x32xf32>
    %cst_156 = arith.constant dense<0.000000e+00> : vector<16xf32>
    %383 = vector.multi_reduction <add>, %382, %cst_156 [1] : vector<16x32xf32> to vector<16xf32>
    %384 = vector.shape_cast %383 : vector<16xf32> to vector<16x1xf32>
    %cst_157 = arith.constant 3.200000e+01 : f32
    %385 = vector.broadcast %cst_157 : f32 to vector<16x1xf32>
    %386 = arith.divf %384, %385 : vector<16x1xf32>
    %cst_158 = arith.constant 9.99999996E-13 : f32
    %387 = vector.broadcast %cst_158 : f32 to vector<16x1xf32>
    %388 = arith.addf %386, %387 : vector<16x1xf32>
    %389 = math.rsqrt %388 : vector<16x1xf32>
    %390 = vector.broadcast %389 : vector<16x1xf32> to vector<16x32xf32>
    %391 = arith.mulf %381, %390 : vector<16x32xf32>
    %392 = vector.broadcast %373 : vector<1x32xf32> to vector<16x32xf32>
    %393 = arith.mulf %391, %392 : vector<16x32xf32>
    %394 = vector.broadcast %375 : vector<1x32xf32> to vector<16x32xf32>
    %395 = arith.addf %393, %394 : vector<16x32xf32>
    %396 = tpu.concatenate %238, %262, %286, %310 in 1 : vector<16x8xf32>, vector<16x8xf32>, vector<16x8xf32>, vector<16x8xf32> -> vector<16x32xf32>
    %c0_159 = arith.constant 0 : index
    %c0_160 = arith.constant 0 : index
    %397 = vector.load %arg18[%c0_159, %c0_160] : memref<16x32xf32, #tpu.memory_space<vmem>>, vector<16x32xf32>
    tpu.vector_store %arg18[%c0_159, %c0_160], %396 {strides = array<i32>} : memref<16x32xf32, #tpu.memory_space<vmem>>, vector<16x32xf32>,
    %c0_161 = arith.constant 0 : index
    %c0_162 = arith.constant 0 : index
    %398 = vector.load %arg17[%c0_161, %c0_162] : memref<16x32xf32, #tpu.memory_space<vmem>>, vector<16x32xf32>
    tpu.vector_store %arg17[%c0_161, %c0_162], %395 {strides = array<i32>} : memref<16x32xf32, #tpu.memory_space<vmem>>, vector<16x32xf32>,
    return
  }
  func.func @transform_0(%arg0: i32) -> (i32, i32) {
    %c0_i32 = arith.constant 0 : i32
    %c0_i32_0 = arith.constant 0 : i32
    %c0_i32_1 = arith.constant 0 : i32
    return %c0_i32, %c0_i32_0 : i32, i32
  }
  func.func @transform_1(%arg0: i32) -> (i32, i32, i32) {
    %c0_i32 = arith.constant 0 : i32
    %c0_i32_0 = arith.constant 0 : i32
    %c0_i32_1 = arith.constant 0 : i32
    %c0_i32_2 = arith.constant 0 : i32
    return %c0_i32, %c0_i32_0, %c0_i32_1 : i32, i32, i32
  }
  func.func @transform_2(%arg0: i32) -> (i32, i32) {
    %c0_i32 = arith.constant 0 : i32
    %c0_i32_0 = arith.constant 0 : i32
    %c0_i32_1 = arith.constant 0 : i32
    return %c0_i32, %c0_i32_0 : i32, i32
  }
  func.func @transform_3(%arg0: i32) -> (i32, i32) {
    %c0_i32 = arith.constant 0 : i32
    %c0_i32_0 = arith.constant 0 : i32
    %c0_i32_1 = arith.constant 0 : i32
    return %c0_i32, %c0_i32_0 : i32, i32
  }
  func.func @transform_4(%arg0: i32) -> (i32, i32, i32) {
    %c0_i32 = arith.constant 0 : i32
    %c0_i32_0 = arith.constant 0 : i32
    %c0_i32_1 = arith.constant 0 : i32
    %c0_i32_2 = arith.constant 0 : i32
    return %c0_i32, %c0_i32_0, %c0_i32_1 : i32, i32, i32
  }
  func.func @transform_5(%arg0: i32) -> (i32, i32, i32) {
    %c0_i32 = arith.constant 0 : i32
    %c0_i32_0 = arith.constant 0 : i32
    %c0_i32_1 = arith.constant 0 : i32
    %c0_i32_2 = arith.constant 0 : i32
    return %c0_i32, %c0_i32_0, %c0_i32_1 : i32, i32, i32
  }
  func.func @transform_6(%arg0: i32) -> (i32, i32, i32) {
    %c0_i32 = arith.constant 0 : i32
    %c0_i32_0 = arith.constant 0 : i32
    %c0_i32_1 = arith.constant 0 : i32
    %c0_i32_2 = arith.constant 0 : i32
    return %c0_i32, %c0_i32_0, %c0_i32_1 : i32, i32, i32
  }
  func.func @transform_7(%arg0: i32) -> (i32, i32, i32) {
    %c0_i32 = arith.constant 0 : i32
    %c0_i32_0 = arith.constant 0 : i32
    %c0_i32_1 = arith.constant 0 : i32
    %c0_i32_2 = arith.constant 0 : i32
    return %c0_i32, %c0_i32_0, %c0_i32_1 : i32, i32, i32
  }
  func.func @transform_8(%arg0: i32) -> (i32, i32, i32) {
    %c0_i32 = arith.constant 0 : i32
    %c0_i32_0 = arith.constant 0 : i32
    %c0_i32_1 = arith.constant 0 : i32
    %c0_i32_2 = arith.constant 0 : i32
    return %c0_i32, %c0_i32_0, %c0_i32_1 : i32, i32, i32
  }
  func.func @transform_9(%arg0: i32) -> (i32, i32, i32) {
    %c0_i32 = arith.constant 0 : i32
    %c0_i32_0 = arith.constant 0 : i32
    %c0_i32_1 = arith.constant 0 : i32
    %c0_i32_2 = arith.constant 0 : i32
    return %c0_i32, %c0_i32_0, %c0_i32_1 : i32, i32, i32
  }
  func.func @transform_10(%arg0: i32) -> (i32, i32, i32) {
    %c0_i32 = arith.constant 0 : i32
    %c0_i32_0 = arith.constant 0 : i32
    %c0_i32_1 = arith.constant 0 : i32
    %c0_i32_2 = arith.constant 0 : i32
    return %c0_i32, %c0_i32_0, %c0_i32_1 : i32, i32, i32
  }
  func.func @transform_11(%arg0: i32) -> (i32, i32, i32) {
    %c0_i32 = arith.constant 0 : i32
    %c0_i32_0 = arith.constant 0 : i32
    %c0_i32_1 = arith.constant 0 : i32
    %c0_i32_2 = arith.constant 0 : i32
    return %c0_i32, %c0_i32_0, %c0_i32_1 : i32, i32, i32
  }
  func.func @transform_12(%arg0: i32) -> (i32, i32, i32) {
    %c0_i32 = arith.constant 0 : i32
    %c0_i32_0 = arith.constant 0 : i32
    %c0_i32_1 = arith.constant 0 : i32
    %c0_i32_2 = arith.constant 0 : i32
    return %c0_i32, %c0_i32_0, %c0_i32_1 : i32, i32, i32
  }
  func.func @transform_13(%arg0: i32) -> (i32, i32, i32) {
    %c0_i32 = arith.constant 0 : i32
    %c0_i32_0 = arith.constant 0 : i32
    %c0_i32_1 = arith.constant 0 : i32
    %c0_i32_2 = arith.constant 0 : i32
    return %c0_i32, %c0_i32_0, %c0_i32_1 : i32, i32, i32
  }
  func.func @transform_14(%arg0: i32) -> (i32, i32, i32) {
    %c0_i32 = arith.constant 0 : i32
    %c0_i32_0 = arith.constant 0 : i32
    %c0_i32_1 = arith.constant 0 : i32
    %c0_i32_2 = arith.constant 0 : i32
    return %c0_i32, %c0_i32_0, %c0_i32_1 : i32, i32, i32
  }
  func.func @transform_15(%arg0: i32) -> (i32, i32, i32) {
    %c0_i32 = arith.constant 0 : i32
    %c0_i32_0 = arith.constant 0 : i32
    %c0_i32_1 = arith.constant 0 : i32
    %c0_i32_2 = arith.constant 0 : i32
    return %c0_i32, %c0_i32_0, %c0_i32_1 : i32, i32, i32
  }
  func.func @transform_16(%arg0: i32) -> (i32, i32) {
    %c0_i32 = arith.constant 0 : i32
    %c0_i32_0 = arith.constant 0 : i32
    %c0_i32_1 = arith.constant 0 : i32
    return %c0_i32, %c0_i32_0 : i32, i32
  }
  func.func @transform_17(%arg0: i32) -> (i32, i32) {
    %c0_i32 = arith.constant 0 : i32
    %c0_i32_0 = arith.constant 0 : i32
    %c0_i32_1 = arith.constant 0 : i32
    return %c0_i32, %c0_i32_0 : i32, i32
  }
}

</mosaic_0001>

<llo_original>
// kernel: bert_forward.1
$region0: #{bert_forward.1}
  #allocation0 [shape = 'u32[]', space=smem, size = 0x4, offset = 0x4, fixed_abs, tag = 'smem constant byte address 0x4 - core index']
  #allocation1 [shape = 'u32[144,128]{1,0:T(1,128)}', space=vmem, size = 0x12000, scoped, tag = 'internal scratch']
  %s0 = inlined_call_operand.vmem [shape: f32[16,32], index: 0, kind: input, shape index: {}]
  %s1 = inlined_call_operand.vmem [shape: f32[2,1,8], index: 1, kind: input, shape index: {}]
  %s2 = inlined_call_operand.vmem [shape: f32[1,32], index: 2, kind: input, shape index: {}]
  %s3 = inlined_call_operand.vmem [shape: f32[1,32], index: 3, kind: input, shape index: {}]
  %s4 = inlined_call_operand.vmem [shape: f32[2,32,96], index: 4, kind: input, shape index: {}]
  %s5 = inlined_call_operand.vmem [shape: f32[2,1,96], index: 5, kind: input, shape index: {}]
  %s6 = inlined_call_operand.vmem [shape: f32[2,32,32], index: 6, kind: input, shape index: {}]
  %s7 = inlined_call_operand.vmem [shape: f32[2,1,32], index: 7, kind: input, shape index: {}]
  %s8 = inlined_call_operand.vmem [shape: f32[2,1,32], index: 8, kind: input, shape index: {}]
  %s9 = inlined_call_operand.vmem [shape: f32[2,1,32], index: 9, kind: input, shape index: {}]
  %s10 = inlined_call_operand.vmem [shape: f32[2,32,64], index: 10, kind: input, shape index: {}]
  %s11 = inlined_call_operand.vmem [shape: f32[2,1,64], index: 11, kind: input, shape index: {}]
  %s12 = inlined_call_operand.vmem [shape: f32[2,64,32], index: 12, kind: input, shape index: {}]
  %s13 = inlined_call_operand.vmem [shape: f32[2,1,32], index: 13, kind: input, shape index: {}]
  %s14 = inlined_call_operand.vmem [shape: f32[2,1,32], index: 14, kind: input, shape index: {}]
  %s15 = inlined_call_operand.vmem [shape: f32[2,1,32], index: 15, kind: input, shape index: {}]
  %s16 = inlined_call_operand.hbm [shape: f32[16,32], index: 16, kind: output, shape index: {0}]
  %s17 = inlined_call_operand.vmem [shape: f32[16,32], index: 17, kind: output, shape index: {1}]
  %18 = xla_tuple %s16, %s17
  %s19 = sld [smem:[#allocation0]]
  $region82: #{bert_forward.1} parent=0
    _
  %s21 = ssub.s32 1, %s19
  %s22 = scalar_select 0, %s21, %s19
  $region1: #{bert_forward.1} parent=0
    #allocation2 [shape = 'u8[8192]{0}', space=vmem, size = 0x2000, scoped, tag = 'output window, operand 0, single buffered']
    #allocation3 [shape = 's32[1]{0}', space=sflag, size = 0x4, scoped, tag = 'scoped memory for bert_forward.1']
    %23 = vsyncpa [#allocation3], 0
    // Predicated region
    $region2: #{bert_forward.1} parent=1 // pred_check
      _
    $region3: #{bert_forward.1} parent=1 // pred_check_branch
      %25 = sbr.rel (0) target = $region5
    $region4: #{bert_forward.1} parent=1 // pred_region
      _
    $region5: #{bert_forward.1} parent=1 // pred_fallthru
      _
    // Predicated region
    $region6: #{bert_forward.1} parent=1 // pred_check
      _
    $region7: #{bert_forward.1} parent=1 // pred_check_branch
      %27 = sbr.rel (0) target = $region9
    $region8: #{bert_forward.1} parent=1 // pred_region
      _
    $region9: #{bert_forward.1} parent=1 // pred_fallthru
      _
    // Predicated region
    $region10: #{bert_forward.1} parent=1 // pred_check
      _
    $region11: #{bert_forward.1} parent=1 // pred_check_branch
      %29 = sbr.rel (0) target = $region13
    $region12: #{bert_forward.1} parent=1 // pred_region
      _
    $region13: #{bert_forward.1} parent=1 // pred_fallthru
      _
    // Predicated region
    $region14: #{bert_forward.1} parent=1 // pred_check
      _
    $region15: #{bert_forward.1} parent=1 // pred_check_branch
      %31 = sbr.rel (0) target = $region17
    $region16: #{bert_forward.1} parent=1 // pred_region
      _
    $region17: #{bert_forward.1} parent=1 // pred_fallthru
      _
    // Predicated region
    $region18: #{bert_forward.1} parent=1 // pred_check
      _
    $region19: #{bert_forward.1} parent=1 // pred_check_branch
      %33 = sbr.rel (0) target = $region21
    $region20: #{bert_forward.1} parent=1 // pred_region
      _
    $region21: #{bert_forward.1} parent=1 // pred_fallthru
      _
    // Predicated region
    $region22: #{bert_forward.1} parent=1 // pred_check
      _
    $region23: #{bert_forward.1} parent=1 // pred_check_branch
      %35 = sbr.rel (0) target = $region25
    $region24: #{bert_forward.1} parent=1 // pred_region
      _
    $region25: #{bert_forward.1} parent=1 // pred_fallthru
      _
    // Predicated region
    $region26: #{bert_forward.1} parent=1 // pred_check
      _
    $region27: #{bert_forward.1} parent=1 // pred_check_branch
      %37 = sbr.rel (0) target = $region29
    $region28: #{bert_forward.1} parent=1 // pred_region
      _
    $region29: #{bert_forward.1} parent=1 // pred_fallthru
      _
    // Predicated region
    $region30: #{bert_forward.1} parent=1 // pred_check
      _
    $region31: #{bert_forward.1} parent=1 // pred_check_branch
      %39 = sbr.rel (0) target = $region33
    $region32: #{bert_forward.1} parent=1 // pred_region
      _
    $region33: #{bert_forward.1} parent=1 // pred_fallthru
      _
    // Predicated region
    $region34: #{bert_forward.1} parent=1 // pred_check
      _
    $region35: #{bert_forward.1} parent=1 // pred_check_branch
      %41 = sbr.rel (0) target = $region37
    $region36: #{bert_forward.1} parent=1 // pred_region
      _
    $region37: #{bert_forward.1} parent=1 // pred_fallthru
      _
    // Predicated region
    $region38: #{bert_forward.1} parent=1 // pred_check
      _
    $region39: #{bert_forward.1} parent=1 // pred_check_branch
      %43 = sbr.rel (0) target = $region41
    $region40: #{bert_forward.1} parent=1 // pred_region
      _
    $region41: #{bert_forward.1} parent=1 // pred_fallthru
      _
    // Predicated region
    $region42: #{bert_forward.1} parent=1 // pred_check
      _
    $region43: #{bert_forward.1} parent=1 // pred_check_branch
      %45 = sbr.rel (0) target = $region45
    $region44: #{bert_forward.1} parent=1 // pred_region
      _
    $region45: #{bert_forward.1} parent=1 // pred_fallthru
      _
    // Predicated region
    $region46: #{bert_forward.1} parent=1 // pred_check
      _
    $region47: #{bert_forward.1} parent=1 // pred_check_branch
      %47 = sbr.rel (0) target = $region49
    $region48: #{bert_forward.1} parent=1 // pred_region
      _
    $region49: #{bert_forward.1} parent=1 // pred_fallthru
      _
    // Predicated region
    $region50: #{bert_forward.1} parent=1 // pred_check
      _
    $region51: #{bert_forward.1} parent=1 // pred_check_branch
      %49 = sbr.rel (0) target = $region53
    $region52: #{bert_forward.1} parent=1 // pred_region
      _
    $region53: #{bert_forward.1} parent=1 // pred_fallthru
      _
    // Predicated region
    $region54: #{bert_forward.1} parent=1 // pred_check
      _
    $region55: #{bert_forward.1} parent=1 // pred_check_branch
      %51 = sbr.rel (0) target = $region57
    $region56: #{bert_forward.1} parent=1 // pred_region
      _
    $region57: #{bert_forward.1} parent=1 // pred_fallthru
      _
    // Predicated region
    $region58: #{bert_forward.1} parent=1 // pred_check
      _
    $region59: #{bert_forward.1} parent=1 // pred_check_branch
      %53 = sbr.rel (0) target = $region61
    $region60: #{bert_forward.1} parent=1 // pred_region
      _
    $region61: #{bert_forward.1} parent=1 // pred_fallthru
      _
    // Predicated region
    $region62: #{bert_forward.1} parent=1 // pred_check
      _
    $region63: #{bert_forward.1} parent=1 // pred_check_branch
      %55 = sbr.rel (0) target = $region65
    $region64: #{bert_forward.1} parent=1 // pred_region
      _
    $region65: #{bert_forward.1} parent=1 // pred_fallthru
      _
    %v56 = vld [vmem:[%s1] sm:$0x1]
    %v57 = vld [vmem:[%s1 + $0x1] sm:$0x1]
    %v58 = vld [vmem:[%s0] sm:$0xff]
    %v59 = vld [vmem:[%s0 + $0x8] sm:$0xff]
    %v60 = vld [vmem:[%s2] sm:$0x1]
    %v61 = vld [vmem:[%s3] sm:$0x1]
    %vm62 = vcmask 261120
    %v63 = vsel %vm62, %v58, 0.0
    %64 = vadd.xlane.f32.xlu0 %v63
    %v65 = vpop.xlane.xlu0 %64
    %v66 = vsel %vm62, %v59, 0.0
    %67 = vadd.xlane.f32.xlu0 %v66
    %v68 = vpop.xlane.xlu0 %67
    %v69 = vrcp.pop 32.0
    %v70 = vmul.f32 %v65, %v69
    %v71 = vmul.f32 %v68, %v69
    %v72 = vsub.f32 %v58, %v70
    %v73 = vsub.f32 %v59, %v71
    %v74 = vmul.f32 %v72, %v72
    %v75 = vmul.f32 %v73, %v73
    %v76 = vsel %vm62, %v74, 0.0
    %77 = vadd.xlane.f32.xlu0 %v76
    %v78 = vpop.xlane.xlu0 %77
    %v79 = vsel %vm62, %v75, 0.0
    %80 = vadd.xlane.f32.xlu0 %v79
    %v81 = vpop.xlane.xlu0 %80
    %v82 = vmul.f32 %v78, %v69
    %v83 = vmul.f32 %v81, %v69
    %v84 = vadd.f32 %v82, 1e-12
    %v85 = vadd.f32 %v83, 1e-12
    %v86 = vrsqrt.pop %v84
    %v87 = vrsqrt.pop %v85
    %v88 = vmul.f32 %v72, %v86
    %v89 = vmul.f32 %v73, %v87
    %v91 = vlaneseq
    %v92 = vshrl.u32 %v91, 7
    %v93 = vsub.s32 0, %v92
    %v94 = vrot.slane %v60, %v93
    %v96 = vmul.f32 %v88, %v94
    %v97 = vmul.f32 %v89, %v94
    %v99 = vlaneseq
    %v100 = vshrl.u32 %v99, 7
    %v101 = vsub.s32 0, %v100
    %v102 = vrot.slane %v61, %v101
    %v104 = vadd.f32 %v96, %v102
    %v105 = vadd.f32 %v97, %v102
    %v106 = vld [vmem:[%s4] sm:$0xff]
    %v107 = vld [vmem:[%s4 + $0x8] sm:$0xff]
    %v108 = vld [vmem:[%s4 + $0x10] sm:$0xff]
    %v109 = vld [vmem:[%s4 + $0x18] sm:$0xff]
    %v110 = vld [vmem:[%s5] sm:$0x1]
    %v112 = vlaneseq
    %v113 = vshrl.u32 %v112, 7
    %v114 = vsub.s32 0, %v113
    %v115 = vrot.slane %v110, %v114
    %v118 = vsel %vm62, %v104, 0
    %v121 = vsel %vm62, %v105, 0
    %123 = vmatprep.subr.mxu0 0.0
    %124 = vmatpush1.msra.mxu0 %v106
    %125 = vmatprep.subr.mxu0 0.0
    %126 = vmatpush1.msra.mxu0 %v107
    %127 = vmatprep.subr.mxu0 0.0
    %128 = vmatpush1.msra.mxu0 %v108
    %129 = vmatprep.subr.mxu0 0.0
    %130 = vmatpush1.msra.mxu0 %v109
    %131 = vmatprep.subr.mxu0 0.0
    %132 = vmatpush1.msra.mxu0 0.0
    %133 = vmatprep.subr.mxu0 0.0
    %134 = vmatpush1.msra.mxu0 0.0
    %135 = vmatprep.subr.mxu0 0.0
    %136 = vmatpush1.msra.mxu0 0.0
    %137 = vmatprep.subr.mxu0 0.0
    %138 = vmatpush1.msra.mxu0 0.0
    %139 = vmatprep.subr.mxu0 0.0
    %140 = vmatpush1.msra.mxu0 0.0
    %141 = vmatprep.subr.mxu0 0.0
    %142 = vmatpush1.msra.mxu0 0.0
    %143 = vmatprep.subr.mxu0 0.0
    %144 = vmatpush1.msra.mxu0 0.0
    %145 = vmatprep.subr.mxu0 0.0
    %146 = vmatpush1.msra.mxu0 0.0
    %147 = vmatprep.subr.mxu0 0.0
    %148 = vmatpush1.msra.mxu0 0.0
    %149 = vmatprep.subr.mxu0 0.0
    %150 = vmatpush1.msra.mxu0 0.0
    %151 = vmatprep.subr.mxu0 0.0
    %152 = vmatpush1.msra.mxu0 0.0
    %153 = vmatprep.subr.mxu0 0.0
    %154 = vmatpush1.msra.mxu0 0.0
    %155 = vmatprep.subr.mxu0 0.0
    %156 = vmatpush1.msra.mxu0 0.0
    %157 = vmatprep.subr.mxu0 0.0
    %158 = vmatpush1.msra.mxu0 0.0
    %159 = vmatprep.subr.mxu0 0.0
    %160 = vmatpush1.msra.mxu0 0.0
    %161 = vmatprep.subr.mxu0 0.0
    %162 = vmatpush1.msra.mxu0 0.0
    %163 = vmatprep.subr.mxu0 0.0
    %164 = vmatpush1.msra.mxu0 0.0
    %165 = vmatprep.subr.mxu0 0.0
    %166 = vmatpush1.msra.mxu0 0.0
    %167 = vmatprep.subr.mxu0 0.0
    %168 = vmatpush1.msra.mxu0 0.0
    %169 = vmatprep.subr.mxu0 0.0
    %170 = vmatpush1.msra.mxu0 0.0
    %171 = vmatprep.subr.mxu0 0.0
    %172 = vmatpush1.msra.mxu0 0.0
    %173 = vmatprep.subr.mxu0 0.0
    %174 = vmatpush1.msra.mxu0 0.0
    %175 = vmatprep.subr.mxu0 0.0
    %176 = vmatpush1.msra.mxu0 0.0
    %177 = vmatprep.subr.mxu0 0.0
    %178 = vmatpush1.msra.mxu0 0.0
    %179 = vmatprep.subr.mxu0 0.0
    %180 = vmatpush1.msra.mxu0 0.0
    %181 = vmatprep.subr.mxu0 0.0
    %182 = vmatpush1.msra.mxu0 0.0
    %183 = vmatprep.subr.mxu0 0.0
    %184 = vmatpush1.msra.mxu0 0.0
    %185 = vmatprep.subr.mxu0 0.0
    %186 = vmatpush1.msra.mxu0 0.0
    %187 = vmatprep.mubr.f32.mxu0 0.0
    %188 = vmatmul.mubr.f32.gmra.mrb[0].mxu0 %v118
    %v189 = vpop.f32.mrb[0].mxu0
    %v190 = vadd.f32 %v115, %v189
    %v191 = vpop.f32.mrb[0].mxu0
    %192 = vmatprep.mubr.f32.mxu0 0.0
    %193 = vmatmul.mubr.f32.gmra.mrb[0].mxu0 %v121
    %v194 = vpop.f32.mrb[0].mxu0
    %v195 = vadd.f32 %v115, %v194
    %v196 = vpop.f32.mrb[0].mxu0
    %197 = vdwg.mxu0
    %199 = vrot.lane.b32.xlu0 %v190, 96
    %v200 = vpop.permute.xlu0 %199
    %vm201 = vcmask 64512
    %v202 = vsel %vm201, %v190, 0
    %v204 = vsel %vm201, %v200, 0
    %206 = vmatprep.subr.mxu0 0.0
    %207 = vmatpush1.xpose.msra.mxu0 %v204
    %208 = vmatprep.subr.mxu0 0.0
    %209 = vmatpush1.xpose.msra.mxu0 0.0
    %210 = vmatprep.subr.mxu0 0.0
    %211 = vmatpush1.xpose.msra.mxu0 0.0
    %212 = vmatprep.subr.mxu0 0.0
    %213 = vmatpush1.xpose.msra.mxu0 0.0
    %214 = vmatprep.subr.mxu0 0.0
    %215 = vmatpush1.xpose.msra.mxu0 0.0
    %216 = vmatprep.subr.mxu0 0.0
    %217 = vmatpush1.xpose.msra.mxu0 0.0
    %218 = vmatprep.subr.mxu0 0.0
    %219 = vmatpush1.xpose.msra.mxu0 0.0
    %220 = vmatprep.subr.mxu0 0.0
    %221 = vmatpush1.xpose.msra.mxu0 0.0
    %222 = vmatprep.subr.mxu0 0.0
    %223 = vmatpush1.xpose.msra.mxu0 0.0
    %224 = vmatprep.subr.mxu0 0.0
    %225 = vmatpush1.xpose.msra.mxu0 0.0
    %226 = vmatprep.subr.mxu0 0.0
    %227 = vmatpush1.xpose.msra.mxu0 0.0
    %228 = vmatprep.subr.mxu0 0.0
    %229 = vmatpush1.xpose.msra.mxu0 0.0
    %230 = vmatprep.subr.mxu0 0.0
    %231 = vmatpush1.xpose.msra.mxu0 0.0
    %232 = vmatprep.subr.mxu0 0.0
    %233 = vmatpush1.xpose.msra.mxu0 0.0
    %234 = vmatprep.subr.mxu0 0.0
    %235 = vmatpush1.xpose.msra.mxu0 0.0
    %236 = vmatprep.subr.mxu0 0.0
    %237 = vmatpush1.xpose.msra.mxu0 0.0
    %238 = vmatprep.subr.mxu0 0.0
    %239 = vmatpush1.xpose.msra.mxu0 0.0
    %240 = vmatprep.subr.mxu0 0.0
    %241 = vmatpush1.xpose.msra.mxu0 0.0
    %242 = vmatprep.subr.mxu0 0.0
    %243 = vmatpush1.xpose.msra.mxu0 0.0
    %244 = vmatprep.subr.mxu0 0.0
    %245 = vmatpush1.xpose.msra.mxu0 0.0
    %246 = vmatprep.subr.mxu0 0.0
    %247 = vmatpush1.xpose.msra.mxu0 0.0
    %248 = vmatprep.subr.mxu0 0.0
    %249 = vmatpush1.xpose.msra.mxu0 0.0
    %250 = vmatprep.subr.mxu0 0.0
    %251 = vmatpush1.xpose.msra.mxu0 0.0
    %252 = vmatprep.subr.mxu0 0.0
    %253 = vmatpush1.xpose.msra.mxu0 0.0
    %254 = vmatprep.subr.mxu0 0.0
    %255 = vmatpush1.xpose.msra.mxu0 0.0
    %256 = vmatprep.subr.mxu0 0.0
    %257 = vmatpush1.xpose.msra.mxu0 0.0
    %258 = vmatprep.subr.mxu0 0.0
    %259 = vmatpush1.xpose.msra.mxu0 0.0
    %260 = vmatprep.subr.mxu0 0.0
    %261 = vmatpush1.xpose.msra.mxu0 0.0
    %262 = vmatprep.subr.mxu0 0.0
    %263 = vmatpush1.xpose.msra.mxu0 0.0
    %264 = vmatprep.subr.mxu0 0.0
    %265 = vmatpush1.xpose.msra.mxu0 0.0
    %266 = vmatprep.subr.mxu0 0.0
    %267 = vmatpush1.xpose.msra.mxu0 0.0
    %268 = vmatprep.subr.mxu0 0.0
    %269 = vmatpush1.xpose.msra.mxu0 0.0
    %270 = vmatprep.mubr.f32.mxu0 0.0
    %271 = vmatmul.mubr.f32.gmra.mrb[0].mxu0 %v202
    %v272 = vpop.f32.mrb[0].mxu0
    %v273 = vadd.f32 0.0, %v272
    %v274 = vpop.f32.mrb[0].mxu0
    %275 = vdwg.mxu0
    %277 = vrot.lane.b32.xlu0 %v195, 96
    %v278 = vpop.permute.xlu0 %277
    %v279 = vsel %vm201, %v195, 0
    %v281 = vsel %vm201, %v278, 0
    %283 = vmatprep.subr.mxu0 0.0
    %284 = vmatpush1.xpose.msra.mxu0 %v281
    %285 = vmatprep.subr.mxu0 0.0
    %286 = vmatpush1.xpose.msra.mxu0 0.0
    %287 = vmatprep.subr.mxu0 0.0
    %288 = vmatpush1.xpose.msra.mxu0 0.0
    %289 = vmatprep.subr.mxu0 0.0
    %290 = vmatpush1.xpose.msra.mxu0 0.0
    %291 = vmatprep.subr.mxu0 0.0
    %292 = vmatpush1.xpose.msra.mxu0 0.0
    %293 = vmatprep.subr.mxu0 0.0
    %294 = vmatpush1.xpose.msra.mxu0 0.0
    %295 = vmatprep.subr.mxu0 0.0
    %296 = vmatpush1.xpose.msra.mxu0 0.0
    %297 = vmatprep.subr.mxu0 0.0
    %298 = vmatpush1.xpose.msra.mxu0 0.0
    %299 = vmatprep.subr.mxu0 0.0
    %300 = vmatpush1.xpose.msra.mxu0 0.0
    %301 = vmatprep.subr.mxu0 0.0
    %302 = vmatpush1.xpose.msra.mxu0 0.0
    %303 = vmatprep.subr.mxu0 0.0
    %304 = vmatpush1.xpose.msra.mxu0 0.0
    %305 = vmatprep.subr.mxu0 0.0
    %306 = vmatpush1.xpose.msra.mxu0 0.0
    %307 = vmatprep.subr.mxu0 0.0
    %308 = vmatpush1.xpose.msra.mxu0 0.0
    %309 = vmatprep.subr.mxu0 0.0
    %310 = vmatpush1.xpose.msra.mxu0 0.0
    %311 = vmatprep.subr.mxu0 0.0
    %312 = vmatpush1.xpose.msra.mxu0 0.0
    %313 = vmatprep.subr.mxu0 0.0
    %314 = vmatpush1.xpose.msra.mxu0 0.0
    %315 = vmatprep.subr.mxu0 0.0
    %316 = vmatpush1.xpose.msra.mxu0 0.0
    %317 = vmatprep.subr.mxu0 0.0
    %318 = vmatpush1.xpose.msra.mxu0 0.0
    %319 = vmatprep.subr.mxu0 0.0
    %320 = vmatpush1.xpose.msra.mxu0 0.0
    %321 = vmatprep.subr.mxu0 0.0
    %322 = vmatpush1.xpose.msra.mxu0 0.0
    %323 = vmatprep.subr.mxu0 0.0
    %324 = vmatpush1.xpose.msra.mxu0 0.0
    %325 = vmatprep.subr.mxu0 0.0
    %326 = vmatpush1.xpose.msra.mxu0 0.0
    %327 = vmatprep.subr.mxu0 0.0
    %328 = vmatpush1.xpose.msra.mxu0 0.0
    %329 = vmatprep.subr.mxu0 0.0
    %330 = vmatpush1.xpose.msra.mxu0 0.0
    %331 = vmatprep.subr.mxu0 0.0
    %332 = vmatpush1.xpose.msra.mxu0 0.0
    %333 = vmatprep.subr.mxu0 0.0
    %334 = vmatpush1.xpose.msra.mxu0 0.0
    %335 = vmatprep.subr.mxu0 0.0
    %336 = vmatpush1.xpose.msra.mxu0 0.0
    %337 = vmatprep.subr.mxu0 0.0
    %338 = vmatpush1.xpose.msra.mxu0 0.0
    %339 = vmatprep.subr.mxu0 0.0
    %340 = vmatpush1.xpose.msra.mxu0 0.0
    %341 = vmatprep.subr.mxu0 0.0
    %342 = vmatpush1.xpose.msra.mxu0 0.0
    %343 = vmatprep.subr.mxu0 0.0
    %344 = vmatpush1.xpose.msra.mxu0 0.0
    %345 = vmatprep.subr.mxu0 0.0
    %346 = vmatpush1.xpose.msra.mxu0 0.0
    %347 = vmatprep.mubr.f32.mxu0 0.0
    %348 = vmatmul.mubr.f32.gmra.mrb[0].mxu0 %v279
    %v349 = vpop.f32.mrb[0].mxu0
    %v350 = vadd.f32 0.0, %v349
    %v351 = vpop.f32.mrb[0].mxu0
    %352 = vdwg.mxu0
    %v353 = vmul.f32 %v273, 0.35355338
    %v354 = vmul.f32 %v350, 0.35355338
    %v357 = vlaneseq
    %v358 = vshrl.u32 %v357, 7
    %v359 = vsub.s32 0, %v358
    %v360 = vrot.slane %v56, %v359
    %v361 = vlaneseq
    %v362 = vshrl.u32 %v361, 7
    %v363 = vsub.s32 0, %v362
    %v364 = vrot.slane %v57, %v363
    %v367 = vadd.f32 %v353, %v360
    %v368 = vadd.f32 %v354, %v364
    %v369 = vsel %vm201, %v367, -inf
    %370 = vmax.xlane.f32.xlu0 %v369
    %v371 = vpop.xlane.xlu0 %370
    %v372 = vsel %vm201, %v368, -inf
    %373 = vmax.xlane.f32.xlu0 %v372
    %v374 = vpop.xlane.xlu0 %373
    %v375 = vsub.f32 %v367, %v371
    %v376 = vsub.f32 %v368, %v374
    %v377 = vmul.f32 %v375, 1.442695
    %v378 = vpow.pop %v377
    %v379 = vmul.f32 %v376, 1.442695
    %v380 = vpow.pop %v379
    %v381 = vsel %vm201, %v378, 0.0
    %382 = vadd.xlane.f32.xlu0 %v381
    %v383 = vpop.xlane.xlu0 %382
    %v384 = vsel %vm201, %v380, 0.0
    %385 = vadd.xlane.f32.xlu0 %v384
    %v386 = vpop.xlane.xlu0 %385
    %v387 = vrcp.pop %v383
    %v388 = vrcp.pop %v386
    %v389 = vmul.f32 %v378, %v387
    %v390 = vmul.f32 %v380, %v388
    %391 = vrot.lane.b32.xlu0 %v190, 64
    %v392 = vpop.permute.xlu0 %391
    %v395 = vsel %vm201, %v389, 0
    %397 = vmatprep.subr.mxu0 0.0
    %398 = vmatpush1.msra.mxu0 %v392
    %399 = vmatprep.subr.mxu0 0.0
    %400 = vmatpush1.msra.mxu0 0.0
    %401 = vmatprep.subr.mxu0 0.0
    %402 = vmatpush1.msra.mxu0 0.0
    %403 = vmatprep.subr.mxu0 0.0
    %404 = vmatpush1.msra.mxu0 0.0
    %405 = vmatprep.subr.mxu0 0.0
    %406 = vmatpush1.msra.mxu0 0.0
    %407 = vmatprep.subr.mxu0 0.0
    %408 = vmatpush1.msra.mxu0 0.0
    %409 = vmatprep.subr.mxu0 0.0
    %410 = vmatpush1.msra.mxu0 0.0
    %411 = vmatprep.subr.mxu0 0.0
    %412 = vmatpush1.msra.mxu0 0.0
    %413 = vmatprep.subr.mxu0 0.0
    %414 = vmatpush1.msra.mxu0 0.0
    %415 = vmatprep.subr.mxu0 0.0
    %416 = vmatpush1.msra.mxu0 0.0
    %417 = vmatprep.subr.mxu0 0.0
    %418 = vmatpush1.msra.mxu0 0.0
    %419 = vmatprep.subr.mxu0 0.0
    %420 = vmatpush1.msra.mxu0 0.0
    %421 = vmatprep.subr.mxu0 0.0
    %422 = vmatpush1.msra.mxu0 0.0
    %423 = vmatprep.subr.mxu0 0.0
    %424 = vmatpush1.msra.mxu0 0.0
    %425 = vmatprep.subr.mxu0 0.0
    %426 = vmatpush1.msra.mxu0 0.0
    %427 = vmatprep.subr.mxu0 0.0
    %428 = vmatpush1.msra.mxu0 0.0
    %429 = vmatprep.subr.mxu0 0.0
    %430 = vmatpush1.msra.mxu0 0.0
    %431 = vmatprep.subr.mxu0 0.0
    %432 = vmatpush1.msra.mxu0 0.0
    %433 = vmatprep.subr.mxu0 0.0
    %434 = vmatpush1.msra.mxu0 0.0
    %435 = vmatprep.subr.mxu0 0.0
    %436 = vmatpush1.msra.mxu0 0.0
    %437 = vmatprep.subr.mxu0 0.0
    %438 = vmatpush1.msra.mxu0 0.0
    %439 = vmatprep.subr.mxu0 0.0
    %440 = vmatpush1.msra.mxu0 0.0
    %441 = vmatprep.subr.mxu0 0.0
    %442 = vmatpush1.msra.mxu0 0.0
    %443 = vmatprep.subr.mxu0 0.0
    %444 = vmatpush1.msra.mxu0 0.0
    %445 = vmatprep.subr.mxu0 0.0
    %446 = vmatpush1.msra.mxu0 0.0
    %447 = vmatprep.subr.mxu0 0.0
    %448 = vmatpush1.msra.mxu0 0.0
    %449 = vmatprep.subr.mxu0 0.0
    %450 = vmatpush1.msra.mxu0 0.0
    %451 = vmatprep.subr.mxu0 0.0
    %452 = vmatpush1.msra.mxu0 0.0
    %453 = vmatprep.subr.mxu0 0.0
    %454 = vmatpush1.msra.mxu0 0.0
    %455 = vmatprep.subr.mxu0 0.0
    %456 = vmatpush1.msra.mxu0 0.0
    %457 = vmatprep.subr.mxu0 0.0
    %458 = vmatpush1.msra.mxu0 0.0
    %459 = vmatprep.subr.mxu0 0.0
    %460 = vmatpush1.msra.mxu0 0.0
    %461 = vmatprep.mubr.f32.mxu0 0.0
    %462 = vmatmul.mubr.f32.gmra.mrb[0].mxu0 %v395
    %v463 = vpop.f32.mrb[0].mxu0
    %v464 = vadd.f32 0.0, %v463
    %v465 = vpop.f32.mrb[0].mxu0
    %466 = vdwg.mxu0
    %467 = vrot.lane.b32.xlu0 %v195, 64
    %v468 = vpop.permute.xlu0 %467
    %v471 = vsel %vm201, %v390, 0
    %473 = vmatprep.subr.mxu0 0.0
    %474 = vmatpush1.msra.mxu0 %v468
    %475 = vmatprep.subr.mxu0 0.0
    %476 = vmatpush1.msra.mxu0 0.0
    %477 = vmatprep.subr.mxu0 0.0
    %478 = vmatpush1.msra.mxu0 0.0
    %479 = vmatprep.subr.mxu0 0.0
    %480 = vmatpush1.msra.mxu0 0.0
    %481 = vmatprep.subr.mxu0 0.0
    %482 = vmatpush1.msra.mxu0 0.0
    %483 = vmatprep.subr.mxu0 0.0
    %484 = vmatpush1.msra.mxu0 0.0
    %485 = vmatprep.subr.mxu0 0.0
    %486 = vmatpush1.msra.mxu0 0.0
    %487 = vmatprep.subr.mxu0 0.0
    %488 = vmatpush1.msra.mxu0 0.0
    %489 = vmatprep.subr.mxu0 0.0
    %490 = vmatpush1.msra.mxu0 0.0
    %491 = vmatprep.subr.mxu0 0.0
    %492 = vmatpush1.msra.mxu0 0.0
    %493 = vmatprep.subr.mxu0 0.0
    %494 = vmatpush1.msra.mxu0 0.0
    %495 = vmatprep.subr.mxu0 0.0
    %496 = vmatpush1.msra.mxu0 0.0
    %497 = vmatprep.subr.mxu0 0.0
    %498 = vmatpush1.msra.mxu0 0.0
    %499 = vmatprep.subr.mxu0 0.0
    %500 = vmatpush1.msra.mxu0 0.0
    %501 = vmatprep.subr.mxu0 0.0
    %502 = vmatpush1.msra.mxu0 0.0
    %503 = vmatprep.subr.mxu0 0.0
    %504 = vmatpush1.msra.mxu0 0.0
    %505 = vmatprep.subr.mxu0 0.0
    %506 = vmatpush1.msra.mxu0 0.0
    %507 = vmatprep.subr.mxu0 0.0
    %508 = vmatpush1.msra.mxu0 0.0
    %509 = vmatprep.subr.mxu0 0.0
    %510 = vmatpush1.msra.mxu0 0.0
    %511 = vmatprep.subr.mxu0 0.0
    %512 = vmatpush1.msra.mxu0 0.0
    %513 = vmatprep.subr.mxu0 0.0
    %514 = vmatpush1.msra.mxu0 0.0
    %515 = vmatprep.subr.mxu0 0.0
    %516 = vmatpush1.msra.mxu0 0.0
    %517 = vmatprep.subr.mxu0 0.0
    %518 = vmatpush1.msra.mxu0 0.0
    %519 = vmatprep.subr.mxu0 0.0
    %520 = vmatpush1.msra.mxu0 0.0
    %521 = vmatprep.subr.mxu0 0.0
    %522 = vmatpush1.msra.mxu0 0.0
    %523 = vmatprep.subr.mxu0 0.0
    %524 = vmatpush1.msra.mxu0 0.0
    %525 = vmatprep.subr.mxu0 0.0
    %526 = vmatpush1.msra.mxu0 0.0
    %527 = vmatprep.subr.mxu0 0.0
    %528 = vmatpush1.msra.mxu0 0.0
    %529 = vmatprep.subr.mxu0 0.0
    %530 = vmatpush1.msra.mxu0 0.0
    %531 = vmatprep.subr.mxu0 0.0
    %532 = vmatpush1.msra.mxu0 0.0
    %533 = vmatprep.subr.mxu0 0.0
    %534 = vmatpush1.msra.mxu0 0.0
    %535 = vmatprep.subr.mxu0 0.0
    %536 = vmatpush1.msra.mxu0 0.0
    %537 = vmatprep.mubr.f32.mxu0 0.0
    %538 = vmatmul.mubr.f32.gmra.mrb[0].mxu0 %v471
    %v539 = vpop.f32.mrb[0].mxu0
    %v540 = vadd.f32 0.0, %v539
    %v541 = vpop.f32.mrb[0].mxu0
    %542 = vdwg.mxu0
    %543 = vrot.lane.b32.xlu0 %v190, 120
    %v544 = vpop.permute.xlu0 %543
    %545 = vrot.lane.b32.xlu0 %v190, 88
    %v546 = vpop.permute.xlu0 %545
    %v547 = vsel %vm201, %v544, 0
    %v549 = vsel %vm201, %v546, 0
    %551 = vmatprep.subr.mxu0 0.0
    %552 = vmatpush1.xpose.msra.mxu0 %v549
    %553 = vmatprep.subr.mxu0 0.0
    %554 = vmatpush1.xpose.msra.mxu0 0.0
    %555 = vmatprep.subr.mxu0 0.0
    %556 = vmatpush1.xpose.msra.mxu0 0.0
    %557 = vmatprep.subr.mxu0 0.0
    %558 = vmatpush1.xpose.msra.mxu0 0.0
    %559 = vmatprep.subr.mxu0 0.0
    %560 = vmatpush1.xpose.msra.mxu0 0.0
    %561 = vmatprep.subr.mxu0 0.0
    %562 = vmatpush1.xpose.msra.mxu0 0.0
    %563 = vmatprep.subr.mxu0 0.0
    %564 = vmatpush1.xpose.msra.mxu0 0.0
    %565 = vmatprep.subr.mxu0 0.0
    %566 = vmatpush1.xpose.msra.mxu0 0.0
    %567 = vmatprep.subr.mxu0 0.0
    %568 = vmatpush1.xpose.msra.mxu0 0.0
    %569 = vmatprep.subr.mxu0 0.0
    %570 = vmatpush1.xpose.msra.mxu0 0.0
    %571 = vmatprep.subr.mxu0 0.0
    %572 = vmatpush1.xpose.msra.mxu0 0.0
    %573 = vmatprep.subr.mxu0 0.0
    %574 = vmatpush1.xpose.msra.mxu0 0.0
    %575 = vmatprep.subr.mxu0 0.0
    %576 = vmatpush1.xpose.msra.mxu0 0.0
    %577 = vmatprep.subr.mxu0 0.0
    %578 = vmatpush1.xpose.msra.mxu0 0.0
    %579 = vmatprep.subr.mxu0 0.0
    %580 = vmatpush1.xpose.msra.mxu0 0.0
    %581 = vmatprep.subr.mxu0 0.0
    %582 = vmatpush1.xpose.msra.mxu0 0.0
    %583 = vmatprep.subr.mxu0 0.0
    %584 = vmatpush1.xpose.msra.mxu0 0.0
    %585 = vmatprep.subr.mxu0 0.0
    %586 = vmatpush1.xpose.msra.mxu0 0.0
    %587 = vmatprep.subr.mxu0 0.0
    %588 = vmatpush1.xpose.msra.mxu0 0.0
    %589 = vmatprep.subr.mxu0 0.0
    %590 = vmatpush1.xpose.msra.mxu0 0.0
    %591 = vmatprep.subr.mxu0 0.0
    %592 = vmatpush1.xpose.msra.mxu0 0.0
    %593 = vmatprep.subr.mxu0 0.0
    %594 = vmatpush1.xpose.msra.mxu0 0.0
    %595 = vmatprep.subr.mxu0 0.0
    %596 = vmatpush1.xpose.msra.mxu0 0.0
    %597 = vmatprep.subr.mxu0 0.0
    %598 = vmatpush1.xpose.msra.mxu0 0.0
    %599 = vmatprep.subr.mxu0 0.0
    %600 = vmatpush1.xpose.msra.mxu0 0.0
    %601 = vmatprep.subr.mxu0 0.0
    %602 = vmatpush1.xpose.msra.mxu0 0.0
    %603 = vmatprep.subr.mxu0 0.0
    %604 = vmatpush1.xpose.msra.mxu0 0.0
    %605 = vmatprep.subr.mxu0 0.0
    %606 = vmatpush1.xpose.msra.mxu0 0.0
    %607 = vmatprep.subr.mxu0 0.0
    %608 = vmatpush1.xpose.msra.mxu0 0.0
    %609 = vmatprep.subr.mxu0 0.0
    %610 = vmatpush1.xpose.msra.mxu0 0.0
    %611 = vmatprep.subr.mxu0 0.0
    %612 = vmatpush1.xpose.msra.mxu0 0.0
    %613 = vmatprep.subr.mxu0 0.0
    %614 = vmatpush1.xpose.msra.mxu0 0.0
    %615 = vmatprep.mubr.f32.mxu0 0.0
    %616 = vmatmul.mubr.f32.gmra.mrb[0].mxu0 %v547
    %v617 = vpop.f32.mrb[0].mxu0
    %v618 = vadd.f32 0.0, %v617
    %v619 = vpop.f32.mrb[0].mxu0
    %620 = vdwg.mxu0
    %621 = vrot.lane.b32.xlu0 %v195, 120
    %v622 = vpop.permute.xlu0 %621
    %623 = vrot.lane.b32.xlu0 %v195, 88
    %v624 = vpop.permute.xlu0 %623
    %v625 = vsel %vm201, %v622, 0
    %v627 = vsel %vm201, %v624, 0
    %629 = vmatprep.subr.mxu0 0.0
    %630 = vmatpush1.xpose.msra.mxu0 %v627
    %631 = vmatprep.subr.mxu0 0.0
    %632 = vmatpush1.xpose.msra.mxu0 0.0
    %633 = vmatprep.subr.mxu0 0.0
    %634 = vmatpush1.xpose.msra.mxu0 0.0
    %635 = vmatprep.subr.mxu0 0.0
    %636 = vmatpush1.xpose.msra.mxu0 0.0
    %637 = vmatprep.subr.mxu0 0.0
    %638 = vmatpush1.xpose.msra.mxu0 0.0
    %639 = vmatprep.subr.mxu0 0.0
    %640 = vmatpush1.xpose.msra.mxu0 0.0
    %641 = vmatprep.subr.mxu0 0.0
    %642 = vmatpush1.xpose.msra.mxu0 0.0
    %643 = vmatprep.subr.mxu0 0.0
    %644 = vmatpush1.xpose.msra.mxu0 0.0
    %645 = vmatprep.subr.mxu0 0.0
    %646 = vmatpush1.xpose.msra.mxu0 0.0
    %647 = vmatprep.subr.mxu0 0.0
    %648 = vmatpush1.xpose.msra.mxu0 0.0
    %649 = vmatprep.subr.mxu0 0.0
    %650 = vmatpush1.xpose.msra.mxu0 0.0
    %651 = vmatprep.subr.mxu0 0.0
    %652 = vmatpush1.xpose.msra.mxu0 0.0
    %653 = vmatprep.subr.mxu0 0.0
    %654 = vmatpush1.xpose.msra.mxu0 0.0
    %655 = vmatprep.subr.mxu0 0.0
    %656 = vmatpush1.xpose.msra.mxu0 0.0
    %657 = vmatprep.subr.mxu0 0.0
    %658 = vmatpush1.xpose.msra.mxu0 0.0
    %659 = vmatprep.subr.mxu0 0.0
    %660 = vmatpush1.xpose.msra.mxu0 0.0
    %661 = vmatprep.subr.mxu0 0.0
    %662 = vmatpush1.xpose.msra.mxu0 0.0
    %663 = vmatprep.subr.mxu0 0.0
    %664 = vmatpush1.xpose.msra.mxu0 0.0
    %665 = vmatprep.subr.mxu0 0.0
    %666 = vmatpush1.xpose.msra.mxu0 0.0
    %667 = vmatprep.subr.mxu0 0.0
    %668 = vmatpush1.xpose.msra.mxu0 0.0
    %669 = vmatprep.subr.mxu0 0.0
    %670 = vmatpush1.xpose.msra.mxu0 0.0
    %671 = vmatprep.subr.mxu0 0.0
    %672 = vmatpush1.xpose.msra.mxu0 0.0
    %673 = vmatprep.subr.mxu0 0.0
    %674 = vmatpush1.xpose.msra.mxu0 0.0
    %675 = vmatprep.subr.mxu0 0.0
    %676 = vmatpush1.xpose.msra.mxu0 0.0
    %677 = vmatprep.subr.mxu0 0.0
    %678 = vmatpush1.xpose.msra.mxu0 0.0
    %679 = vmatprep.subr.mxu0 0.0
    %680 = vmatpush1.xpose.msra.mxu0 0.0
    %681 = vmatprep.subr.mxu0 0.0
    %682 = vmatpush1.xpose.msra.mxu0 0.0
    %683 = vmatprep.subr.mxu0 0.0
    %684 = vmatpush1.xpose.msra.mxu0 0.0
    %685 = vmatprep.subr.mxu0 0.0
    %686 = vmatpush1.xpose.msra.mxu0 0.0
    %687 = vmatprep.subr.mxu0 0.0
    %688 = vmatpush1.xpose.msra.mxu0 0.0
    %689 = vmatprep.subr.mxu0 0.0
    %690 = vmatpush1.xpose.msra.mxu0 0.0
    %691 = vmatprep.subr.mxu0 0.0
    %692 = vmatpush1.xpose.msra.mxu0 0.0
    %693 = vmatprep.mubr.f32.mxu0 0.0
    %694 = vmatmul.mubr.f32.gmra.mrb[0].mxu0 %v625
    %v695 = vpop.f32.mrb[0].mxu0
    %v696 = vadd.f32 0.0, %v695
    %v697 = vpop.f32.mrb[0].mxu0
    %698 = vdwg.mxu0
    %v699 = vmul.f32 %v618, 0.35355338
    %v700 = vmul.f32 %v696, 0.35355338
    %v701 = vadd.f32 %v699, %v360
    %v702 = vadd.f32 %v700, %v364
    %v703 = vsel %vm201, %v701, -inf
    %704 = vmax.xlane.f32.xlu0 %v703
    %v705 = vpop.xlane.xlu0 %704
    %v706 = vsel %vm201, %v702, -inf
    %707 = vmax.xlane.f32.xlu0 %v706
    %v708 = vpop.xlane.xlu0 %707
    %v709 = vsub.f32 %v701, %v705
    %v710 = vsub.f32 %v702, %v708
    %v711 = vmul.f32 %v709, 1.442695
    %v712 = vpow.pop %v711
    %v713 = vmul.f32 %v710, 1.442695
    %v714 = vpow.pop %v713
    %v715 = vsel %vm201, %v712, 0.0
    %716 = vadd.xlane.f32.xlu0 %v715
    %v717 = vpop.xlane.xlu0 %716
    %v718 = vsel %vm201, %v714, 0.0
    %719 = vadd.xlane.f32.xlu0 %v718
    %v720 = vpop.xlane.xlu0 %719
    %v721 = vrcp.pop %v717
    %v722 = vrcp.pop %v720
    %v723 = vmul.f32 %v712, %v721
    %v724 = vmul.f32 %v714, %v722
    %725 = vrot.lane.b32.xlu0 %v190, 56
    %v726 = vpop.permute.xlu0 %725
    %v729 = vsel %vm201, %v723, 0
    %731 = vmatprep.subr.mxu0 0.0
    %732 = vmatpush1.msra.mxu0 %v726
    %733 = vmatprep.subr.mxu0 0.0
    %734 = vmatpush1.msra.mxu0 0.0
    %735 = vmatprep.subr.mxu0 0.0
    %736 = vmatpush1.msra.mxu0 0.0
    %737 = vmatprep.subr.mxu0 0.0
    %738 = vmatpush1.msra.mxu0 0.0
    %739 = vmatprep.subr.mxu0 0.0
    %740 = vmatpush1.msra.mxu0 0.0
    %741 = vmatprep.subr.mxu0 0.0
    %742 = vmatpush1.msra.mxu0 0.0
    %743 = vmatprep.subr.mxu0 0.0
    %744 = vmatpush1.msra.mxu0 0.0
    %745 = vmatprep.subr.mxu0 0.0
    %746 = vmatpush1.msra.mxu0 0.0
    %747 = vmatprep.subr.mxu0 0.0
    %748 = vmatpush1.msra.mxu0 0.0
    %749 = vmatprep.subr.mxu0 0.0
    %750 = vmatpush1.msra.mxu0 0.0
    %751 = vmatprep.subr.mxu0 0.0
    %752 = vmatpush1.msra.mxu0 0.0
    %753 = vmatprep.subr.mxu0 0.0
    %754 = vmatpush1.msra.mxu0 0.0
    %755 = vmatprep.subr.mxu0 0.0
    %756 = vmatpush1.msra.mxu0 0.0
    %757 = vmatprep.subr.mxu0 0.0
    %758 = vmatpush1.msra.mxu0 0.0
    %759 = vmatprep.subr.mxu0 0.0
    %760 = vmatpush1.msra.mxu0 0.0
    %761 = vmatprep.subr.mxu0 0.0
    %762 = vmatpush1.msra.mxu0 0.0
    %763 = vmatprep.subr.mxu0 0.0
    %764 = vmatpush1.msra.mxu0 0.0
    %765 = vmatprep.subr.mxu0 0.0
    %766 = vmatpush1.msra.mxu0 0.0
    %767 = vmatprep.subr.mxu0 0.0
    %768 = vmatpush1.msra.mxu0 0.0
    %769 = vmatprep.subr.mxu0 0.0
    %770 = vmatpush1.msra.mxu0 0.0
    %771 = vmatprep.subr.mxu0 0.0
    %772 = vmatpush1.msra.mxu0 0.0
    %773 = vmatprep.subr.mxu0 0.0
    %774 = vmatpush1.msra.mxu0 0.0
    %775 = vmatprep.subr.mxu0 0.0
    %776 = vmatpush1.msra.mxu0 0.0
    %777 = vmatprep.subr.mxu0 0.0
    %778 = vmatpush1.msra.mxu0 0.0
    %779 = vmatprep.subr.mxu0 0.0
    %780 = vmatpush1.msra.mxu0 0.0
    %781 = vmatprep.subr.mxu0 0.0
    %782 = vmatpush1.msra.mxu0 0.0
    %783 = vmatprep.subr.mxu0 0.0
    %784 = vmatpush1.msra.mxu0 0.0
    %785 = vmatprep.subr.mxu0 0.0
    %786 = vmatpush1.msra.mxu0 0.0
    %787 = vmatprep.subr.mxu0 0.0
    %788 = vmatpush1.msra.mxu0 0.0
    %789 = vmatprep.subr.mxu0 0.0
    %790 = vmatpush1.msra.mxu0 0.0
    %791 = vmatprep.subr.mxu0 0.0
    %792 = vmatpush1.msra.mxu0 0.0
    %793 = vmatprep.subr.mxu0 0.0
    %794 = vmatpush1.msra.mxu0 0.0
    %795 = vmatprep.mubr.f32.mxu0 0.0
    %796 = vmatmul.mubr.f32.gmra.mrb[0].mxu0 %v729
    %v797 = vpop.f32.mrb[0].mxu0
    %v798 = vadd.f32 0.0, %v797
    %v799 = vpop.f32.mrb[0].mxu0
    %800 = vdwg.mxu0
    %801 = vrot.lane.b32.xlu0 %v195, 56
    %v802 = vpop.permute.xlu0 %801
    %v805 = vsel %vm201, %v724, 0
    %807 = vmatprep.subr.mxu0 0.0
    %808 = vmatpush1.msra.mxu0 %v802
    %809 = vmatprep.subr.mxu0 0.0
    %810 = vmatpush1.msra.mxu0 0.0
    %811 = vmatprep.subr.mxu0 0.0
    %812 = vmatpush1.msra.mxu0 0.0
    %813 = vmatprep.subr.mxu0 0.0
    %814 = vmatpush1.msra.mxu0 0.0
    %815 = vmatprep.subr.mxu0 0.0
    %816 = vmatpush1.msra.mxu0 0.0
    %817 = vmatprep.subr.mxu0 0.0
    %818 = vmatpush1.msra.mxu0 0.0
    %819 = vmatprep.subr.mxu0 0.0
    %820 = vmatpush1.msra.mxu0 0.0
    %821 = vmatprep.subr.mxu0 0.0
    %822 = vmatpush1.msra.mxu0 0.0
    %823 = vmatprep.subr.mxu0 0.0
    %824 = vmatpush1.msra.mxu0 0.0
    %825 = vmatprep.subr.mxu0 0.0
    %826 = vmatpush1.msra.mxu0 0.0
    %827 = vmatprep.subr.mxu0 0.0
    %828 = vmatpush1.msra.mxu0 0.0
    %829 = vmatprep.subr.mxu0 0.0
    %830 = vmatpush1.msra.mxu0 0.0
    %831 = vmatprep.subr.mxu0 0.0
    %832 = vmatpush1.msra.mxu0 0.0
    %833 = vmatprep.subr.mxu0 0.0
    %834 = vmatpush1.msra.mxu0 0.0
    %835 = vmatprep.subr.mxu0 0.0
    %836 = vmatpush1.msra.mxu0 0.0
    %837 = vmatprep.subr.mxu0 0.0
    %838 = vmatpush1.msra.mxu0 0.0
    %839 = vmatprep.subr.mxu0 0.0
    %840 = vmatpush1.msra.mxu0 0.0
    %841 = vmatprep.subr.mxu0 0.0
    %842 = vmatpush1.msra.mxu0 0.0
    %843 = vmatprep.subr.mxu0 0.0
    %844 = vmatpush1.msra.mxu0 0.0
    %845 = vmatprep.subr.mxu0 0.0
    %846 = vmatpush1.msra.mxu0 0.0
    %847 = vmatprep.subr.mxu0 0.0
    %848 = vmatpush1.msra.mxu0 0.0
    %849 = vmatprep.subr.mxu0 0.0
    %850 = vmatpush1.msra.mxu0 0.0
    %851 = vmatprep.subr.mxu0 0.0
    %852 = vmatpush1.msra.mxu0 0.0
    %853 = vmatprep.subr.mxu0 0.0
    %854 = vmatpush1.msra.mxu0 0.0
    %855 = vmatprep.subr.mxu0 0.0
    %856 = vmatpush1.msra.mxu0 0.0
    %857 = vmatprep.subr.mxu0 0.0
    %858 = vmatpush1.msra.mxu0 0.0
    %859 = vmatprep.subr.mxu0 0.0
    %860 = vmatpush1.msra.mxu0 0.0
    %861 = vmatprep.subr.mxu0 0.0
    %862 = vmatpush1.msra.mxu0 0.0
    %863 = vmatprep.subr.mxu0 0.0
    %864 = vmatpush1.msra.mxu0 0.0
    %865 = vmatprep.subr.mxu0 0.0
    %866 = vmatpush1.msra.mxu0 0.0
    %867 = vmatprep.subr.mxu0 0.0
    %868 = vmatpush1.msra.mxu0 0.0
    %869 = vmatprep.subr.mxu0 0.0
    %870 = vmatpush1.msra.mxu0 0.0
    %871 = vmatprep.mubr.f32.mxu0 0.0
    %872 = vmatmul.mubr.f32.gmra.mrb[0].mxu0 %v805
    %v873 = vpop.f32.mrb[0].mxu0
    %v874 = vadd.f32 0.0, %v873
    %v875 = vpop.f32.mrb[0].mxu0
    %876 = vdwg.mxu0
    %877 = vrot.lane.b32.xlu0 %v190, 112
    %v878 = vpop.permute.xlu0 %877
    %879 = vrot.lane.b32.xlu0 %v190, 80
    %v880 = vpop.permute.xlu0 %879
    %v881 = vsel %vm201, %v878, 0
    %v883 = vsel %vm201, %v880, 0
    %885 = vmatprep.subr.mxu0 0.0
    %886 = vmatpush1.xpose.msra.mxu0 %v883
    %887 = vmatprep.subr.mxu0 0.0
    %888 = vmatpush1.xpose.msra.mxu0 0.0
    %889 = vmatprep.subr.mxu0 0.0
    %890 = vmatpush1.xpose.msra.mxu0 0.0
    %891 = vmatprep.subr.mxu0 0.0
    %892 = vmatpush1.xpose.msra.mxu0 0.0
    %893 = vmatprep.subr.mxu0 0.0
    %894 = vmatpush1.xpose.msra.mxu0 0.0
    %895 = vmatprep.subr.mxu0 0.0
    %896 = vmatpush1.xpose.msra.mxu0 0.0
    %897 = vmatprep.subr.mxu0 0.0
    %898 = vmatpush1.xpose.msra.mxu0 0.0
    %899 = vmatprep.subr.mxu0 0.0
    %900 = vmatpush1.xpose.msra.mxu0 0.0
    %901 = vmatprep.subr.mxu0 0.0
    %902 = vmatpush1.xpose.msra.mxu0 0.0
    %903 = vmatprep.subr.mxu0 0.0
    %904 = vmatpush1.xpose.msra.mxu0 0.0
    %905 = vmatprep.subr.mxu0 0.0
    %906 = vmatpush1.xpose.msra.mxu0 0.0
    %907 = vmatprep.subr.mxu0 0.0
    %908 = vmatpush1.xpose.msra.mxu0 0.0
    %909 = vmatprep.subr.mxu0 0.0
    %910 = vmatpush1.xpose.msra.mxu0 0.0
    %911 = vmatprep.subr.mxu0 0.0
    %912 = vmatpush1.xpose.msra.mxu0 0.0
    %913 = vmatprep.subr.mxu0 0.0
    %914 = vmatpush1.xpose.msra.mxu0 0.0
    %915 = vmatprep.subr.mxu0 0.0
    %916 = vmatpush1.xpose.msra.mxu0 0.0
    %917 = vmatprep.subr.mxu0 0.0
    %918 = vmatpush1.xpose.msra.mxu0 0.0
    %919 = vmatprep.subr.mxu0 0.0
    %920 = vmatpush1.xpose.msra.mxu0 0.0
    %921 = vmatprep.subr.mxu0 0.0
    %922 = vmatpush1.xpose.msra.mxu0 0.0
    %923 = vmatprep.subr.mxu0 0.0
    %924 = vmatpush1.xpose.msra.mxu0 0.0
    %925 = vmatprep.subr.mxu0 0.0
    %926 = vmatpush1.xpose.msra.mxu0 0.0
    %927 = vmatprep.subr.mxu0 0.0
    %928 = vmatpush1.xpose.msra.mxu0 0.0
    %929 = vmatprep.subr.mxu0 0.0
    %930 = vmatpush1.xpose.msra.mxu0 0.0
    %931 = vmatprep.subr.mxu0 0.0
    %932 = vmatpush1.xpose.msra.mxu0 0.0
    %933 = vmatprep.subr.mxu0 0.0
    %934 = vmatpush1.xpose.msra.mxu0 0.0
    %935 = vmatprep.subr.mxu0 0.0
    %936 = vmatpush1.xpose.msra.mxu0 0.0
    %937 = vmatprep.subr.mxu0 0.0
    %938 = vmatpush1.xpose.msra.mxu0 0.0
    %939 = vmatprep.subr.mxu0 0.0
    %940 = vmatpush1.xpose.msra.mxu0 0.0
    %941 = vmatprep.subr.mxu0 0.0
    %942 = vmatpush1.xpose.msra.mxu0 0.0
    %943 = vmatprep.subr.mxu0 0.0
    %944 = vmatpush1.xpose.msra.mxu0 0.0
    %945 = vmatprep.subr.mxu0 0.0
    %946 = vmatpush1.xpose.msra.mxu0 0.0
    %947 = vmatprep.subr.mxu0 0.0
    %948 = vmatpush1.xpose.msra.mxu0 0.0
    %949 = vmatprep.mubr.f32.mxu0 0.0
    %950 = vmatmul.mubr.f32.gmra.mrb[0].mxu0 %v881
    %v951 = vpop.f32.mrb[0].mxu0
    %v952 = vadd.f32 0.0, %v951
    %v953 = vpop.f32.mrb[0].mxu0
    %954 = vdwg.mxu0
    %955 = vrot.lane.b32.xlu0 %v195, 112
    %v956 = vpop.permute.xlu0 %955
    %957 = vrot.lane.b32.xlu0 %v195, 80
    %v958 = vpop.permute.xlu0 %957
    %v959 = vsel %vm201, %v956, 0
    %v961 = vsel %vm201, %v958, 0
    %963 = vmatprep.subr.mxu0 0.0
    %964 = vmatpush1.xpose.msra.mxu0 %v961
    %965 = vmatprep.subr.mxu0 0.0
    %966 = vmatpush1.xpose.msra.mxu0 0.0
    %967 = vmatprep.subr.mxu0 0.0
    %968 = vmatpush1.xpose.msra.mxu0 0.0
    %969 = vmatprep.subr.mxu0 0.0
    %970 = vmatpush1.xpose.msra.mxu0 0.0
    %971 = vmatprep.subr.mxu0 0.0
    %972 = vmatpush1.xpose.msra.mxu0 0.0
    %973 = vmatprep.subr.mxu0 0.0
    %974 = vmatpush1.xpose.msra.mxu0 0.0
    %975 = vmatprep.subr.mxu0 0.0
    %976 = vmatpush1.xpose.msra.mxu0 0.0
    %977 = vmatprep.subr.mxu0 0.0
    %978 = vmatpush1.xpose.msra.mxu0 0.0
    %979 = vmatprep.subr.mxu0 0.0
    %980 = vmatpush1.xpose.msra.mxu0 0.0
    %981 = vmatprep.subr.mxu0 0.0
    %982 = vmatpush1.xpose.msra.mxu0 0.0
    %983 = vmatprep.subr.mxu0 0.0
    %984 = vmatpush1.xpose.msra.mxu0 0.0
    %985 = vmatprep.subr.mxu0 0.0
    %986 = vmatpush1.xpose.msra.mxu0 0.0
    %987 = vmatprep.subr.mxu0 0.0
    %988 = vmatpush1.xpose.msra.mxu0 0.0
    %989 = vmatprep.subr.mxu0 0.0
    %990 = vmatpush1.xpose.msra.mxu0 0.0
    %991 = vmatprep.subr.mxu0 0.0
    %992 = vmatpush1.xpose.msra.mxu0 0.0
    %993 = vmatprep.subr.mxu0 0.0
    %994 = vmatpush1.xpose.msra.mxu0 0.0
    %995 = vmatprep.subr.mxu0 0.0
    %996 = vmatpush1.xpose.msra.mxu0 0.0
    %997 = vmatprep.subr.mxu0 0.0
    %998 = vmatpush1.xpose.msra.mxu0 0.0
    %999 = vmatprep.subr.mxu0 0.0
    %1000 = vmatpush1.xpose.msra.mxu0 0.0
    %1001 = vmatprep.subr.mxu0 0.0
    %1002 = vmatpush1.xpose.msra.mxu0 0.0
    %1003 = vmatprep.subr.mxu0 0.0
    %1004 = vmatpush1.xpose.msra.mxu0 0.0
    %1005 = vmatprep.subr.mxu0 0.0
    %1006 = vmatpush1.xpose.msra.mxu0 0.0
    %1007 = vmatprep.subr.mxu0 0.0
    %1008 = vmatpush1.xpose.msra.mxu0 0.0
    %1009 = vmatprep.subr.mxu0 0.0
    %1010 = vmatpush1.xpose.msra.mxu0 0.0
    %1011 = vmatprep.subr.mxu0 0.0
    %1012 = vmatpush1.xpose.msra.mxu0 0.0
    %1013 = vmatprep.subr.mxu0 0.0
    %1014 = vmatpush1.xpose.msra.mxu0 0.0
    %1015 = vmatprep.subr.mxu0 0.0
    %1016 = vmatpush1.xpose.msra.mxu0 0.0
    %1017 = vmatprep.subr.mxu0 0.0
    %1018 = vmatpush1.xpose.msra.mxu0 0.0
    %1019 = vmatprep.subr.mxu0 0.0
    %1020 = vmatpush1.xpose.msra.mxu0 0.0
    %1021 = vmatprep.subr.mxu0 0.0
    %1022 = vmatpush1.xpose.msra.mxu0 0.0
    %1023 = vmatprep.subr.mxu0 0.0
    %1024 = vmatpush1.xpose.msra.mxu0 0.0
    %1025 = vmatprep.subr.mxu0 0.0
    %1026 = vmatpush1.xpose.msra.mxu0 0.0
    %1027 = vmatprep.mubr.f32.mxu0 0.0
    %1028 = vmatmul.mubr.f32.gmra.mrb[0].mxu0 %v959
    %v1029 = vpop.f32.mrb[0].mxu0
    %v1030 = vadd.f32 0.0, %v1029
    %v1031 = vpop.f32.mrb[0].mxu0
    %1032 = vdwg.mxu0
    %v1033 = vmul.f32 %v952, 0.35355338
    %v1034 = vmul.f32 %v1030, 0.35355338
    %v1035 = vadd.f32 %v1033, %v360
    %v1036 = vadd.f32 %v1034, %v364
    %v1037 = vsel %vm201, %v1035, -inf
    %1038 = vmax.xlane.f32.xlu0 %v1037
    %v1039 = vpop.xlane.xlu0 %1038
    %v1040 = vsel %vm201, %v1036, -inf
    %1041 = vmax.xlane.f32.xlu0 %v1040
    %v1042 = vpop.xlane.xlu0 %1041
    %v1043 = vsub.f32 %v1035, %v1039
    %v1044 = vsub.f32 %v1036, %v1042
    %v1045 = vmul.f32 %v1043, 1.442695
    %v1046 = vpow.pop %v1045
    %v1047 = vmul.f32 %v1044, 1.442695
    %v1048 = vpow.pop %v1047
    %v1049 = vsel %vm201, %v1046, 0.0
    %1050 = vadd.xlane.f32.xlu0 %v1049
    %v1051 = vpop.xlane.xlu0 %1050
    %v1052 = vsel %vm201, %v1048, 0.0
    %1053 = vadd.xlane.f32.xlu0 %v1052
    %v1054 = vpop.xlane.xlu0 %1053
    %v1055 = vrcp.pop %v1051
    %v1056 = vrcp.pop %v1054
    %v1057 = vmul.f32 %v1046, %v1055
    %v1058 = vmul.f32 %v1048, %v1056
    %1059 = vrot.lane.b32.xlu0 %v190, 48
    %v1060 = vpop.permute.xlu0 %1059
    %v1063 = vsel %vm201, %v1057, 0
    %1065 = vmatprep.subr.mxu0 0.0
    %1066 = vmatpush1.msra.mxu0 %v1060
    %1067 = vmatprep.subr.mxu0 0.0
    %1068 = vmatpush1.msra.mxu0 0.0
    %1069 = vmatprep.subr.mxu0 0.0
    %1070 = vmatpush1.msra.mxu0 0.0
    %1071 = vmatprep.subr.mxu0 0.0
    %1072 = vmatpush1.msra.mxu0 0.0
    %1073 = vmatprep.subr.mxu0 0.0
    %1074 = vmatpush1.msra.mxu0 0.0
    %1075 = vmatprep.subr.mxu0 0.0
    %1076 = vmatpush1.msra.mxu0 0.0
    %1077 = vmatprep.subr.mxu0 0.0
    %1078 = vmatpush1.msra.mxu0 0.0
    %1079 = vmatprep.subr.mxu0 0.0
    %1080 = vmatpush1.msra.mxu0 0.0
    %1081 = vmatprep.subr.mxu0 0.0
    %1082 = vmatpush1.msra.mxu0 0.0
    %1083 = vmatprep.subr.mxu0 0.0
    %1084 = vmatpush1.msra.mxu0 0.0
    %1085 = vmatprep.subr.mxu0 0.0
    %1086 = vmatpush1.msra.mxu0 0.0
    %1087 = vmatprep.subr.mxu0 0.0
    %1088 = vmatpush1.msra.mxu0 0.0
    %1089 = vmatprep.subr.mxu0 0.0
    %1090 = vmatpush1.msra.mxu0 0.0
    %1091 = vmatprep.subr.mxu0 0.0
    %1092 = vmatpush1.msra.mxu0 0.0
    %1093 = vmatprep.subr.mxu0 0.0
    %1094 = vmatpush1.msra.mxu0 0.0
    %1095 = vmatprep.subr.mxu0 0.0
    %1096 = vmatpush1.msra.mxu0 0.0
    %1097 = vmatprep.subr.mxu0 0.0
    %1098 = vmatpush1.msra.mxu0 0.0
    %1099 = vmatprep.subr.mxu0 0.0
    %1100 = vmatpush1.msra.mxu0 0.0
    %1101 = vmatprep.subr.mxu0 0.0
    %1102 = vmatpush1.msra.mxu0 0.0
    %1103 = vmatprep.subr.mxu0 0.0
    %1104 = vmatpush1.msra.mxu0 0.0
    %1105 = vmatprep.subr.mxu0 0.0
    %1106 = vmatpush1.msra.mxu0 0.0
    %1107 = vmatprep.subr.mxu0 0.0
    %1108 = vmatpush1.msra.mxu0 0.0
    %1109 = vmatprep.subr.mxu0 0.0
    %1110 = vmatpush1.msra.mxu0 0.0
    %1111 = vmatprep.subr.mxu0 0.0
    %1112 = vmatpush1.msra.mxu0 0.0
    %1113 = vmatprep.subr.mxu0 0.0
    %1114 = vmatpush1.msra.mxu0 0.0
    %1115 = vmatprep.subr.mxu0 0.0
    %1116 = vmatpush1.msra.mxu0 0.0
    %1117 = vmatprep.subr.mxu0 0.0
    %1118 = vmatpush1.msra.mxu0 0.0
    %1119 = vmatprep.subr.mxu0 0.0
    %1120 = vmatpush1.msra.mxu0 0.0
    %1121 = vmatprep.subr.mxu0 0.0
    %1122 = vmatpush1.msra.mxu0 0.0
    %1123 = vmatprep.subr.mxu0 0.0
    %1124 = vmatpush1.msra.mxu0 0.0
    %1125 = vmatprep.subr.mxu0 0.0
    %1126 = vmatpush1.msra.mxu0 0.0
    %1127 = vmatprep.subr.mxu0 0.0
    %1128 = vmatpush1.msra.mxu0 0.0
    %1129 = vmatprep.mubr.f32.mxu0 0.0
    %1130 = vmatmul.mubr.f32.gmra.mrb[0].mxu0 %v1063
    %v1131 = vpop.f32.mrb[0].mxu0
    %v1132 = vadd.f32 0.0, %v1131
    %v1133 = vpop.f32.mrb[0].mxu0
    %1134 = vdwg.mxu0
    %1135 = vrot.lane.b32.xlu0 %v195, 48
    %v1136 = vpop.permute.xlu0 %1135
    %v1139 = vsel %vm201, %v1058, 0
    %1141 = vmatprep.subr.mxu0 0.0
    %1142 = vmatpush1.msra.mxu0 %v1136
    %1143 = vmatprep.subr.mxu0 0.0
    %1144 = vmatpush1.msra.mxu0 0.0
    %1145 = vmatprep.subr.mxu0 0.0
    %1146 = vmatpush1.msra.mxu0 0.0
    %1147 = vmatprep.subr.mxu0 0.0
    %1148 = vmatpush1.msra.mxu0 0.0
    %1149 = vmatprep.subr.mxu0 0.0
    %1150 = vmatpush1.msra.mxu0 0.0
    %1151 = vmatprep.subr.mxu0 0.0
    %1152 = vmatpush1.msra.mxu0 0.0
    %1153 = vmatprep.subr.mxu0 0.0
    %1154 = vmatpush1.msra.mxu0 0.0
    %1155 = vmatprep.subr.mxu0 0.0
    %1156 = vmatpush1.msra.mxu0 0.0
    %1157 = vmatprep.subr.mxu0 0.0
    %1158 = vmatpush1.msra.mxu0 0.0
    %1159 = vmatprep.subr.mxu0 0.0
    %1160 = vmatpush1.msra.mxu0 0.0
    %1161 = vmatprep.subr.mxu0 0.0
    %1162 = vmatpush1.msra.mxu0 0.0
    %1163 = vmatprep.subr.mxu0 0.0
    %1164 = vmatpush1.msra.mxu0 0.0
    %1165 = vmatprep.subr.mxu0 0.0
    %1166 = vmatpush1.msra.mxu0 0.0
    %1167 = vmatprep.subr.mxu0 0.0
    %1168 = vmatpush1.msra.mxu0 0.0
    %1169 = vmatprep.subr.mxu0 0.0
    %1170 = vmatpush1.msra.mxu0 0.0
    %1171 = vmatprep.subr.mxu0 0.0
    %1172 = vmatpush1.msra.mxu0 0.0
    %1173 = vmatprep.subr.mxu0 0.0
    %1174 = vmatpush1.msra.mxu0 0.0
    %1175 = vmatprep.subr.mxu0 0.0
    %1176 = vmatpush1.msra.mxu0 0.0
    %1177 = vmatprep.subr.mxu0 0.0
    %1178 = vmatpush1.msra.mxu0 0.0
    %1179 = vmatprep.subr.mxu0 0.0
    %1180 = vmatpush1.msra.mxu0 0.0
    %1181 = vmatprep.subr.mxu0 0.0
    %1182 = vmatpush1.msra.mxu0 0.0
    %1183 = vmatprep.subr.mxu0 0.0
    %1184 = vmatpush1.msra.mxu0 0.0
    %1185 = vmatprep.subr.mxu0 0.0
    %1186 = vmatpush1.msra.mxu0 0.0
    %1187 = vmatprep.subr.mxu0 0.0
    %1188 = vmatpush1.msra.mxu0 0.0
    %1189 = vmatprep.subr.mxu0 0.0
    %1190 = vmatpush1.msra.mxu0 0.0
    %1191 = vmatprep.subr.mxu0 0.0
    %1192 = vmatpush1.msra.mxu0 0.0
    %1193 = vmatprep.subr.mxu0 0.0
    %1194 = vmatpush1.msra.mxu0 0.0
    %1195 = vmatprep.subr.mxu0 0.0
    %1196 = vmatpush1.msra.mxu0 0.0
    %1197 = vmatprep.subr.mxu0 0.0
    %1198 = vmatpush1.msra.mxu0 0.0
    %1199 = vmatprep.subr.mxu0 0.0
    %1200 = vmatpush1.msra.mxu0 0.0
    %1201 = vmatprep.subr.mxu0 0.0
    %1202 = vmatpush1.msra.mxu0 0.0
    %1203 = vmatprep.subr.mxu0 0.0
    %1204 = vmatpush1.msra.mxu0 0.0
    %1205 = vmatprep.mubr.f32.mxu0 0.0
    %1206 = vmatmul.mubr.f32.gmra.mrb[0].mxu0 %v1139
    %v1207 = vpop.f32.mrb[0].mxu0
    %v1208 = vadd.f32 0.0, %v1207
    %v1209 = vpop.f32.mrb[0].mxu0
    %1210 = vdwg.mxu0
    %1211 = vrot.lane.b32.xlu0 %v190, 104
    %v1212 = vpop.permute.xlu0 %1211
    %1213 = vrot.lane.b32.xlu0 %v190, 72
    %v1214 = vpop.permute.xlu0 %1213
    %v1215 = vsel %vm201, %v1212, 0
    %v1217 = vsel %vm201, %v1214, 0
    %1219 = vmatprep.subr.mxu0 0.0
    %1220 = vmatpush1.xpose.msra.mxu0 %v1217
    %1221 = vmatprep.subr.mxu0 0.0
    %1222 = vmatpush1.xpose.msra.mxu0 0.0
    %1223 = vmatprep.subr.mxu0 0.0
    %1224 = vmatpush1.xpose.msra.mxu0 0.0
    %1225 = vmatprep.subr.mxu0 0.0
    %1226 = vmatpush1.xpose.msra.mxu0 0.0
    %1227 = vmatprep.subr.mxu0 0.0
    %1228 = vmatpush1.xpose.msra.mxu0 0.0
    %1229 = vmatprep.subr.mxu0 0.0
    %1230 = vmatpush1.xpose.msra.mxu0 0.0
    %1231 = vmatprep.subr.mxu0 0.0
    %1232 = vmatpush1.xpose.msra.mxu0 0.0
    %1233 = vmatprep.subr.mxu0 0.0
    %1234 = vmatpush1.xpose.msra.mxu0 0.0
    %1235 = vmatprep.subr.mxu0 0.0
    %1236 = vmatpush1.xpose.msra.mxu0 0.0
    %1237 = vmatprep.subr.mxu0 0.0
    %1238 = vmatpush1.xpose.msra.mxu0 0.0
    %1239 = vmatprep.subr.mxu0 0.0
    %1240 = vmatpush1.xpose.msra.mxu0 0.0
    %1241 = vmatprep.subr.mxu0 0.0
    %1242 = vmatpush1.xpose.msra.mxu0 0.0
    %1243 = vmatprep.subr.mxu0 0.0
    %1244 = vmatpush1.xpose.msra.mxu0 0.0
    %1245 = vmatprep.subr.mxu0 0.0
    %1246 = vmatpush1.xpose.msra.mxu0 0.0
    %1247 = vmatprep.subr.mxu0 0.0
    %1248 = vmatpush1.xpose.msra.mxu0 0.0
    %1249 = vmatprep.subr.mxu0 0.0
    %1250 = vmatpush1.xpose.msra.mxu0 0.0
    %1251 = vmatprep.subr.mxu0 0.0
    %1252 = vmatpush1.xpose.msra.mxu0 0.0
    %1253 = vmatprep.subr.mxu0 0.0
    %1254 = vmatpush1.xpose.msra.mxu0 0.0
    %1255 = vmatprep.subr.mxu0 0.0
    %1256 = vmatpush1.xpose.msra.mxu0 0.0
    %1257 = vmatprep.subr.mxu0 0.0
    %1258 = vmatpush1.xpose.msra.mxu0 0.0
    %1259 = vmatprep.subr.mxu0 0.0
    %1260 = vmatpush1.xpose.msra.mxu0 0.0
    %1261 = vmatprep.subr.mxu0 0.0
    %1262 = vmatpush1.xpose.msra.mxu0 0.0
    %1263 = vmatprep.subr.mxu0 0.0
    %1264 = vmatpush1.xpose.msra.mxu0 0.0
    %1265 = vmatprep.subr.mxu0 0.0
    %1266 = vmatpush1.xpose.msra.mxu0 0.0
    %1267 = vmatprep.subr.mxu0 0.0
    %1268 = vmatpush1.xpose.msra.mxu0 0.0
    %1269 = vmatprep.subr.mxu0 0.0
    %1270 = vmatpush1.xpose.msra.mxu0 0.0
    %1271 = vmatprep.subr.mxu0 0.0
    %1272 = vmatpush1.xpose.msra.mxu0 0.0
    %1273 = vmatprep.subr.mxu0 0.0
    %1274 = vmatpush1.xpose.msra.mxu0 0.0
    %1275 = vmatprep.subr.mxu0 0.0
    %1276 = vmatpush1.xpose.msra.mxu0 0.0
    %1277 = vmatprep.subr.mxu0 0.0
    %1278 = vmatpush1.xpose.msra.mxu0 0.0
    %1279 = vmatprep.subr.mxu0 0.0
    %1280 = vmatpush1.xpose.msra.mxu0 0.0
    %1281 = vmatprep.subr.mxu0 0.0
    %1282 = vmatpush1.xpose.msra.mxu0 0.0
    %1283 = vmatprep.mubr.f32.mxu0 0.0
    %1284 = vmatmul.mubr.f32.gmra.mrb[0].mxu0 %v1215
    %v1285 = vpop.f32.mrb[0].mxu0
    %v1286 = vadd.f32 0.0, %v1285
    %v1287 = vpop.f32.mrb[0].mxu0
    %1288 = vdwg.mxu0
    %1289 = vrot.lane.b32.xlu0 %v195, 104
    %v1290 = vpop.permute.xlu0 %1289
    %1291 = vrot.lane.b32.xlu0 %v195, 72
    %v1292 = vpop.permute.xlu0 %1291
    %v1293 = vsel %vm201, %v1290, 0
    %v1295 = vsel %vm201, %v1292, 0
    %1297 = vmatprep.subr.mxu0 0.0
    %1298 = vmatpush1.xpose.msra.mxu0 %v1295
    %1299 = vmatprep.subr.mxu0 0.0
    %1300 = vmatpush1.xpose.msra.mxu0 0.0
    %1301 = vmatprep.subr.mxu0 0.0
    %1302 = vmatpush1.xpose.msra.mxu0 0.0
    %1303 = vmatprep.subr.mxu0 0.0
    %1304 = vmatpush1.xpose.msra.mxu0 0.0
    %1305 = vmatprep.subr.mxu0 0.0
    %1306 = vmatpush1.xpose.msra.mxu0 0.0
    %1307 = vmatprep.subr.mxu0 0.0
    %1308 = vmatpush1.xpose.msra.mxu0 0.0
    %1309 = vmatprep.subr.mxu0 0.0
    %1310 = vmatpush1.xpose.msra.mxu0 0.0
    %1311 = vmatprep.subr.mxu0 0.0
    %1312 = vmatpush1.xpose.msra.mxu0 0.0
    %1313 = vmatprep.subr.mxu0 0.0
    %1314 = vmatpush1.xpose.msra.mxu0 0.0
    %1315 = vmatprep.subr.mxu0 0.0
    %1316 = vmatpush1.xpose.msra.mxu0 0.0
    %1317 = vmatprep.subr.mxu0 0.0
    %1318 = vmatpush1.xpose.msra.mxu0 0.0
    %1319 = vmatprep.subr.mxu0 0.0
    %1320 = vmatpush1.xpose.msra.mxu0 0.0
    %1321 = vmatprep.subr.mxu0 0.0
    %1322 = vmatpush1.xpose.msra.mxu0 0.0
    %1323 = vmatprep.subr.mxu0 0.0
    %1324 = vmatpush1.xpose.msra.mxu0 0.0
    %1325 = vmatprep.subr.mxu0 0.0
    %1326 = vmatpush1.xpose.msra.mxu0 0.0
    %1327 = vmatprep.subr.mxu0 0.0
    %1328 = vmatpush1.xpose.msra.mxu0 0.0
    %1329 = vmatprep.subr.mxu0 0.0
    %1330 = vmatpush1.xpose.msra.mxu0 0.0
    %1331 = vmatprep.subr.mxu0 0.0
    %1332 = vmatpush1.xpose.msra.mxu0 0.0
    %1333 = vmatprep.subr.mxu0 0.0
    %1334 = vmatpush1.xpose.msra.mxu0 0.0
    %1335 = vmatprep.subr.mxu0 0.0
    %1336 = vmatpush1.xpose.msra.mxu0 0.0
    %1337 = vmatprep.subr.mxu0 0.0
    %1338 = vmatpush1.xpose.msra.mxu0 0.0
    %1339 = vmatprep.subr.mxu0 0.0
    %1340 = vmatpush1.xpose.msra.mxu0 0.0
    %1341 = vmatprep.subr.mxu0 0.0
    %1342 = vmatpush1.xpose.msra.mxu0 0.0
    %1343 = vmatprep.subr.mxu0 0.0
    %1344 = vmatpush1.xpose.msra.mxu0 0.0
    %1345 = vmatprep.subr.mxu0 0.0
    %1346 = vmatpush1.xpose.msra.mxu0 0.0
    %1347 = vmatprep.subr.mxu0 0.0
    %1348 = vmatpush1.xpose.msra.mxu0 0.0
    %1349 = vmatprep.subr.mxu0 0.0
    %1350 = vmatpush1.xpose.msra.mxu0 0.0
    %1351 = vmatprep.subr.mxu0 0.0
    %1352 = vmatpush1.xpose.msra.mxu0 0.0
    %1353 = vmatprep.subr.mxu0 0.0
    %1354 = vmatpush1.xpose.msra.mxu0 0.0
    %1355 = vmatprep.subr.mxu0 0.0
    %1356 = vmatpush1.xpose.msra.mxu0 0.0
    %1357 = vmatprep.subr.mxu0 0.0
    %1358 = vmatpush1.xpose.msra.mxu0 0.0
    %1359 = vmatprep.subr.mxu0 0.0
    %1360 = vmatpush1.xpose.msra.mxu0 0.0
    %1361 = vmatprep.mubr.f32.mxu0 0.0
    %1362 = vmatmul.mubr.f32.gmra.mrb[0].mxu0 %v1293
    %v1363 = vpop.f32.mrb[0].mxu0
    %v1364 = vadd.f32 0.0, %v1363
    %v1365 = vpop.f32.mrb[0].mxu0
    %1366 = vdwg.mxu0
    %v1367 = vmul.f32 %v1286, 0.35355338
    %v1368 = vmul.f32 %v1364, 0.35355338
    %v1369 = vadd.f32 %v1367, %v360
    %v1370 = vadd.f32 %v1368, %v364
    %v1371 = vsel %vm201, %v1369, -inf
    %1372 = vmax.xlane.f32.xlu0 %v1371
    %v1373 = vpop.xlane.xlu0 %1372
    %v1374 = vsel %vm201, %v1370, -inf
    %1375 = vmax.xlane.f32.xlu0 %v1374
    %v1376 = vpop.xlane.xlu0 %1375
    %v1377 = vsub.f32 %v1369, %v1373
    %v1378 = vsub.f32 %v1370, %v1376
    %v1379 = vmul.f32 %v1377, 1.442695
    %v1380 = vpow.pop %v1379
    %v1381 = vmul.f32 %v1378, 1.442695
    %v1382 = vpow.pop %v1381
    %v1383 = vsel %vm201, %v1380, 0.0
    %1384 = vadd.xlane.f32.xlu0 %v1383
    %v1385 = vpop.xlane.xlu0 %1384
    %v1386 = vsel %vm201, %v1382, 0.0
    %1387 = vadd.xlane.f32.xlu0 %v1386
    %v1388 = vpop.xlane.xlu0 %1387
    %v1389 = vrcp.pop %v1385
    %v1390 = vrcp.pop %v1388
    %v1391 = vmul.f32 %v1380, %v1389
    %v1392 = vmul.f32 %v1382, %v1390
    %1393 = vrot.lane.b32.xlu0 %v190, 40
    %v1394 = vpop.permute.xlu0 %1393
    %v1397 = vsel %vm201, %v1391, 0
    %1399 = vmatprep.subr.mxu0 0.0
    %1400 = vmatpush1.msra.mxu0 %v1394
    %1401 = vmatprep.subr.mxu0 0.0
    %1402 = vmatpush1.msra.mxu0 0.0
    %1403 = vmatprep.subr.mxu0 0.0
    %1404 = vmatpush1.msra.mxu0 0.0
    %1405 = vmatprep.subr.mxu0 0.0
    %1406 = vmatpush1.msra.mxu0 0.0
    %1407 = vmatprep.subr.mxu0 0.0
    %1408 = vmatpush1.msra.mxu0 0.0
    %1409 = vmatprep.subr.mxu0 0.0
    %1410 = vmatpush1.msra.mxu0 0.0
    %1411 = vmatprep.subr.mxu0 0.0
    %1412 = vmatpush1.msra.mxu0 0.0
    %1413 = vmatprep.subr.mxu0 0.0
    %1414 = vmatpush1.msra.mxu0 0.0
    %1415 = vmatprep.subr.mxu0 0.0
    %1416 = vmatpush1.msra.mxu0 0.0
    %1417 = vmatprep.subr.mxu0 0.0
    %1418 = vmatpush1.msra.mxu0 0.0
    %1419 = vmatprep.subr.mxu0 0.0
    %1420 = vmatpush1.msra.mxu0 0.0
    %1421 = vmatprep.subr.mxu0 0.0
    %1422 = vmatpush1.msra.mxu0 0.0
    %1423 = vmatprep.subr.mxu0 0.0
    %1424 = vmatpush1.msra.mxu0 0.0
    %1425 = vmatprep.subr.mxu0 0.0
    %1426 = vmatpush1.msra.mxu0 0.0
    %1427 = vmatprep.subr.mxu0 0.0
    %1428 = vmatpush1.msra.mxu0 0.0
    %1429 = vmatprep.subr.mxu0 0.0
    %1430 = vmatpush1.msra.mxu0 0.0
    %1431 = vmatprep.subr.mxu0 0.0
    %1432 = vmatpush1.msra.mxu0 0.0
    %1433 = vmatprep.subr.mxu0 0.0
    %1434 = vmatpush1.msra.mxu0 0.0
    %1435 = vmatprep.subr.mxu0 0.0
    %1436 = vmatpush1.msra.mxu0 0.0
    %1437 = vmatprep.subr.mxu0 0.0
    %1438 = vmatpush1.msra.mxu0 0.0
    %1439 = vmatprep.subr.mxu0 0.0
    %1440 = vmatpush1.msra.mxu0 0.0
    %1441 = vmatprep.subr.mxu0 0.0
    %1442 = vmatpush1.msra.mxu0 0.0
    %1443 = vmatprep.subr.mxu0 0.0
    %1444 = vmatpush1.msra.mxu0 0.0
    %1445 = vmatprep.subr.mxu0 0.0
    %1446 = vmatpush1.msra.mxu0 0.0
    %1447 = vmatprep.subr.mxu0 0.0
    %1448 = vmatpush1.msra.mxu0 0.0
    %1449 = vmatprep.subr.mxu0 0.0
    %1450 = vmatpush1.msra.mxu0 0.0
    %1451 = vmatprep.subr.mxu0 0.0
    %1452 = vmatpush1.msra.mxu0 0.0
    %1453 = vmatprep.subr.mxu0 0.0
    %1454 = vmatpush1.msra.mxu0 0.0
    %1455 = vmatprep.subr.mxu0 0.0
    %1456 = vmatpush1.msra.mxu0 0.0
    %1457 = vmatprep.subr.mxu0 0.0
    %1458 = vmatpush1.msra.mxu0 0.0
    %1459 = vmatprep.subr.mxu0 0.0
    %1460 = vmatpush1.msra.mxu0 0.0
    %1461 = vmatprep.subr.mxu0 0.0
    %1462 = vmatpush1.msra.mxu0 0.0
    %1463 = vmatprep.mubr.f32.mxu0 0.0
    %1464 = vmatmul.mubr.f32.gmra.mrb[0].mxu0 %v1397
    %v1465 = vpop.f32.mrb[0].mxu0
    %v1466 = vadd.f32 0.0, %v1465
    %v1467 = vpop.f32.mrb[0].mxu0
    %1468 = vdwg.mxu0
    %1469 = vrot.lane.b32.xlu0 %v195, 40
    %v1470 = vpop.permute.xlu0 %1469
    %v1473 = vsel %vm201, %v1392, 0
    %1475 = vmatprep.subr.mxu0 0.0
    %1476 = vmatpush1.msra.mxu0 %v1470
    %1477 = vmatprep.subr.mxu0 0.0
    %1478 = vmatpush1.msra.mxu0 0.0
    %1479 = vmatprep.subr.mxu0 0.0
    %1480 = vmatpush1.msra.mxu0 0.0
    %1481 = vmatprep.subr.mxu0 0.0
    %1482 = vmatpush1.msra.mxu0 0.0
    %1483 = vmatprep.subr.mxu0 0.0
    %1484 = vmatpush1.msra.mxu0 0.0
    %1485 = vmatprep.subr.mxu0 0.0
    %1486 = vmatpush1.msra.mxu0 0.0
    %1487 = vmatprep.subr.mxu0 0.0
    %1488 = vmatpush1.msra.mxu0 0.0
    %1489 = vmatprep.subr.mxu0 0.0
    %1490 = vmatpush1.msra.mxu0 0.0
    %1491 = vmatprep.subr.mxu0 0.0
    %1492 = vmatpush1.msra.mxu0 0.0
    %1493 = vmatprep.subr.mxu0 0.0
    %1494 = vmatpush1.msra.mxu0 0.0
    %1495 = vmatprep.subr.mxu0 0.0
    %1496 = vmatpush1.msra.mxu0 0.0
    %1497 = vmatprep.subr.mxu0 0.0
    %1498 = vmatpush1.msra.mxu0 0.0
    %1499 = vmatprep.subr.mxu0 0.0
    %1500 = vmatpush1.msra.mxu0 0.0
    %1501 = vmatprep.subr.mxu0 0.0
    %1502 = vmatpush1.msra.mxu0 0.0
    %1503 = vmatprep.subr.mxu0 0.0
    %1504 = vmatpush1.msra.mxu0 0.0
    %1505 = vmatprep.subr.mxu0 0.0
    %1506 = vmatpush1.msra.mxu0 0.0
    %1507 = vmatprep.subr.mxu0 0.0
    %1508 = vmatpush1.msra.mxu0 0.0
    %1509 = vmatprep.subr.mxu0 0.0
    %1510 = vmatpush1.msra.mxu0 0.0
    %1511 = vmatprep.subr.mxu0 0.0
    %1512 = vmatpush1.msra.mxu0 0.0
    %1513 = vmatprep.subr.mxu0 0.0
    %1514 = vmatpush1.msra.mxu0 0.0
    %1515 = vmatprep.subr.mxu0 0.0
    %1516 = vmatpush1.msra.mxu0 0.0
    %1517 = vmatprep.subr.mxu0 0.0
    %1518 = vmatpush1.msra.mxu0 0.0
    %1519 = vmatprep.subr.mxu0 0.0
    %1520 = vmatpush1.msra.mxu0 0.0
    %1521 = vmatprep.subr.mxu0 0.0
    %1522 = vmatpush1.msra.mxu0 0.0
    %1523 = vmatprep.subr.mxu0 0.0
    %1524 = vmatpush1.msra.mxu0 0.0
    %1525 = vmatprep.subr.mxu0 0.0
    %1526 = vmatpush1.msra.mxu0 0.0
    %1527 = vmatprep.subr.mxu0 0.0
    %1528 = vmatpush1.msra.mxu0 0.0
    %1529 = vmatprep.subr.mxu0 0.0
    %1530 = vmatpush1.msra.mxu0 0.0
    %1531 = vmatprep.subr.mxu0 0.0
    %1532 = vmatpush1.msra.mxu0 0.0
    %1533 = vmatprep.subr.mxu0 0.0
    %1534 = vmatpush1.msra.mxu0 0.0
    %1535 = vmatprep.subr.mxu0 0.0
    %1536 = vmatpush1.msra.mxu0 0.0
    %1537 = vmatprep.subr.mxu0 0.0
    %1538 = vmatpush1.msra.mxu0 0.0
    %1539 = vmatprep.mubr.f32.mxu0 0.0
    %1540 = vmatmul.mubr.f32.gmra.mrb[0].mxu0 %v1473
    %v1541 = vpop.f32.mrb[0].mxu0
    %v1542 = vadd.f32 0.0, %v1541
    %v1543 = vpop.f32.mrb[0].mxu0
    %1544 = vdwg.mxu0
    %1547 = vrot.lane.b32.xlu0 %v798, 8
    %v1548 = vpop.permute.xlu0 %1547
    %1549 = vrot.lane.b32.xlu0 %v874, 8
    %v1550 = vpop.permute.xlu0 %1549
    %1555 = vrot.lane.b32.xlu0 %v1132, 16
    %v1556 = vpop.permute.xlu0 %1555
    %1557 = vrot.lane.b32.xlu0 %v1208, 16
    %v1558 = vpop.permute.xlu0 %1557
    %1563 = vrot.lane.b32.xlu0 %v1466, 24
    %v1564 = vpop.permute.xlu0 %1563
    %1565 = vrot.lane.b32.xlu0 %v1542, 24
    %v1566 = vpop.permute.xlu0 %1565
    %v1569 = vsel %vm201, %v464, %v1548
    %v1570 = vsel %vm201, %v540, %v1550
    %vm1571 = vcmask 130048
    %v1572 = vsel %vm1571, %v1569, %v1556
    %v1573 = vsel %vm1571, %v1570, %v1558
    %vm1574 = vcmask 195584
    %v1575 = vsel %vm1574, %v1572, %v1564
    %v1576 = vsel %vm1574, %v1573, %v1566
    %v1577 = vld [vmem:[%s6] sm:$0xff]
    %v1578 = vld [vmem:[%s6 + $0x8] sm:$0xff]
    %v1579 = vld [vmem:[%s6 + $0x10] sm:$0xff]
    %v1580 = vld [vmem:[%s6 + $0x18] sm:$0xff]
    %v1581 = vld [vmem:[%s7] sm:$0x1]
    %v1583 = vlaneseq
    %v1584 = vshrl.u32 %v1583, 7
    %v1585 = vsub.s32 0, %v1584
    %v1586 = vrot.slane %v1581, %v1585
    %v1589 = vsel %vm62, %v1575, 0
    %v1592 = vsel %vm62, %v1576, 0
    %1594 = vmatprep.subr.mxu0 0.0
    %1595 = vmatpush1.msra.mxu0 %v1577
    %1596 = vmatprep.subr.mxu0 0.0
    %1597 = vmatpush1.msra.mxu0 %v1578
    %1598 = vmatprep.subr.mxu0 0.0
    %1599 = vmatpush1.msra.mxu0 %v1579
    %1600 = vmatprep.subr.mxu0 0.0
    %1601 = vmatpush1.msra.mxu0 %v1580
    %1602 = vmatprep.subr.mxu0 0.0
    %1603 = vmatpush1.msra.mxu0 0.0
    %1604 = vmatprep.subr.mxu0 0.0
    %1605 = vmatpush1.msra.mxu0 0.0
    %1606 = vmatprep.subr.mxu0 0.0
    %1607 = vmatpush1.msra.mxu0 0.0
    %1608 = vmatprep.subr.mxu0 0.0
    %1609 = vmatpush1.msra.mxu0 0.0
    %1610 = vmatprep.subr.mxu0 0.0
    %1611 = vmatpush1.msra.mxu0 0.0
    %1612 = vmatprep.subr.mxu0 0.0
    %1613 = vmatpush1.msra.mxu0 0.0
    %1614 = vmatprep.subr.mxu0 0.0
    %1615 = vmatpush1.msra.mxu0 0.0
    %1616 = vmatprep.subr.mxu0 0.0
    %1617 = vmatpush1.msra.mxu0 0.0
    %1618 = vmatprep.subr.mxu0 0.0
    %1619 = vmatpush1.msra.mxu0 0.0
    %1620 = vmatprep.subr.mxu0 0.0
    %1621 = vmatpush1.msra.mxu0 0.0
    %1622 = vmatprep.subr.mxu0 0.0
    %1623 = vmatpush1.msra.mxu0 0.0
    %1624 = vmatprep.subr.mxu0 0.0
    %1625 = vmatpush1.msra.mxu0 0.0
    %1626 = vmatprep.subr.mxu0 0.0
    %1627 = vmatpush1.msra.mxu0 0.0
    %1628 = vmatprep.subr.mxu0 0.0
    %1629 = vmatpush1.msra.mxu0 0.0
    %1630 = vmatprep.subr.mxu0 0.0
    %1631 = vmatpush1.msra.mxu0 0.0
    %1632 = vmatprep.subr.mxu0 0.0
    %1633 = vmatpush1.msra.mxu0 0.0
    %1634 = vmatprep.subr.mxu0 0.0
    %1635 = vmatpush1.msra.mxu0 0.0
    %1636 = vmatprep.subr.mxu0 0.0
    %1637 = vmatpush1.msra.mxu0 0.0
    %1638 = vmatprep.subr.mxu0 0.0
    %1639 = vmatpush1.msra.mxu0 0.0
    %1640 = vmatprep.subr.mxu0 0.0
    %1641 = vmatpush1.msra.mxu0 0.0
    %1642 = vmatprep.subr.mxu0 0.0
    %1643 = vmatpush1.msra.mxu0 0.0
    %1644 = vmatprep.subr.mxu0 0.0
    %1645 = vmatpush1.msra.mxu0 0.0
    %1646 = vmatprep.subr.mxu0 0.0
    %1647 = vmatpush1.msra.mxu0 0.0
    %1648 = vmatprep.subr.mxu0 0.0
    %1649 = vmatpush1.msra.mxu0 0.0
    %1650 = vmatprep.subr.mxu0 0.0
    %1651 = vmatpush1.msra.mxu0 0.0
    %1652 = vmatprep.subr.mxu0 0.0
    %1653 = vmatpush1.msra.mxu0 0.0
    %1654 = vmatprep.subr.mxu0 0.0
    %1655 = vmatpush1.msra.mxu0 0.0
    %1656 = vmatprep.subr.mxu0 0.0
    %1657 = vmatpush1.msra.mxu0 0.0
    %1658 = vmatprep.mubr.f32.mxu0 0.0
    %1659 = vmatmul.mubr.f32.gmra.mrb[0].mxu0 %v1589
    %v1660 = vpop.f32.mrb[0].mxu0
    %v1661 = vadd.f32 %v1586, %v1660
    %v1662 = vpop.f32.mrb[0].mxu0
    %1663 = vmatprep.mubr.f32.mxu0 0.0
    %1664 = vmatmul.mubr.f32.gmra.mrb[0].mxu0 %v1592
    %v1665 = vpop.f32.mrb[0].mxu0
    %v1666 = vadd.f32 %v1586, %v1665
    %v1667 = vpop.f32.mrb[0].mxu0
    %1668 = vdwg.mxu0
    %v1669 = vadd.f32 %v1661, %v104
    %v1670 = vadd.f32 %v1666, %v105
    %v1671 = vld [vmem:[%s8] sm:$0x1]
    %v1672 = vld [vmem:[%s9] sm:$0x1]
    %v1673 = vsel %vm62, %v1669, 0.0
    %1674 = vadd.xlane.f32.xlu0 %v1673
    %v1675 = vpop.xlane.xlu0 %1674
    %v1676 = vsel %vm62, %v1670, 0.0
    %1677 = vadd.xlane.f32.xlu0 %v1676
    %v1678 = vpop.xlane.xlu0 %1677
    %v1679 = vmul.f32 %v1675, %v69
    %v1680 = vmul.f32 %v1678, %v69
    %v1681 = vsub.f32 %v1669, %v1679
    %v1682 = vsub.f32 %v1670, %v1680
    %v1683 = vmul.f32 %v1681, %v1681
    %v1684 = vmul.f32 %v1682, %v1682
    %v1685 = vsel %vm62, %v1683, 0.0
    %1686 = vadd.xlane.f32.xlu0 %v1685
    %v1687 = vpop.xlane.xlu0 %1686
    %v1688 = vsel %vm62, %v1684, 0.0
    %1689 = vadd.xlane.f32.xlu0 %v1688
    %v1690 = vpop.xlane.xlu0 %1689
    %v1691 = vmul.f32 %v1687, %v69
    %v1692 = vmul.f32 %v1690, %v69
    %v1693 = vadd.f32 %v1691, 1e-12
    %v1694 = vadd.f32 %v1692, 1e-12
    %v1695 = vrsqrt.pop %v1693
    %v1696 = vrsqrt.pop %v1694
    %v1697 = vmul.f32 %v1681, %v1695
    %v1698 = vmul.f32 %v1682, %v1696
    %v1700 = vlaneseq
    %v1701 = vshrl.u32 %v1700, 7
    %v1702 = vsub.s32 0, %v1701
    %v1703 = vrot.slane %v1671, %v1702
    %v1705 = vmul.f32 %v1697, %v1703
    %v1706 = vmul.f32 %v1698, %v1703
    %v1708 = vlaneseq
    %v1709 = vshrl.u32 %v1708, 7
    %v1710 = vsub.s32 0, %v1709
    %v1711 = vrot.slane %v1672, %v1710
    %v1713 = vadd.f32 %v1705, %v1711
    %v1714 = vadd.f32 %v1706, %v1711
    %v1715 = vld [vmem:[%s10] sm:$0xff]
    %v1716 = vld [vmem:[%s10 + $0x8] sm:$0xff]
    %v1717 = vld [vmem:[%s10 + $0x10] sm:$0xff]
    %v1718 = vld [vmem:[%s10 + $0x18] sm:$0xff]
    %v1719 = vld [vmem:[%s11] sm:$0x1]
    %v1721 = vlaneseq
    %v1722 = vshrl.u32 %v1721, 7
    %v1723 = vsub.s32 0, %v1722
    %v1724 = vrot.slane %v1719, %v1723
    %v1727 = vsel %vm62, %v1713, 0
    %v1730 = vsel %vm62, %v1714, 0
    %1732 = vmatprep.subr.mxu0 0.0
    %1733 = vmatpush1.msra.mxu0 %v1715
    %1734 = vmatprep.subr.mxu0 0.0
    %1735 = vmatpush1.msra.mxu0 %v1716
    %1736 = vmatprep.subr.mxu0 0.0
    %1737 = vmatpush1.msra.mxu0 %v1717
    %1738 = vmatprep.subr.mxu0 0.0
    %1739 = vmatpush1.msra.mxu0 %v1718
    %1740 = vmatprep.subr.mxu0 0.0
    %1741 = vmatpush1.msra.mxu0 0.0
    %1742 = vmatprep.subr.mxu0 0.0
    %1743 = vmatpush1.msra.mxu0 0.0
    %1744 = vmatprep.subr.mxu0 0.0
    %1745 = vmatpush1.msra.mxu0 0.0
    %1746 = vmatprep.subr.mxu0 0.0
    %1747 = vmatpush1.msra.mxu0 0.0
    %1748 = vmatprep.subr.mxu0 0.0
    %1749 = vmatpush1.msra.mxu0 0.0
    %1750 = vmatprep.subr.mxu0 0.0
    %1751 = vmatpush1.msra.mxu0 0.0
    %1752 = vmatprep.subr.mxu0 0.0
    %1753 = vmatpush1.msra.mxu0 0.0
    %1754 = vmatprep.subr.mxu0 0.0
    %1755 = vmatpush1.msra.mxu0 0.0
    %1756 = vmatprep.subr.mxu0 0.0
    %1757 = vmatpush1.msra.mxu0 0.0
    %1758 = vmatprep.subr.mxu0 0.0
    %1759 = vmatpush1.msra.mxu0 0.0
    %1760 = vmatprep.subr.mxu0 0.0
    %1761 = vmatpush1.msra.mxu0 0.0
    %1762 = vmatprep.subr.mxu0 0.0
    %1763 = vmatpush1.msra.mxu0 0.0
    %1764 = vmatprep.subr.mxu0 0.0
    %1765 = vmatpush1.msra.mxu0 0.0
    %1766 = vmatprep.subr.mxu0 0.0
    %1767 = vmatpush1.msra.mxu0 0.0
    %1768 = vmatprep.subr.mxu0 0.0
    %1769 = vmatpush1.msra.mxu0 0.0
    %1770 = vmatprep.subr.mxu0 0.0
    %1771 = vmatpush1.msra.mxu0 0.0
    %1772 = vmatprep.subr.mxu0 0.0
    %1773 = vmatpush1.msra.mxu0 0.0
    %1774 = vmatprep.subr.mxu0 0.0
    %1775 = vmatpush1.msra.mxu0 0.0
    %1776 = vmatprep.subr.mxu0 0.0
    %1777 = vmatpush1.msra.mxu0 0.0
    %1778 = vmatprep.subr.mxu0 0.0
    %1779 = vmatpush1.msra.mxu0 0.0
    %1780 = vmatprep.subr.mxu0 0.0
    %1781 = vmatpush1.msra.mxu0 0.0
    %1782 = vmatprep.subr.mxu0 0.0
    %1783 = vmatpush1.msra.mxu0 0.0
    %1784 = vmatprep.subr.mxu0 0.0
    %1785 = vmatpush1.msra.mxu0 0.0
    %1786 = vmatprep.subr.mxu0 0.0
    %1787 = vmatpush1.msra.mxu0 0.0
    %1788 = vmatprep.subr.mxu0 0.0
    %1789 = vmatpush1.msra.mxu0 0.0
    %1790 = vmatprep.subr.mxu0 0.0
    %1791 = vmatpush1.msra.mxu0 0.0
    %1792 = vmatprep.subr.mxu0 0.0
    %1793 = vmatpush1.msra.mxu0 0.0
    %1794 = vmatprep.subr.mxu0 0.0
    %1795 = vmatpush1.msra.mxu0 0.0
    %1796 = vmatprep.mubr.f32.mxu0 0.0
    %1797 = vmatmul.mubr.f32.gmra.mrb[0].mxu0 %v1727
    %v1798 = vpop.f32.mrb[0].mxu0
    %v1799 = vadd.f32 %v1724, %v1798
    %v1800 = vpop.f32.mrb[0].mxu0
    %1801 = vmatprep.mubr.f32.mxu0 0.0
    %1802 = vmatmul.mubr.f32.gmra.mrb[0].mxu0 %v1730
    %v1803 = vpop.f32.mrb[0].mxu0
    %v1804 = vadd.f32 %v1724, %v1803
    %v1805 = vpop.f32.mrb[0].mxu0
    %1806 = vdwg.mxu0
    %v1807 = vmul.f32 %v1799, 0.5
    %v1808 = vmul.f32 %v1804, 0.5
    %v1809 = vmul.f32 %v1799, 0.044715
    %v1810 = vmul.f32 %v1804, 0.044715
    %v1811 = vmul.f32 %v1809, %v1799
    %v1812 = vmul.f32 %v1810, %v1804
    %v1813 = vmul.f32 %v1811, %v1799
    %v1814 = vmul.f32 %v1812, %v1804
    %v1815 = vadd.f32 %v1799, %v1813
    %v1816 = vadd.f32 %v1804, %v1814
    %v1817 = vmul.f32 %v1815, 0.7978846
    %v1818 = vmul.f32 %v1816, 0.7978846
    %v1819 = vtanh.pop %v1817
    %v1820 = vtanh.pop %v1818
    %v1821 = vadd.f32 %v1819, 1.0
    %v1822 = vadd.f32 %v1820, 1.0
    %v1823 = vmul.f32 %v1807, %v1821
    %v1824 = vmul.f32 %v1808, %v1822
    %v1825 = vld [vmem:[%s12] sm:$0xff]
    %v1826 = vld [vmem:[%s12 + $0x8] sm:$0xff]
    %v1827 = vld [vmem:[%s12 + $0x10] sm:$0xff]
    %v1828 = vld [vmem:[%s12 + $0x18] sm:$0xff]
    %v1829 = vld [vmem:[%s12 + $0x20] sm:$0xff]
    %v1830 = vld [vmem:[%s12 + $0x28] sm:$0xff]
    %v1831 = vld [vmem:[%s12 + $0x30] sm:$0xff]
    %v1832 = vld [vmem:[%s12 + $0x38] sm:$0xff]
    %v1833 = vld [vmem:[%s13] sm:$0x1]
    %v1835 = vlaneseq
    %v1836 = vshrl.u32 %v1835, 7
    %v1837 = vsub.s32 0, %v1836
    %v1838 = vrot.slane %v1833, %v1837
    %vm1840 = vcmask 523264
    %v1842 = vsel %vm1840, %v1823, 0
    %v1845 = vsel %vm1840, %v1824, 0
    %1847 = vmatprep.subr.mxu0 0.0
    %1848 = vmatpush1.msra.mxu0 %v1825
    %1849 = vmatprep.subr.mxu0 0.0
    %1850 = vmatpush1.msra.mxu0 %v1826
    %1851 = vmatprep.subr.mxu0 0.0
    %1852 = vmatpush1.msra.mxu0 %v1827
    %1853 = vmatprep.subr.mxu0 0.0
    %1854 = vmatpush1.msra.mxu0 %v1828
    %1855 = vmatprep.subr.mxu0 0.0
    %1856 = vmatpush1.msra.mxu0 %v1829
    %1857 = vmatprep.subr.mxu0 0.0
    %1858 = vmatpush1.msra.mxu0 %v1830
    %1859 = vmatprep.subr.mxu0 0.0
    %1860 = vmatpush1.msra.mxu0 %v1831
    %1861 = vmatprep.subr.mxu0 0.0
    %1862 = vmatpush1.msra.mxu0 %v1832
    %1863 = vmatprep.subr.mxu0 0.0
    %1864 = vmatpush1.msra.mxu0 0.0
    %1865 = vmatprep.subr.mxu0 0.0
    %1866 = vmatpush1.msra.mxu0 0.0
    %1867 = vmatprep.subr.mxu0 0.0
    %1868 = vmatpush1.msra.mxu0 0.0
    %1869 = vmatprep.subr.mxu0 0.0
    %1870 = vmatpush1.msra.mxu0 0.0
    %1871 = vmatprep.subr.mxu0 0.0
    %1872 = vmatpush1.msra.mxu0 0.0
    %1873 = vmatprep.subr.mxu0 0.0
    %1874 = vmatpush1.msra.mxu0 0.0
    %1875 = vmatprep.subr.mxu0 0.0
    %1876 = vmatpush1.msra.mxu0 0.0
    %1877 = vmatprep.subr.mxu0 0.0
    %1878 = vmatpush1.msra.mxu0 0.0
    %1879 = vmatprep.subr.mxu0 0.0
    %1880 = vmatpush1.msra.mxu0 0.0
    %1881 = vmatprep.subr.mxu0 0.0
    %1882 = vmatpush1.msra.mxu0 0.0
    %1883 = vmatprep.subr.mxu0 0.0
    %1884 = vmatpush1.msra.mxu0 0.0
    %1885 = vmatprep.subr.mxu0 0.0
    %1886 = vmatpush1.msra.mxu0 0.0
    %1887 = vmatprep.subr.mxu0 0.0
    %1888 = vmatpush1.msra.mxu0 0.0
    %1889 = vmatprep.subr.mxu0 0.0
    %1890 = vmatpush1.msra.mxu0 0.0
    %1891 = vmatprep.subr.mxu0 0.0
    %1892 = vmatpush1.msra.mxu0 0.0
    %1893 = vmatprep.subr.mxu0 0.0
    %1894 = vmatpush1.msra.mxu0 0.0
    %1895 = vmatprep.subr.mxu0 0.0
    %1896 = vmatpush1.msra.mxu0 0.0
    %1897 = vmatprep.subr.mxu0 0.0
    %1898 = vmatpush1.msra.mxu0 0.0
    %1899 = vmatprep.subr.mxu0 0.0
    %1900 = vmatpush1.msra.mxu0 0.0
    %1901 = vmatprep.subr.mxu0 0.0
    %1902 = vmatpush1.msra.mxu0 0.0
    %1903 = vmatprep.subr.mxu0 0.0
    %1904 = vmatpush1.msra.mxu0 0.0
    %1905 = vmatprep.subr.mxu0 0.0
    %1906 = vmatpush1.msra.mxu0 0.0
    %1907 = vmatprep.subr.mxu0 0.0
    %1908 = vmatpush1.msra.mxu0 0.0
    %1909 = vmatprep.subr.mxu0 0.0
    %1910 = vmatpush1.msra.mxu0 0.0
    %1911 = vmatprep.mubr.f32.mxu0 0.0
    %1912 = vmatmul.mubr.f32.gmra.mrb[0].mxu0 %v1842
    %v1913 = vpop.f32.mrb[0].mxu0
    %v1914 = vadd.f32 %v1838, %v1913
    %v1915 = vpop.f32.mrb[0].mxu0
    %1916 = vmatprep.mubr.f32.mxu0 0.0
    %1917 = vmatmul.mubr.f32.gmra.mrb[0].mxu0 %v1845
    %v1918 = vpop.f32.mrb[0].mxu0
    %v1919 = vadd.f32 %v1838, %v1918
    %v1920 = vpop.f32.mrb[0].mxu0
    %1921 = vdwg.mxu0
    %v1922 = vadd.f32 %v1914, %v1713
    %v1923 = vadd.f32 %v1919, %v1714
    %v1924 = vld [vmem:[%s14] sm:$0x1]
    %v1925 = vld [vmem:[%s15] sm:$0x1]
    %v1926 = vsel %vm62, %v1922, 0.0
    %1927 = vadd.xlane.f32.xlu0 %v1926
    %v1928 = vpop.xlane.xlu0 %1927
    %v1929 = vsel %vm62, %v1923, 0.0
    %1930 = vadd.xlane.f32.xlu0 %v1929
    %v1931 = vpop.xlane.xlu0 %1930
    %v1932 = vmul.f32 %v1928, %v69
    %v1933 = vmul.f32 %v1931, %v69
    %v1934 = vsub.f32 %v1922, %v1932
    %v1935 = vsub.f32 %v1923, %v1933
    %v1936 = vmul.f32 %v1934, %v1934
    %v1937 = vmul.f32 %v1935, %v1935
    %v1938 = vsel %vm62, %v1936, 0.0
    %1939 = vadd.xlane.f32.xlu0 %v1938
    %v1940 = vpop.xlane.xlu0 %1939
    %v1941 = vsel %vm62, %v1937, 0.0
    %1942 = vadd.xlane.f32.xlu0 %v1941
    %v1943 = vpop.xlane.xlu0 %1942
    %v1944 = vmul.f32 %v1940, %v69
    %v1945 = vmul.f32 %v1943, %v69
    %v1946 = vadd.f32 %v1944, 1e-12
    %v1947 = vadd.f32 %v1945, 1e-12
    %v1948 = vrsqrt.pop %v1946
    %v1949 = vrsqrt.pop %v1947
    %v1950 = vmul.f32 %v1934, %v1948
    %v1951 = vmul.f32 %v1935, %v1949
    %v1953 = vlaneseq
    %v1954 = vshrl.u32 %v1953, 7
    %v1955 = vsub.s32 0, %v1954
    %v1956 = vrot.slane %v1924, %v1955
    %v1958 = vmul.f32 %v1950, %v1956
    %v1959 = vmul.f32 %v1951, %v1956
    %v1961 = vlaneseq
    %v1962 = vshrl.u32 %v1961, 7
    %v1963 = vsub.s32 0, %v1962
    %v1964 = vrot.slane %v1925, %v1963
    %v1966 = vadd.f32 %v1958, %v1964
    %v1967 = vadd.f32 %v1959, %v1964
    %s1968 = scalar_lea.vmem %s4, 32
    %v1969 = vld [vmem:[%s1968] sm:$0xff]
    %v1970 = vld [vmem:[%s1968 + $0x8] sm:$0xff]
    %v1971 = vld [vmem:[%s1968 + $0x10] sm:$0xff]
    %v1972 = vld [vmem:[%s1968 + $0x18] sm:$0xff]
    %s1973 = scalar_lea.vmem %s5, 1
    %v1974 = vld [vmem:[%s1973] sm:$0x1]
    %v1976 = vlaneseq
    %v1977 = vshrl.u32 %v1976, 7
    %v1978 = vsub.s32 0, %v1977
    %v1979 = vrot.slane %v1974, %v1978
    %v1982 = vsel %vm62, %v1966, 0
    %v1985 = vsel %vm62, %v1967, 0
    %1987 = vmatprep.subr.mxu0 0.0
    %1988 = vmatpush1.msra.mxu0 %v1969
    %1989 = vmatprep.subr.mxu0 0.0
    %1990 = vmatpush1.msra.mxu0 %v1970
    %1991 = vmatprep.subr.mxu0 0.0
    %1992 = vmatpush1.msra.mxu0 %v1971
    %1993 = vmatprep.subr.mxu0 0.0
    %1994 = vmatpush1.msra.mxu0 %v1972
    %1995 = vmatprep.subr.mxu0 0.0
    %1996 = vmatpush1.msra.mxu0 0.0
    %1997 = vmatprep.subr.mxu0 0.0
    %1998 = vmatpush1.msra.mxu0 0.0
    %1999 = vmatprep.subr.mxu0 0.0
    %2000 = vmatpush1.msra.mxu0 0.0
    %2001 = vmatprep.subr.mxu0 0.0
    %2002 = vmatpush1.msra.mxu0 0.0
    %2003 = vmatprep.subr.mxu0 0.0
    %2004 = vmatpush1.msra.mxu0 0.0
    %2005 = vmatprep.subr.mxu0 0.0
    %2006 = vmatpush1.msra.mxu0 0.0
    %2007 = vmatprep.subr.mxu0 0.0
    %2008 = vmatpush1.msra.mxu0 0.0
    %2009 = vmatprep.subr.mxu0 0.0
    %2010 = vmatpush1.msra.mxu0 0.0
    %2011 = vmatprep.subr.mxu0 0.0
    %2012 = vmatpush1.msra.mxu0 0.0
    %2013 = vmatprep.subr.mxu0 0.0
    %2014 = vmatpush1.msra.mxu0 0.0
    %2015 = vmatprep.subr.mxu0 0.0
    %2016 = vmatpush1.msra.mxu0 0.0
    %2017 = vmatprep.subr.mxu0 0.0
    %2018 = vmatpush1.msra.mxu0 0.0
    %2019 = vmatprep.subr.mxu0 0.0
    %2020 = vmatpush1.msra.mxu0 0.0
    %2021 = vmatprep.subr.mxu0 0.0
    %2022 = vmatpush1.msra.mxu0 0.0
    %2023 = vmatprep.subr.mxu0 0.0
    %2024 = vmatpush1.msra.mxu0 0.0
    %2025 = vmatprep.subr.mxu0 0.0
    %2026 = vmatpush1.msra.mxu0 0.0
    %2027 = vmatprep.subr.mxu0 0.0
    %2028 = vmatpush1.msra.mxu0 0.0
    %2029 = vmatprep.subr.mxu0 0.0
    %2030 = vmatpush1.msra.mxu0 0.0
    %2031 = vmatprep.subr.mxu0 0.0
    %2032 = vmatpush1.msra.mxu0 0.0
    %2033 = vmatprep.subr.mxu0 0.0
    %2034 = vmatpush1.msra.mxu0 0.0
    %2035 = vmatprep.subr.mxu0 0.0
    %2036 = vmatpush1.msra.mxu0 0.0
    %2037 = vmatprep.subr.mxu0 0.0
    %2038 = vmatpush1.msra.mxu0 0.0
    %2039 = vmatprep.subr.mxu0 0.0
    %2040 = vmatpush1.msra.mxu0 0.0
    %2041 = vmatprep.subr.mxu0 0.0
    %2042 = vmatpush1.msra.mxu0 0.0
    %2043 = vmatprep.subr.mxu0 0.0
    %2044 = vmatpush1.msra.mxu0 0.0
    %2045 = vmatprep.subr.mxu0 0.0
    %2046 = vmatpush1.msra.mxu0 0.0
    %2047 = vmatprep.subr.mxu0 0.0
    %2048 = vmatpush1.msra.mxu0 0.0
    %2049 = vmatprep.subr.mxu0 0.0
    %2050 = vmatpush1.msra.mxu0 0.0
    %2051 = vmatprep.mubr.f32.mxu0 0.0
    %2052 = vmatmul.mubr.f32.gmra.mrb[0].mxu0 %v1982
    %v2053 = vpop.f32.mrb[0].mxu0
    %v2054 = vadd.f32 %v1979, %v2053
    %v2055 = vpop.f32.mrb[0].mxu0
    %2056 = vmatprep.mubr.f32.mxu0 0.0
    %2057 = vmatmul.mubr.f32.gmra.mrb[0].mxu0 %v1985
    %v2058 = vpop.f32.mrb[0].mxu0
    %v2059 = vadd.f32 %v1979, %v2058
    %v2060 = vpop.f32.mrb[0].mxu0
    %2061 = vdwg.mxu0
    %2063 = vrot.lane.b32.xlu0 %v2054, 96
    %v2064 = vpop.permute.xlu0 %2063
    %v2065 = vsel %vm201, %v2054, 0
    %v2067 = vsel %vm201, %v2064, 0
    %2069 = vmatprep.subr.mxu0 0.0
    %2070 = vmatpush1.xpose.msra.mxu0 %v2067
    %2071 = vmatprep.subr.mxu0 0.0
    %2072 = vmatpush1.xpose.msra.mxu0 0.0
    %2073 = vmatprep.subr.mxu0 0.0
    %2074 = vmatpush1.xpose.msra.mxu0 0.0
    %2075 = vmatprep.subr.mxu0 0.0
    %2076 = vmatpush1.xpose.msra.mxu0 0.0
    %2077 = vmatprep.subr.mxu0 0.0
    %2078 = vmatpush1.xpose.msra.mxu0 0.0
    %2079 = vmatprep.subr.mxu0 0.0
    %2080 = vmatpush1.xpose.msra.mxu0 0.0
    %2081 = vmatprep.subr.mxu0 0.0
    %2082 = vmatpush1.xpose.msra.mxu0 0.0
    %2083 = vmatprep.subr.mxu0 0.0
    %2084 = vmatpush1.xpose.msra.mxu0 0.0
    %2085 = vmatprep.subr.mxu0 0.0
    %2086 = vmatpush1.xpose.msra.mxu0 0.0
    %2087 = vmatprep.subr.mxu0 0.0
    %2088 = vmatpush1.xpose.msra.mxu0 0.0
    %2089 = vmatprep.subr.mxu0 0.0
    %2090 = vmatpush1.xpose.msra.mxu0 0.0
    %2091 = vmatprep.subr.mxu0 0.0
    %2092 = vmatpush1.xpose.msra.mxu0 0.0
    %2093 = vmatprep.subr.mxu0 0.0
    %2094 = vmatpush1.xpose.msra.mxu0 0.0
    %2095 = vmatprep.subr.mxu0 0.0
    %2096 = vmatpush1.xpose.msra.mxu0 0.0
    %2097 = vmatprep.subr.mxu0 0.0
    %2098 = vmatpush1.xpose.msra.mxu0 0.0
    %2099 = vmatprep.subr.mxu0 0.0
    %2100 = vmatpush1.xpose.msra.mxu0 0.0
    %2101 = vmatprep.subr.mxu0 0.0
    %2102 = vmatpush1.xpose.msra.mxu0 0.0
    %2103 = vmatprep.subr.mxu0 0.0
    %2104 = vmatpush1.xpose.msra.mxu0 0.0
    %2105 = vmatprep.subr.mxu0 0.0
    %2106 = vmatpush1.xpose.msra.mxu0 0.0
    %2107 = vmatprep.subr.mxu0 0.0
    %2108 = vmatpush1.xpose.msra.mxu0 0.0
    %2109 = vmatprep.subr.mxu0 0.0
    %2110 = vmatpush1.xpose.msra.mxu0 0.0
    %2111 = vmatprep.subr.mxu0 0.0
    %2112 = vmatpush1.xpose.msra.mxu0 0.0
    %2113 = vmatprep.subr.mxu0 0.0
    %2114 = vmatpush1.xpose.msra.mxu0 0.0
    %2115 = vmatprep.subr.mxu0 0.0
    %2116 = vmatpush1.xpose.msra.mxu0 0.0
    %2117 = vmatprep.subr.mxu0 0.0
    %2118 = vmatpush1.xpose.msra.mxu0 0.0
    %2119 = vmatprep.subr.mxu0 0.0
    %2120 = vmatpush1.xpose.msra.mxu0 0.0
    %2121 = vmatprep.subr.mxu0 0.0
    %2122 = vmatpush1.xpose.msra.mxu0 0.0
    %2123 = vmatprep.subr.mxu0 0.0
    %2124 = vmatpush1.xpose.msra.mxu0 0.0
    %2125 = vmatprep.subr.mxu0 0.0
    %2126 = vmatpush1.xpose.msra.mxu0 0.0
    %2127 = vmatprep.subr.mxu0 0.0
    %2128 = vmatpush1.xpose.msra.mxu0 0.0
    %2129 = vmatprep.subr.mxu0 0.0
    %2130 = vmatpush1.xpose.msra.mxu0 0.0
    %2131 = vmatprep.subr.mxu0 0.0
    %2132 = vmatpush1.xpose.msra.mxu0 0.0
    %2133 = vmatprep.mubr.f32.mxu0 0.0
    %2134 = vmatmul.mubr.f32.gmra.mrb[0].mxu0 %v2065
    %v2135 = vpop.f32.mrb[0].mxu0
    %v2136 = vadd.f32 0.0, %v2135
    %v2137 = vpop.f32.mrb[0].mxu0
    %2138 = vdwg.mxu0
    %2140 = vrot.lane.b32.xlu0 %v2059, 96
    %v2141 = vpop.permute.xlu0 %2140
    %v2142 = vsel %vm201, %v2059, 0
    %v2144 = vsel %vm201, %v2141, 0
    %2146 = vmatprep.subr.mxu0 0.0
    %2147 = vmatpush1.xpose.msra.mxu0 %v2144
    %2148 = vmatprep.subr.mxu0 0.0
    %2149 = vmatpush1.xpose.msra.mxu0 0.0
    %2150 = vmatprep.subr.mxu0 0.0
    %2151 = vmatpush1.xpose.msra.mxu0 0.0
    %2152 = vmatprep.subr.mxu0 0.0
    %2153 = vmatpush1.xpose.msra.mxu0 0.0
    %2154 = vmatprep.subr.mxu0 0.0
    %2155 = vmatpush1.xpose.msra.mxu0 0.0
    %2156 = vmatprep.subr.mxu0 0.0
    %2157 = vmatpush1.xpose.msra.mxu0 0.0
    %2158 = vmatprep.subr.mxu0 0.0
    %2159 = vmatpush1.xpose.msra.mxu0 0.0
    %2160 = vmatprep.subr.mxu0 0.0
    %2161 = vmatpush1.xpose.msra.mxu0 0.0
    %2162 = vmatprep.subr.mxu0 0.0
    %2163 = vmatpush1.xpose.msra.mxu0 0.0
    %2164 = vmatprep.subr.mxu0 0.0
    %2165 = vmatpush1.xpose.msra.mxu0 0.0
    %2166 = vmatprep.subr.mxu0 0.0
    %2167 = vmatpush1.xpose.msra.mxu0 0.0
    %2168 = vmatprep.subr.mxu0 0.0
    %2169 = vmatpush1.xpose.msra.mxu0 0.0
    %2170 = vmatprep.subr.mxu0 0.0
    %2171 = vmatpush1.xpose.msra.mxu0 0.0
    %2172 = vmatprep.subr.mxu0 0.0
    %2173 = vmatpush1.xpose.msra.mxu0 0.0
    %2174 = vmatprep.subr.mxu0 0.0
    %2175 = vmatpush1.xpose.msra.mxu0 0.0
    %2176 = vmatprep.subr.mxu0 0.0
    %2177 = vmatpush1.xpose.msra.mxu0 0.0
    %2178 = vmatprep.subr.mxu0 0.0
    %2179 = vmatpush1.xpose.msra.mxu0 0.0
    %2180 = vmatprep.subr.mxu0 0.0
    %2181 = vmatpush1.xpose.msra.mxu0 0.0
    %2182 = vmatprep.subr.mxu0 0.0
    %2183 = vmatpush1.xpose.msra.mxu0 0.0
    %2184 = vmatprep.subr.mxu0 0.0
    %2185 = vmatpush1.xpose.msra.mxu0 0.0
    %2186 = vmatprep.subr.mxu0 0.0
    %2187 = vmatpush1.xpose.msra.mxu0 0.0
    %2188 = vmatprep.subr.mxu0 0.0
    %2189 = vmatpush1.xpose.msra.mxu0 0.0
    %2190 = vmatprep.subr.mxu0 0.0
    %2191 = vmatpush1.xpose.msra.mxu0 0.0
    %2192 = vmatprep.subr.mxu0 0.0
    %2193 = vmatpush1.xpose.msra.mxu0 0.0
    %2194 = vmatprep.subr.mxu0 0.0
    %2195 = vmatpush1.xpose.msra.mxu0 0.0
    %2196 = vmatprep.subr.mxu0 0.0
    %2197 = vmatpush1.xpose.msra.mxu0 0.0
    %2198 = vmatprep.subr.mxu0 0.0
    %2199 = vmatpush1.xpose.msra.mxu0 0.0
    %2200 = vmatprep.subr.mxu0 0.0
    %2201 = vmatpush1.xpose.msra.mxu0 0.0
    %2202 = vmatprep.subr.mxu0 0.0
    %2203 = vmatpush1.xpose.msra.mxu0 0.0
    %2204 = vmatprep.subr.mxu0 0.0
    %2205 = vmatpush1.xpose.msra.mxu0 0.0
    %2206 = vmatprep.subr.mxu0 0.0
    %2207 = vmatpush1.xpose.msra.mxu0 0.0
    %2208 = vmatprep.subr.mxu0 0.0
    %2209 = vmatpush1.xpose.msra.mxu0 0.0
    %2210 = vmatprep.mubr.f32.mxu0 0.0
    %2211 = vmatmul.mubr.f32.gmra.mrb[0].mxu0 %v2142
    %v2212 = vpop.f32.mrb[0].mxu0
    %v2213 = vadd.f32 0.0, %v2212
    %v2214 = vpop.f32.mrb[0].mxu0
    %2215 = vdwg.mxu0
    %v2216 = vmul.f32 %v2136, 0.35355338
    %v2217 = vmul.f32 %v2213, 0.35355338
    %v2218 = vadd.f32 %v2216, %v360
    %v2219 = vadd.f32 %v2217, %v364
    %v2220 = vsel %vm201, %v2218, -inf
    %2221 = vmax.xlane.f32.xlu0 %v2220
    %v2222 = vpop.xlane.xlu0 %2221
    %v2223 = vsel %vm201, %v2219, -inf
    %2224 = vmax.xlane.f32.xlu0 %v2223
    %v2225 = vpop.xlane.xlu0 %2224
    %v2226 = vsub.f32 %v2218, %v2222
    %v2227 = vsub.f32 %v2219, %v2225
    %v2228 = vmul.f32 %v2226, 1.442695
    %v2229 = vpow.pop %v2228
    %v2230 = vmul.f32 %v2227, 1.442695
    %v2231 = vpow.pop %v2230
    %v2232 = vsel %vm201, %v2229, 0.0
    %2233 = vadd.xlane.f32.xlu0 %v2232
    %v2234 = vpop.xlane.xlu0 %2233
    %v2235 = vsel %vm201, %v2231, 0.0
    %2236 = vadd.xlane.f32.xlu0 %v2235
    %v2237 = vpop.xlane.xlu0 %2236
    %v2238 = vrcp.pop %v2234
    %v2239 = vrcp.pop %v2237
    %v2240 = vmul.f32 %v2229, %v2238
    %v2241 = vmul.f32 %v2231, %v2239
    %2242 = vrot.lane.b32.xlu0 %v2054, 64
    %v2243 = vpop.permute.xlu0 %2242
    %v2246 = vsel %vm201, %v2240, 0
    %2248 = vmatprep.subr.mxu0 0.0
    %2249 = vmatpush1.msra.mxu0 %v2243
    %2250 = vmatprep.subr.mxu0 0.0
    %2251 = vmatpush1.msra.mxu0 0.0
    %2252 = vmatprep.subr.mxu0 0.0
    %2253 = vmatpush1.msra.mxu0 0.0
    %2254 = vmatprep.subr.mxu0 0.0
    %2255 = vmatpush1.msra.mxu0 0.0
    %2256 = vmatprep.subr.mxu0 0.0
    %2257 = vmatpush1.msra.mxu0 0.0
    %2258 = vmatprep.subr.mxu0 0.0
    %2259 = vmatpush1.msra.mxu0 0.0
    %2260 = vmatprep.subr.mxu0 0.0
    %2261 = vmatpush1.msra.mxu0 0.0
    %2262 = vmatprep.subr.mxu0 0.0
    %2263 = vmatpush1.msra.mxu0 0.0
    %2264 = vmatprep.subr.mxu0 0.0
    %2265 = vmatpush1.msra.mxu0 0.0
    %2266 = vmatprep.subr.mxu0 0.0
    %2267 = vmatpush1.msra.mxu0 0.0
    %2268 = vmatprep.subr.mxu0 0.0
    %2269 = vmatpush1.msra.mxu0 0.0
    %2270 = vmatprep.subr.mxu0 0.0
    %2271 = vmatpush1.msra.mxu0 0.0
    %2272 = vmatprep.subr.mxu0 0.0
    %2273 = vmatpush1.msra.mxu0 0.0
    %2274 = vmatprep.subr.mxu0 0.0
    %2275 = vmatpush1.msra.mxu0 0.0
    %2276 = vmatprep.subr.mxu0 0.0
    %2277 = vmatpush1.msra.mxu0 0.0
    %2278 = vmatprep.subr.mxu0 0.0
    %2279 = vmatpush1.msra.mxu0 0.0
    %2280 = vmatprep.subr.mxu0 0.0
    %2281 = vmatpush1.msra.mxu0 0.0
    %2282 = vmatprep.subr.mxu0 0.0
    %2283 = vmatpush1.msra.mxu0 0.0
    %2284 = vmatprep.subr.mxu0 0.0
    %2285 = vmatpush1.msra.mxu0 0.0
    %2286 = vmatprep.subr.mxu0 0.0
    %2287 = vmatpush1.msra.mxu0 0.0
    %2288 = vmatprep.subr.mxu0 0.0
    %2289 = vmatpush1.msra.mxu0 0.0
    %2290 = vmatprep.subr.mxu0 0.0
    %2291 = vmatpush1.msra.mxu0 0.0
    %2292 = vmatprep.subr.mxu0 0.0
    %2293 = vmatpush1.msra.mxu0 0.0
    %2294 = vmatprep.subr.mxu0 0.0
    %2295 = vmatpush1.msra.mxu0 0.0
    %2296 = vmatprep.subr.mxu0 0.0
    %2297 = vmatpush1.msra.mxu0 0.0
    %2298 = vmatprep.subr.mxu0 0.0
    %2299 = vmatpush1.msra.mxu0 0.0
    %2300 = vmatprep.subr.mxu0 0.0
    %2301 = vmatpush1.msra.mxu0 0.0
    %2302 = vmatprep.subr.mxu0 0.0
    %2303 = vmatpush1.msra.mxu0 0.0
    %2304 = vmatprep.subr.mxu0 0.0
    %2305 = vmatpush1.msra.mxu0 0.0
    %2306 = vmatprep.subr.mxu0 0.0
    %2307 = vmatpush1.msra.mxu0 0.0
    %2308 = vmatprep.subr.mxu0 0.0
    %2309 = vmatpush1.msra.mxu0 0.0
    %2310 = vmatprep.subr.mxu0 0.0
    %2311 = vmatpush1.msra.mxu0 0.0
    %2312 = vmatprep.mubr.f32.mxu0 0.0
    %2313 = vmatmul.mubr.f32.gmra.mrb[0].mxu0 %v2246
    %v2314 = vpop.f32.mrb[0].mxu0
    %v2315 = vadd.f32 0.0, %v2314
    %v2316 = vpop.f32.mrb[0].mxu0
    %2317 = vdwg.mxu0
    %2318 = vrot.lane.b32.xlu0 %v2059, 64
    %v2319 = vpop.permute.xlu0 %2318
    %v2322 = vsel %vm201, %v2241, 0
    %2324 = vmatprep.subr.mxu0 0.0
    %2325 = vmatpush1.msra.mxu0 %v2319
    %2326 = vmatprep.subr.mxu0 0.0
    %2327 = vmatpush1.msra.mxu0 0.0
    %2328 = vmatprep.subr.mxu0 0.0
    %2329 = vmatpush1.msra.mxu0 0.0
    %2330 = vmatprep.subr.mxu0 0.0
    %2331 = vmatpush1.msra.mxu0 0.0
    %2332 = vmatprep.subr.mxu0 0.0
    %2333 = vmatpush1.msra.mxu0 0.0
    %2334 = vmatprep.subr.mxu0 0.0
    %2335 = vmatpush1.msra.mxu0 0.0
    %2336 = vmatprep.subr.mxu0 0.0
    %2337 = vmatpush1.msra.mxu0 0.0
    %2338 = vmatprep.subr.mxu0 0.0
    %2339 = vmatpush1.msra.mxu0 0.0
    %2340 = vmatprep.subr.mxu0 0.0
    %2341 = vmatpush1.msra.mxu0 0.0
    %2342 = vmatprep.subr.mxu0 0.0
    %2343 = vmatpush1.msra.mxu0 0.0
    %2344 = vmatprep.subr.mxu0 0.0
    %2345 = vmatpush1.msra.mxu0 0.0
    %2346 = vmatprep.subr.mxu0 0.0
    %2347 = vmatpush1.msra.mxu0 0.0
    %2348 = vmatprep.subr.mxu0 0.0
    %2349 = vmatpush1.msra.mxu0 0.0
    %2350 = vmatprep.subr.mxu0 0.0
    %2351 = vmatpush1.msra.mxu0 0.0
    %2352 = vmatprep.subr.mxu0 0.0
    %2353 = vmatpush1.msra.mxu0 0.0
    %2354 = vmatprep.subr.mxu0 0.0
    %2355 = vmatpush1.msra.mxu0 0.0
    %2356 = vmatprep.subr.mxu0 0.0
    %2357 = vmatpush1.msra.mxu0 0.0
    %2358 = vmatprep.subr.mxu0 0.0
    %2359 = vmatpush1.msra.mxu0 0.0
    %2360 = vmatprep.subr.mxu0 0.0
    %2361 = vmatpush1.msra.mxu0 0.0
    %2362 = vmatprep.subr.mxu0 0.0
    %2363 = vmatpush1.msra.mxu0 0.0
    %2364 = vmatprep.subr.mxu0 0.0
    %2365 = vmatpush1.msra.mxu0 0.0
    %2366 = vmatprep.subr.mxu0 0.0
    %2367 = vmatpush1.msra.mxu0 0.0
    %2368 = vmatprep.subr.mxu0 0.0
    %2369 = vmatpush1.msra.mxu0 0.0
    %2370 = vmatprep.subr.mxu0 0.0
    %2371 = vmatpush1.msra.mxu0 0.0
    %2372 = vmatprep.subr.mxu0 0.0
    %2373 = vmatpush1.msra.mxu0 0.0
    %2374 = vmatprep.subr.mxu0 0.0
    %2375 = vmatpush1.msra.mxu0 0.0
    %2376 = vmatprep.subr.mxu0 0.0
    %2377 = vmatpush1.msra.mxu0 0.0
    %2378 = vmatprep.subr.mxu0 0.0
    %2379 = vmatpush1.msra.mxu0 0.0
    %2380 = vmatprep.subr.mxu0 0.0
    %2381 = vmatpush1.msra.mxu0 0.0
    %2382 = vmatprep.subr.mxu0 0.0
    %2383 = vmatpush1.msra.mxu0 0.0
    %2384 = vmatprep.subr.mxu0 0.0
    %2385 = vmatpush1.msra.mxu0 0.0
    %2386 = vmatprep.subr.mxu0 0.0
    %2387 = vmatpush1.msra.mxu0 0.0
    %2388 = vmatprep.mubr.f32.mxu0 0.0
    %2389 = vmatmul.mubr.f32.gmra.mrb[0].mxu0 %v2322
    %v2390 = vpop.f32.mrb[0].mxu0
    %v2391 = vadd.f32 0.0, %v2390
    %v2392 = vpop.f32.mrb[0].mxu0
    %2393 = vdwg.mxu0
    %2394 = vrot.lane.b32.xlu0 %v2054, 120
    %v2395 = vpop.permute.xlu0 %2394
    %2396 = vrot.lane.b32.xlu0 %v2054, 88
    %v2397 = vpop.permute.xlu0 %2396
    %v2398 = vsel %vm201, %v2395, 0
    %v2400 = vsel %vm201, %v2397, 0
    %2402 = vmatprep.subr.mxu0 0.0
    %2403 = vmatpush1.xpose.msra.mxu0 %v2400
    %2404 = vmatprep.subr.mxu0 0.0
    %2405 = vmatpush1.xpose.msra.mxu0 0.0
    %2406 = vmatprep.subr.mxu0 0.0
    %2407 = vmatpush1.xpose.msra.mxu0 0.0
    %2408 = vmatprep.subr.mxu0 0.0
    %2409 = vmatpush1.xpose.msra.mxu0 0.0
    %2410 = vmatprep.subr.mxu0 0.0
    %2411 = vmatpush1.xpose.msra.mxu0 0.0
    %2412 = vmatprep.subr.mxu0 0.0
    %2413 = vmatpush1.xpose.msra.mxu0 0.0
    %2414 = vmatprep.subr.mxu0 0.0
    %2415 = vmatpush1.xpose.msra.mxu0 0.0
    %2416 = vmatprep.subr.mxu0 0.0
    %2417 = vmatpush1.xpose.msra.mxu0 0.0
    %2418 = vmatprep.subr.mxu0 0.0
    %2419 = vmatpush1.xpose.msra.mxu0 0.0
    %2420 = vmatprep.subr.mxu0 0.0
    %2421 = vmatpush1.xpose.msra.mxu0 0.0
    %2422 = vmatprep.subr.mxu0 0.0
    %2423 = vmatpush1.xpose.msra.mxu0 0.0
    %2424 = vmatprep.subr.mxu0 0.0
    %2425 = vmatpush1.xpose.msra.mxu0 0.0
    %2426 = vmatprep.subr.mxu0 0.0
    %2427 = vmatpush1.xpose.msra.mxu0 0.0
    %2428 = vmatprep.subr.mxu0 0.0
    %2429 = vmatpush1.xpose.msra.mxu0 0.0
    %2430 = vmatprep.subr.mxu0 0.0
    %2431 = vmatpush1.xpose.msra.mxu0 0.0
    %2432 = vmatprep.subr.mxu0 0.0
    %2433 = vmatpush1.xpose.msra.mxu0 0.0
    %2434 = vmatprep.subr.mxu0 0.0
    %2435 = vmatpush1.xpose.msra.mxu0 0.0
    %2436 = vmatprep.subr.mxu0 0.0
    %2437 = vmatpush1.xpose.msra.mxu0 0.0
    %2438 = vmatprep.subr.mxu0 0.0
    %2439 = vmatpush1.xpose.msra.mxu0 0.0
    %2440 = vmatprep.subr.mxu0 0.0
    %2441 = vmatpush1.xpose.msra.mxu0 0.0
    %2442 = vmatprep.subr.mxu0 0.0
    %2443 = vmatpush1.xpose.msra.mxu0 0.0
    %2444 = vmatprep.subr.mxu0 0.0
    %2445 = vmatpush1.xpose.msra.mxu0 0.0
    %2446 = vmatprep.subr.mxu0 0.0
    %2447 = vmatpush1.xpose.msra.mxu0 0.0
    %2448 = vmatprep.subr.mxu0 0.0
    %2449 = vmatpush1.xpose.msra.mxu0 0.0
    %2450 = vmatprep.subr.mxu0 0.0
    %2451 = vmatpush1.xpose.msra.mxu0 0.0
    %2452 = vmatprep.subr.mxu0 0.0
    %2453 = vmatpush1.xpose.msra.mxu0 0.0
    %2454 = vmatprep.subr.mxu0 0.0
    %2455 = vmatpush1.xpose.msra.mxu0 0.0
    %2456 = vmatprep.subr.mxu0 0.0
    %2457 = vmatpush1.xpose.msra.mxu0 0.0
    %2458 = vmatprep.subr.mxu0 0.0
    %2459 = vmatpush1.xpose.msra.mxu0 0.0
    %2460 = vmatprep.subr.mxu0 0.0
    %2461 = vmatpush1.xpose.msra.mxu0 0.0
    %2462 = vmatprep.subr.mxu0 0.0
    %2463 = vmatpush1.xpose.msra.mxu0 0.0
    %2464 = vmatprep.subr.mxu0 0.0
    %2465 = vmatpush1.xpose.msra.mxu0 0.0
    %2466 = vmatprep.mubr.f32.mxu0 0.0
    %2467 = vmatmul.mubr.f32.gmra.mrb[0].mxu0 %v2398
    %v2468 = vpop.f32.mrb[0].mxu0
    %v2469 = vadd.f32 0.0, %v2468
    %v2470 = vpop.f32.mrb[0].mxu0
    %2471 = vdwg.mxu0
    %2472 = vrot.lane.b32.xlu0 %v2059, 120
    %v2473 = vpop.permute.xlu0 %2472
    %2474 = vrot.lane.b32.xlu0 %v2059, 88
    %v2475 = vpop.permute.xlu0 %2474
    %v2476 = vsel %vm201, %v2473, 0
    %v2478 = vsel %vm201, %v2475, 0
    %2480 = vmatprep.subr.mxu0 0.0
    %2481 = vmatpush1.xpose.msra.mxu0 %v2478
    %2482 = vmatprep.subr.mxu0 0.0
    %2483 = vmatpush1.xpose.msra.mxu0 0.0
    %2484 = vmatprep.subr.mxu0 0.0
    %2485 = vmatpush1.xpose.msra.mxu0 0.0
    %2486 = vmatprep.subr.mxu0 0.0
    %2487 = vmatpush1.xpose.msra.mxu0 0.0
    %2488 = vmatprep.subr.mxu0 0.0
    %2489 = vmatpush1.xpose.msra.mxu0 0.0
    %2490 = vmatprep.subr.mxu0 0.0
    %2491 = vmatpush1.xpose.msra.mxu0 0.0
    %2492 = vmatprep.subr.mxu0 0.0
    %2493 = vmatpush1.xpose.msra.mxu0 0.0
    %2494 = vmatprep.subr.mxu0 0.0
    %2495 = vmatpush1.xpose.msra.mxu0 0.0
    %2496 = vmatprep.subr.mxu0 0.0
    %2497 = vmatpush1.xpose.msra.mxu0 0.0
    %2498 = vmatprep.subr.mxu0 0.0
    %2499 = vmatpush1.xpose.msra.mxu0 0.0
    %2500 = vmatprep.subr.mxu0 0.0
    %2501 = vmatpush1.xpose.msra.mxu0 0.0
    %2502 = vmatprep.subr.mxu0 0.0
    %2503 = vmatpush1.xpose.msra.mxu0 0.0
    %2504 = vmatprep.subr.mxu0 0.0
    %2505 = vmatpush1.xpose.msra.mxu0 0.0
    %2506 = vmatprep.subr.mxu0 0.0
    %2507 = vmatpush1.xpose.msra.mxu0 0.0
    %2508 = vmatprep.subr.mxu0 0.0
    %2509 = vmatpush1.xpose.msra.mxu0 0.0
    %2510 = vmatprep.subr.mxu0 0.0
    %2511 = vmatpush1.xpose.msra.mxu0 0.0
    %2512 = vmatprep.subr.mxu0 0.0
    %2513 = vmatpush1.xpose.msra.mxu0 0.0
    %2514 = vmatprep.subr.mxu0 0.0
    %2515 = vmatpush1.xpose.msra.mxu0 0.0
    %2516 = vmatprep.subr.mxu0 0.0
    %2517 = vmatpush1.xpose.msra.mxu0 0.0
    %2518 = vmatprep.subr.mxu0 0.0
    %2519 = vmatpush1.xpose.msra.mxu0 0.0
    %2520 = vmatprep.subr.mxu0 0.0
    %2521 = vmatpush1.xpose.msra.mxu0 0.0
    %2522 = vmatprep.subr.mxu0 0.0
    %2523 = vmatpush1.xpose.msra.mxu0 0.0
    %2524 = vmatprep.subr.mxu0 0.0
    %2525 = vmatpush1.xpose.msra.mxu0 0.0
    %2526 = vmatprep.subr.mxu0 0.0
    %2527 = vmatpush1.xpose.msra.mxu0 0.0
    %2528 = vmatprep.subr.mxu0 0.0
    %2529 = vmatpush1.xpose.msra.mxu0 0.0
    %2530 = vmatprep.subr.mxu0 0.0
    %2531 = vmatpush1.xpose.msra.mxu0 0.0
    %2532 = vmatprep.subr.mxu0 0.0
    %2533 = vmatpush1.xpose.msra.mxu0 0.0
    %2534 = vmatprep.subr.mxu0 0.0
    %2535 = vmatpush1.xpose.msra.mxu0 0.0
    %2536 = vmatprep.subr.mxu0 0.0
    %2537 = vmatpush1.xpose.msra.mxu0 0.0
    %2538 = vmatprep.subr.mxu0 0.0
    %2539 = vmatpush1.xpose.msra.mxu0 0.0
    %2540 = vmatprep.subr.mxu0 0.0
    %2541 = vmatpush1.xpose.msra.mxu0 0.0
    %2542 = vmatprep.subr.mxu0 0.0
    %2543 = vmatpush1.xpose.msra.mxu0 0.0
    %2544 = vmatprep.mubr.f32.mxu0 0.0
    %2545 = vmatmul.mubr.f32.gmra.mrb[0].mxu0 %v2476
    %v2546 = vpop.f32.mrb[0].mxu0
    %v2547 = vadd.f32 0.0, %v2546
    %v2548 = vpop.f32.mrb[0].mxu0
    %2549 = vdwg.mxu0
    %v2550 = vmul.f32 %v2469, 0.35355338
    %v2551 = vmul.f32 %v2547, 0.35355338
    %v2552 = vadd.f32 %v2550, %v360
    %v2553 = vadd.f32 %v2551, %v364
    %v2554 = vsel %vm201, %v2552, -inf
    %2555 = vmax.xlane.f32.xlu0 %v2554
    %v2556 = vpop.xlane.xlu0 %2555
    %v2557 = vsel %vm201, %v2553, -inf
    %2558 = vmax.xlane.f32.xlu0 %v2557
    %v2559 = vpop.xlane.xlu0 %2558
    %v2560 = vsub.f32 %v2552, %v2556
    %v2561 = vsub.f32 %v2553, %v2559
    %v2562 = vmul.f32 %v2560, 1.442695
    %v2563 = vpow.pop %v2562
    %v2564 = vmul.f32 %v2561, 1.442695
    %v2565 = vpow.pop %v2564
    %v2566 = vsel %vm201, %v2563, 0.0
    %2567 = vadd.xlane.f32.xlu0 %v2566
    %v2568 = vpop.xlane.xlu0 %2567
    %v2569 = vsel %vm201, %v2565, 0.0
    %2570 = vadd.xlane.f32.xlu0 %v2569
    %v2571 = vpop.xlane.xlu0 %2570
    %v2572 = vrcp.pop %v2568
    %v2573 = vrcp.pop %v2571
    %v2574 = vmul.f32 %v2563, %v2572
    %v2575 = vmul.f32 %v2565, %v2573
    %2576 = vrot.lane.b32.xlu0 %v2054, 56
    %v2577 = vpop.permute.xlu0 %2576
    %v2580 = vsel %vm201, %v2574, 0
    %2582 = vmatprep.subr.mxu0 0.0
    %2583 = vmatpush1.msra.mxu0 %v2577
    %2584 = vmatprep.subr.mxu0 0.0
    %2585 = vmatpush1.msra.mxu0 0.0
    %2586 = vmatprep.subr.mxu0 0.0
    %2587 = vmatpush1.msra.mxu0 0.0
    %2588 = vmatprep.subr.mxu0 0.0
    %2589 = vmatpush1.msra.mxu0 0.0
    %2590 = vmatprep.subr.mxu0 0.0
    %2591 = vmatpush1.msra.mxu0 0.0
    %2592 = vmatprep.subr.mxu0 0.0
    %2593 = vmatpush1.msra.mxu0 0.0
    %2594 = vmatprep.subr.mxu0 0.0
    %2595 = vmatpush1.msra.mxu0 0.0
    %2596 = vmatprep.subr.mxu0 0.0
    %2597 = vmatpush1.msra.mxu0 0.0
    %2598 = vmatprep.subr.mxu0 0.0
    %2599 = vmatpush1.msra.mxu0 0.0
    %2600 = vmatprep.subr.mxu0 0.0
    %2601 = vmatpush1.msra.mxu0 0.0
    %2602 = vmatprep.subr.mxu0 0.0
    %2603 = vmatpush1.msra.mxu0 0.0
    %2604 = vmatprep.subr.mxu0 0.0
    %2605 = vmatpush1.msra.mxu0 0.0
    %2606 = vmatprep.subr.mxu0 0.0
    %2607 = vmatpush1.msra.mxu0 0.0
    %2608 = vmatprep.subr.mxu0 0.0
    %2609 = vmatpush1.msra.mxu0 0.0
    %2610 = vmatprep.subr.mxu0 0.0
    %2611 = vmatpush1.msra.mxu0 0.0
    %2612 = vmatprep.subr.mxu0 0.0
    %2613 = vmatpush1.msra.mxu0 0.0
    %2614 = vmatprep.subr.mxu0 0.0
    %2615 = vmatpush1.msra.mxu0 0.0
    %2616 = vmatprep.subr.mxu0 0.0
    %2617 = vmatpush1.msra.mxu0 0.0
    %2618 = vmatprep.subr.mxu0 0.0
    %2619 = vmatpush1.msra.mxu0 0.0
    %2620 = vmatprep.subr.mxu0 0.0
    %2621 = vmatpush1.msra.mxu0 0.0
    %2622 = vmatprep.subr.mxu0 0.0
    %2623 = vmatpush1.msra.mxu0 0.0
    %2624 = vmatprep.subr.mxu0 0.0
    %2625 = vmatpush1.msra.mxu0 0.0
    %2626 = vmatprep.subr.mxu0 0.0
    %2627 = vmatpush1.msra.mxu0 0.0
    %2628 = vmatprep.subr.mxu0 0.0
    %2629 = vmatpush1.msra.mxu0 0.0
    %2630 = vmatprep.subr.mxu0 0.0
    %2631 = vmatpush1.msra.mxu0 0.0
    %2632 = vmatprep.subr.mxu0 0.0
    %2633 = vmatpush1.msra.mxu0 0.0
    %2634 = vmatprep.subr.mxu0 0.0
    %2635 = vmatpush1.msra.mxu0 0.0
    %2636 = vmatprep.subr.mxu0 0.0
    %2637 = vmatpush1.msra.mxu0 0.0
    %2638 = vmatprep.subr.mxu0 0.0
    %2639 = vmatpush1.msra.mxu0 0.0
    %2640 = vmatprep.subr.mxu0 0.0
    %2641 = vmatpush1.msra.mxu0 0.0
    %2642 = vmatprep.subr.mxu0 0.0
    %2643 = vmatpush1.msra.mxu0 0.0
    %2644 = vmatprep.subr.mxu0 0.0
    %2645 = vmatpush1.msra.mxu0 0.0
    %2646 = vmatprep.mubr.f32.mxu0 0.0
    %2647 = vmatmul.mubr.f32.gmra.mrb[0].mxu0 %v2580
    %v2648 = vpop.f32.mrb[0].mxu0
    %v2649 = vadd.f32 0.0, %v2648
    %v2650 = vpop.f32.mrb[0].mxu0
    %2651 = vdwg.mxu0
    %2652 = vrot.lane.b32.xlu0 %v2059, 56
    %v2653 = vpop.permute.xlu0 %2652
    %v2656 = vsel %vm201, %v2575, 0
    %2658 = vmatprep.subr.mxu0 0.0
    %2659 = vmatpush1.msra.mxu0 %v2653
    %2660 = vmatprep.subr.mxu0 0.0
    %2661 = vmatpush1.msra.mxu0 0.0
    %2662 = vmatprep.subr.mxu0 0.0
    %2663 = vmatpush1.msra.mxu0 0.0
    %2664 = vmatprep.subr.mxu0 0.0
    %2665 = vmatpush1.msra.mxu0 0.0
    %2666 = vmatprep.subr.mxu0 0.0
    %2667 = vmatpush1.msra.mxu0 0.0
    %2668 = vmatprep.subr.mxu0 0.0
    %2669 = vmatpush1.msra.mxu0 0.0
    %2670 = vmatprep.subr.mxu0 0.0
    %2671 = vmatpush1.msra.mxu0 0.0
    %2672 = vmatprep.subr.mxu0 0.0
    %2673 = vmatpush1.msra.mxu0 0.0
    %2674 = vmatprep.subr.mxu0 0.0
    %2675 = vmatpush1.msra.mxu0 0.0
    %2676 = vmatprep.subr.mxu0 0.0
    %2677 = vmatpush1.msra.mxu0 0.0
    %2678 = vmatprep.subr.mxu0 0.0
    %2679 = vmatpush1.msra.mxu0 0.0
    %2680 = vmatprep.subr.mxu0 0.0
    %2681 = vmatpush1.msra.mxu0 0.0
    %2682 = vmatprep.subr.mxu0 0.0
    %2683 = vmatpush1.msra.mxu0 0.0
    %2684 = vmatprep.subr.mxu0 0.0
    %2685 = vmatpush1.msra.mxu0 0.0
    %2686 = vmatprep.subr.mxu0 0.0
    %2687 = vmatpush1.msra.mxu0 0.0
    %2688 = vmatprep.subr.mxu0 0.0
    %2689 = vmatpush1.msra.mxu0 0.0
    %2690 = vmatprep.subr.mxu0 0.0
    %2691 = vmatpush1.msra.mxu0 0.0
    %2692 = vmatprep.subr.mxu0 0.0
    %2693 = vmatpush1.msra.mxu0 0.0
    %2694 = vmatprep.subr.mxu0 0.0
    %2695 = vmatpush1.msra.mxu0 0.0
    %2696 = vmatprep.subr.mxu0 0.0
    %2697 = vmatpush1.msra.mxu0 0.0
    %2698 = vmatprep.subr.mxu0 0.0
    %2699 = vmatpush1.msra.mxu0 0.0
    %2700 = vmatprep.subr.mxu0 0.0
    %2701 = vmatpush1.msra.mxu0 0.0
    %2702 = vmatprep.subr.mxu0 0.0
    %2703 = vmatpush1.msra.mxu0 0.0
    %2704 = vmatprep.subr.mxu0 0.0
    %2705 = vmatpush1.msra.mxu0 0.0
    %2706 = vmatprep.subr.mxu0 0.0
    %2707 = vmatpush1.msra.mxu0 0.0
    %2708 = vmatprep.subr.mxu0 0.0
    %2709 = vmatpush1.msra.mxu0 0.0
    %2710 = vmatprep.subr.mxu0 0.0
    %2711 = vmatpush1.msra.mxu0 0.0
    %2712 = vmatprep.subr.mxu0 0.0
    %2713 = vmatpush1.msra.mxu0 0.0
    %2714 = vmatprep.subr.mxu0 0.0
    %2715 = vmatpush1.msra.mxu0 0.0
    %2716 = vmatprep.subr.mxu0 0.0
    %2717 = vmatpush1.msra.mxu0 0.0
    %2718 = vmatprep.subr.mxu0 0.0
    %2719 = vmatpush1.msra.mxu0 0.0
    %2720 = vmatprep.subr.mxu0 0.0
    %2721 = vmatpush1.msra.mxu0 0.0
    %2722 = vmatprep.mubr.f32.mxu0 0.0
    %2723 = vmatmul.mubr.f32.gmra.mrb[0].mxu0 %v2656
    %v2724 = vpop.f32.mrb[0].mxu0
    %v2725 = vadd.f32 0.0, %v2724
    %v2726 = vpop.f32.mrb[0].mxu0
    %2727 = vdwg.mxu0
    %2728 = vrot.lane.b32.xlu0 %v2054, 112
    %v2729 = vpop.permute.xlu0 %2728
    %2730 = vrot.lane.b32.xlu0 %v2054, 80
    %v2731 = vpop.permute.xlu0 %2730
    %v2732 = vsel %vm201, %v2729, 0
    %v2734 = vsel %vm201, %v2731, 0
    %2736 = vmatprep.subr.mxu0 0.0
    %2737 = vmatpush1.xpose.msra.mxu0 %v2734
    %2738 = vmatprep.subr.mxu0 0.0
    %2739 = vmatpush1.xpose.msra.mxu0 0.0
    %2740 = vmatprep.subr.mxu0 0.0
    %2741 = vmatpush1.xpose.msra.mxu0 0.0
    %2742 = vmatprep.subr.mxu0 0.0
    %2743 = vmatpush1.xpose.msra.mxu0 0.0
    %2744 = vmatprep.subr.mxu0 0.0
    %2745 = vmatpush1.xpose.msra.mxu0 0.0
    %2746 = vmatprep.subr.mxu0 0.0
    %2747 = vmatpush1.xpose.msra.mxu0 0.0
    %2748 = vmatprep.subr.mxu0 0.0
    %2749 = vmatpush1.xpose.msra.mxu0 0.0
    %2750 = vmatprep.subr.mxu0 0.0
    %2751 = vmatpush1.xpose.msra.mxu0 0.0
    %2752 = vmatprep.subr.mxu0 0.0
    %2753 = vmatpush1.xpose.msra.mxu0 0.0
    %2754 = vmatprep.subr.mxu0 0.0
    %2755 = vmatpush1.xpose.msra.mxu0 0.0
    %2756 = vmatprep.subr.mxu0 0.0
    %2757 = vmatpush1.xpose.msra.mxu0 0.0
    %2758 = vmatprep.subr.mxu0 0.0
    %2759 = vmatpush1.xpose.msra.mxu0 0.0
    %2760 = vmatprep.subr.mxu0 0.0
    %2761 = vmatpush1.xpose.msra.mxu0 0.0
    %2762 = vmatprep.subr.mxu0 0.0
    %2763 = vmatpush1.xpose.msra.mxu0 0.0
    %2764 = vmatprep.subr.mxu0 0.0
    %2765 = vmatpush1.xpose.msra.mxu0 0.0
    %2766 = vmatprep.subr.mxu0 0.0
    %2767 = vmatpush1.xpose.msra.mxu0 0.0
    %2768 = vmatprep.subr.mxu0 0.0
    %2769 = vmatpush1.xpose.msra.mxu0 0.0
    %2770 = vmatprep.subr.mxu0 0.0
    %2771 = vmatpush1.xpose.msra.mxu0 0.0
    %2772 = vmatprep.subr.mxu0 0.0
    %2773 = vmatpush1.xpose.msra.mxu0 0.0
    %2774 = vmatprep.subr.mxu0 0.0
    %2775 = vmatpush1.xpose.msra.mxu0 0.0
    %2776 = vmatprep.subr.mxu0 0.0
    %2777 = vmatpush1.xpose.msra.mxu0 0.0
    %2778 = vmatprep.subr.mxu0 0.0
    %2779 = vmatpush1.xpose.msra.mxu0 0.0
    %2780 = vmatprep.subr.mxu0 0.0
    %2781 = vmatpush1.xpose.msra.mxu0 0.0
    %2782 = vmatprep.subr.mxu0 0.0
    %2783 = vmatpush1.xpose.msra.mxu0 0.0
    %2784 = vmatprep.subr.mxu0 0.0
    %2785 = vmatpush1.xpose.msra.mxu0 0.0
    %2786 = vmatprep.subr.mxu0 0.0
    %2787 = vmatpush1.xpose.msra.mxu0 0.0
    %2788 = vmatprep.subr.mxu0 0.0
    %2789 = vmatpush1.xpose.msra.mxu0 0.0
    %2790 = vmatprep.subr.mxu0 0.0
    %2791 = vmatpush1.xpose.msra.mxu0 0.0
    %2792 = vmatprep.subr.mxu0 0.0
    %2793 = vmatpush1.xpose.msra.mxu0 0.0
    %2794 = vmatprep.subr.mxu0 0.0
    %2795 = vmatpush1.xpose.msra.mxu0 0.0
    %2796 = vmatprep.subr.mxu0 0.0
    %2797 = vmatpush1.xpose.msra.mxu0 0.0
    %2798 = vmatprep.subr.mxu0 0.0
    %2799 = vmatpush1.xpose.msra.mxu0 0.0
    %2800 = vmatprep.mubr.f32.mxu0 0.0
    %2801 = vmatmul.mubr.f32.gmra.mrb[0].mxu0 %v2732
    %v2802 = vpop.f32.mrb[0].mxu0
    %v2803 = vadd.f32 0.0, %v2802
    %v2804 = vpop.f32.mrb[0].mxu0
    %2805 = vdwg.mxu0
    %2806 = vrot.lane.b32.xlu0 %v2059, 112
    %v2807 = vpop.permute.xlu0 %2806
    %2808 = vrot.lane.b32.xlu0 %v2059, 80
    %v2809 = vpop.permute.xlu0 %2808
    %v2810 = vsel %vm201, %v2807, 0
    %v2812 = vsel %vm201, %v2809, 0
    %2814 = vmatprep.subr.mxu0 0.0
    %2815 = vmatpush1.xpose.msra.mxu0 %v2812
    %2816 = vmatprep.subr.mxu0 0.0
    %2817 = vmatpush1.xpose.msra.mxu0 0.0
    %2818 = vmatprep.subr.mxu0 0.0
    %2819 = vmatpush1.xpose.msra.mxu0 0.0
    %2820 = vmatprep.subr.mxu0 0.0
    %2821 = vmatpush1.xpose.msra.mxu0 0.0
    %2822 = vmatprep.subr.mxu0 0.0
    %2823 = vmatpush1.xpose.msra.mxu0 0.0
    %2824 = vmatprep.subr.mxu0 0.0
    %2825 = vmatpush1.xpose.msra.mxu0 0.0
    %2826 = vmatprep.subr.mxu0 0.0
    %2827 = vmatpush1.xpose.msra.mxu0 0.0
    %2828 = vmatprep.subr.mxu0 0.0
    %2829 = vmatpush1.xpose.msra.mxu0 0.0
    %2830 = vmatprep.subr.mxu0 0.0
    %2831 = vmatpush1.xpose.msra.mxu0 0.0
    %2832 = vmatprep.subr.mxu0 0.0
    %2833 = vmatpush1.xpose.msra.mxu0 0.0
    %2834 = vmatprep.subr.mxu0 0.0
    %2835 = vmatpush1.xpose.msra.mxu0 0.0
    %2836 = vmatprep.subr.mxu0 0.0
    %2837 = vmatpush1.xpose.msra.mxu0 0.0
    %2838 = vmatprep.subr.mxu0 0.0
    %2839 = vmatpush1.xpose.msra.mxu0 0.0
    %2840 = vmatprep.subr.mxu0 0.0
    %2841 = vmatpush1.xpose.msra.mxu0 0.0
    %2842 = vmatprep.subr.mxu0 0.0
    %2843 = vmatpush1.xpose.msra.mxu0 0.0
    %2844 = vmatprep.subr.mxu0 0.0
    %2845 = vmatpush1.xpose.msra.mxu0 0.0
    %2846 = vmatprep.subr.mxu0 0.0
    %2847 = vmatpush1.xpose.msra.mxu0 0.0
    %2848 = vmatprep.subr.mxu0 0.0
    %2849 = vmatpush1.xpose.msra.mxu0 0.0
    %2850 = vmatprep.subr.mxu0 0.0
    %2851 = vmatpush1.xpose.msra.mxu0 0.0
    %2852 = vmatprep.subr.mxu0 0.0
    %2853 = vmatpush1.xpose.msra.mxu0 0.0
    %2854 = vmatprep.subr.mxu0 0.0
    %2855 = vmatpush1.xpose.msra.mxu0 0.0
    %2856 = vmatprep.subr.mxu0 0.0
    %2857 = vmatpush1.xpose.msra.mxu0 0.0
    %2858 = vmatprep.subr.mxu0 0.0
    %2859 = vmatpush1.xpose.msra.mxu0 0.0
    %2860 = vmatprep.subr.mxu0 0.0
    %2861 = vmatpush1.xpose.msra.mxu0 0.0
    %2862 = vmatprep.subr.mxu0 0.0
    %2863 = vmatpush1.xpose.msra.mxu0 0.0
    %2864 = vmatprep.subr.mxu0 0.0
    %2865 = vmatpush1.xpose.msra.mxu0 0.0
    %2866 = vmatprep.subr.mxu0 0.0
    %2867 = vmatpush1.xpose.msra.mxu0 0.0
    %2868 = vmatprep.subr.mxu0 0.0
    %2869 = vmatpush1.xpose.msra.mxu0 0.0
    %2870 = vmatprep.subr.mxu0 0.0
    %2871 = vmatpush1.xpose.msra.mxu0 0.0
    %2872 = vmatprep.subr.mxu0 0.0
    %2873 = vmatpush1.xpose.msra.mxu0 0.0
    %2874 = vmatprep.subr.mxu0 0.0
    %2875 = vmatpush1.xpose.msra.mxu0 0.0
    %2876 = vmatprep.subr.mxu0 0.0
    %2877 = vmatpush1.xpose.msra.mxu0 0.0
    %2878 = vmatprep.mubr.f32.mxu0 0.0
    %2879 = vmatmul.mubr.f32.gmra.mrb[0].mxu0 %v2810
    %v2880 = vpop.f32.mrb[0].mxu0
    %v2881 = vadd.f32 0.0, %v2880
    %v2882 = vpop.f32.mrb[0].mxu0
    %2883 = vdwg.mxu0
    %v2884 = vmul.f32 %v2803, 0.35355338
    %v2885 = vmul.f32 %v2881, 0.35355338
    %v2886 = vadd.f32 %v2884, %v360
    %v2887 = vadd.f32 %v2885, %v364
    %v2888 = vsel %vm201, %v2886, -inf
    %2889 = vmax.xlane.f32.xlu0 %v2888
    %v2890 = vpop.xlane.xlu0 %2889
    %v2891 = vsel %vm201, %v2887, -inf
    %2892 = vmax.xlane.f32.xlu0 %v2891
    %v2893 = vpop.xlane.xlu0 %2892
    %v2894 = vsub.f32 %v2886, %v2890
    %v2895 = vsub.f32 %v2887, %v2893
    %v2896 = vmul.f32 %v2894, 1.442695
    %v2897 = vpow.pop %v2896
    %v2898 = vmul.f32 %v2895, 1.442695
    %v2899 = vpow.pop %v2898
    %v2900 = vsel %vm201, %v2897, 0.0
    %2901 = vadd.xlane.f32.xlu0 %v2900
    %v2902 = vpop.xlane.xlu0 %2901
    %v2903 = vsel %vm201, %v2899, 0.0
    %2904 = vadd.xlane.f32.xlu0 %v2903
    %v2905 = vpop.xlane.xlu0 %2904
    %v2906 = vrcp.pop %v2902
    %v2907 = vrcp.pop %v2905
    %v2908 = vmul.f32 %v2897, %v2906
    %v2909 = vmul.f32 %v2899, %v2907
    %2910 = vrot.lane.b32.xlu0 %v2054, 48
    %v2911 = vpop.permute.xlu0 %2910
    %v2914 = vsel %vm201, %v2908, 0
    %2916 = vmatprep.subr.mxu0 0.0
    %2917 = vmatpush1.msra.mxu0 %v2911
    %2918 = vmatprep.subr.mxu0 0.0
    %2919 = vmatpush1.msra.mxu0 0.0
    %2920 = vmatprep.subr.mxu0 0.0
    %2921 = vmatpush1.msra.mxu0 0.0
    %2922 = vmatprep.subr.mxu0 0.0
    %2923 = vmatpush1.msra.mxu0 0.0
    %2924 = vmatprep.subr.mxu0 0.0
    %2925 = vmatpush1.msra.mxu0 0.0
    %2926 = vmatprep.subr.mxu0 0.0
    %2927 = vmatpush1.msra.mxu0 0.0
    %2928 = vmatprep.subr.mxu0 0.0
    %2929 = vmatpush1.msra.mxu0 0.0
    %2930 = vmatprep.subr.mxu0 0.0
    %2931 = vmatpush1.msra.mxu0 0.0
    %2932 = vmatprep.subr.mxu0 0.0
    %2933 = vmatpush1.msra.mxu0 0.0
    %2934 = vmatprep.subr.mxu0 0.0
    %2935 = vmatpush1.msra.mxu0 0.0
    %2936 = vmatprep.subr.mxu0 0.0
    %2937 = vmatpush1.msra.mxu0 0.0
    %2938 = vmatprep.subr.mxu0 0.0
    %2939 = vmatpush1.msra.mxu0 0.0
    %2940 = vmatprep.subr.mxu0 0.0
    %2941 = vmatpush1.msra.mxu0 0.0
    %2942 = vmatprep.subr.mxu0 0.0
    %2943 = vmatpush1.msra.mxu0 0.0
    %2944 = vmatprep.subr.mxu0 0.0
    %2945 = vmatpush1.msra.mxu0 0.0
    %2946 = vmatprep.subr.mxu0 0.0
    %2947 = vmatpush1.msra.mxu0 0.0
    %2948 = vmatprep.subr.mxu0 0.0
    %2949 = vmatpush1.msra.mxu0 0.0
    %2950 = vmatprep.subr.mxu0 0.0
    %2951 = vmatpush1.msra.mxu0 0.0
    %2952 = vmatprep.subr.mxu0 0.0
    %2953 = vmatpush1.msra.mxu0 0.0
    %2954 = vmatprep.subr.mxu0 0.0
    %2955 = vmatpush1.msra.mxu0 0.0
    %2956 = vmatprep.subr.mxu0 0.0
    %2957 = vmatpush1.msra.mxu0 0.0
    %2958 = vmatprep.subr.mxu0 0.0
    %2959 = vmatpush1.msra.mxu0 0.0
    %2960 = vmatprep.subr.mxu0 0.0
    %2961 = vmatpush1.msra.mxu0 0.0
    %2962 = vmatprep.subr.mxu0 0.0
    %2963 = vmatpush1.msra.mxu0 0.0
    %2964 = vmatprep.subr.mxu0 0.0
    %2965 = vmatpush1.msra.mxu0 0.0
    %2966 = vmatprep.subr.mxu0 0.0
    %2967 = vmatpush1.msra.mxu0 0.0
    %2968 = vmatprep.subr.mxu0 0.0
    %2969 = vmatpush1.msra.mxu0 0.0
    %2970 = vmatprep.subr.mxu0 0.0
    %2971 = vmatpush1.msra.mxu0 0.0
    %2972 = vmatprep.subr.mxu0 0.0
    %2973 = vmatpush1.msra.mxu0 0.0
    %2974 = vmatprep.subr.mxu0 0.0
    %2975 = vmatpush1.msra.mxu0 0.0
    %2976 = vmatprep.subr.mxu0 0.0
    %2977 = vmatpush1.msra.mxu0 0.0
    %2978 = vmatprep.subr.mxu0 0.0
    %2979 = vmatpush1.msra.mxu0 0.0
    %2980 = vmatprep.mubr.f32.mxu0 0.0
    %2981 = vmatmul.mubr.f32.gmra.mrb[0].mxu0 %v2914
    %v2982 = vpop.f32.mrb[0].mxu0
    %v2983 = vadd.f32 0.0, %v2982
    %v2984 = vpop.f32.mrb[0].mxu0
    %2985 = vdwg.mxu0
    %2986 = vrot.lane.b32.xlu0 %v2059, 48
    %v2987 = vpop.permute.xlu0 %2986
    %v2990 = vsel %vm201, %v2909, 0
    %2992 = vmatprep.subr.mxu0 0.0
    %2993 = vmatpush1.msra.mxu0 %v2987
    %2994 = vmatprep.subr.mxu0 0.0
    %2995 = vmatpush1.msra.mxu0 0.0
    %2996 = vmatprep.subr.mxu0 0.0
    %2997 = vmatpush1.msra.mxu0 0.0
    %2998 = vmatprep.subr.mxu0 0.0
    %2999 = vmatpush1.msra.mxu0 0.0
    %3000 = vmatprep.subr.mxu0 0.0
    %3001 = vmatpush1.msra.mxu0 0.0
    %3002 = vmatprep.subr.mxu0 0.0
    %3003 = vmatpush1.msra.mxu0 0.0
    %3004 = vmatprep.subr.mxu0 0.0
    %3005 = vmatpush1.msra.mxu0 0.0
    %3006 = vmatprep.subr.mxu0 0.0
    %3007 = vmatpush1.msra.mxu0 0.0
    %3008 = vmatprep.subr.mxu0 0.0
    %3009 = vmatpush1.msra.mxu0 0.0
    %3010 = vmatprep.subr.mxu0 0.0
    %3011 = vmatpush1.msra.mxu0 0.0
    %3012 = vmatprep.subr.mxu0 0.0
    %3013 = vmatpush1.msra.mxu0 0.0
    %3014 = vmatprep.subr.mxu0 0.0
    %3015 = vmatpush1.msra.mxu0 0.0
    %3016 = vmatprep.subr.mxu0 0.0
    %3017 = vmatpush1.msra.mxu0 0.0
    %3018 = vmatprep.subr.mxu0 0.0
    %3019 = vmatpush1.msra.mxu0 0.0
    %3020 = vmatprep.subr.mxu0 0.0
    %3021 = vmatpush1.msra.mxu0 0.0
    %3022 = vmatprep.subr.mxu0 0.0
    %3023 = vmatpush1.msra.mxu0 0.0
    %3024 = vmatprep.subr.mxu0 0.0
    %3025 = vmatpush1.msra.mxu0 0.0
    %3026 = vmatprep.subr.mxu0 0.0
    %3027 = vmatpush1.msra.mxu0 0.0
    %3028 = vmatprep.subr.mxu0 0.0
    %3029 = vmatpush1.msra.mxu0 0.0
    %3030 = vmatprep.subr.mxu0 0.0
    %3031 = vmatpush1.msra.mxu0 0.0
    %3032 = vmatprep.subr.mxu0 0.0
    %3033 = vmatpush1.msra.mxu0 0.0
    %3034 = vmatprep.subr.mxu0 0.0
    %3035 = vmatpush1.msra.mxu0 0.0
    %3036 = vmatprep.subr.mxu0 0.0
    %3037 = vmatpush1.msra.mxu0 0.0
    %3038 = vmatprep.subr.mxu0 0.0
    %3039 = vmatpush1.msra.mxu0 0.0
    %3040 = vmatprep.subr.mxu0 0.0
    %3041 = vmatpush1.msra.mxu0 0.0
    %3042 = vmatprep.subr.mxu0 0.0
    %3043 = vmatpush1.msra.mxu0 0.0
    %3044 = vmatprep.subr.mxu0 0.0
    %3045 = vmatpush1.msra.mxu0 0.0
    %3046 = vmatprep.subr.mxu0 0.0
    %3047 = vmatpush1.msra.mxu0 0.0
    %3048 = vmatprep.subr.mxu0 0.0
    %3049 = vmatpush1.msra.mxu0 0.0
    %3050 = vmatprep.subr.mxu0 0.0
    %3051 = vmatpush1.msra.mxu0 0.0
    %3052 = vmatprep.subr.mxu0 0.0
    %3053 = vmatpush1.msra.mxu0 0.0
    %3054 = vmatprep.subr.mxu0 0.0
    %3055 = vmatpush1.msra.mxu0 0.0
    %3056 = vmatprep.mubr.f32.mxu0 0.0
    %3057 = vmatmul.mubr.f32.gmra.mrb[0].mxu0 %v2990
    %v3058 = vpop.f32.mrb[0].mxu0
    %v3059 = vadd.f32 0.0, %v3058
    %v3060 = vpop.f32.mrb[0].mxu0
    %3061 = vdwg.mxu0
    %3062 = vrot.lane.b32.xlu0 %v2054, 104
    %v3063 = vpop.permute.xlu0 %3062
    %3064 = vrot.lane.b32.xlu0 %v2054, 72
    %v3065 = vpop.permute.xlu0 %3064
    %v3066 = vsel %vm201, %v3063, 0
    %v3068 = vsel %vm201, %v3065, 0
    %3070 = vmatprep.subr.mxu0 0.0
    %3071 = vmatpush1.xpose.msra.mxu0 %v3068
    %3072 = vmatprep.subr.mxu0 0.0
    %3073 = vmatpush1.xpose.msra.mxu0 0.0
    %3074 = vmatprep.subr.mxu0 0.0
    %3075 = vmatpush1.xpose.msra.mxu0 0.0
    %3076 = vmatprep.subr.mxu0 0.0
    %3077 = vmatpush1.xpose.msra.mxu0 0.0
    %3078 = vmatprep.subr.mxu0 0.0
    %3079 = vmatpush1.xpose.msra.mxu0 0.0
    %3080 = vmatprep.subr.mxu0 0.0
    %3081 = vmatpush1.xpose.msra.mxu0 0.0
    %3082 = vmatprep.subr.mxu0 0.0
    %3083 = vmatpush1.xpose.msra.mxu0 0.0
    %3084 = vmatprep.subr.mxu0 0.0
    %3085 = vmatpush1.xpose.msra.mxu0 0.0
    %3086 = vmatprep.subr.mxu0 0.0
    %3087 = vmatpush1.xpose.msra.mxu0 0.0
    %3088 = vmatprep.subr.mxu0 0.0
    %3089 = vmatpush1.xpose.msra.mxu0 0.0
    %3090 = vmatprep.subr.mxu0 0.0
    %3091 = vmatpush1.xpose.msra.mxu0 0.0
    %3092 = vmatprep.subr.mxu0 0.0
    %3093 = vmatpush1.xpose.msra.mxu0 0.0
    %3094 = vmatprep.subr.mxu0 0.0
    %3095 = vmatpush1.xpose.msra.mxu0 0.0
    %3096 = vmatprep.subr.mxu0 0.0
    %3097 = vmatpush1.xpose.msra.mxu0 0.0
    %3098 = vmatprep.subr.mxu0 0.0
    %3099 = vmatpush1.xpose.msra.mxu0 0.0
    %3100 = vmatprep.subr.mxu0 0.0
    %3101 = vmatpush1.xpose.msra.mxu0 0.0
    %3102 = vmatprep.subr.mxu0 0.0
    %3103 = vmatpush1.xpose.msra.mxu0 0.0
    %3104 = vmatprep.subr.mxu0 0.0
    %3105 = vmatpush1.xpose.msra.mxu0 0.0
    %3106 = vmatprep.subr.mxu0 0.0
    %3107 = vmatpush1.xpose.msra.mxu0 0.0
    %3108 = vmatprep.subr.mxu0 0.0
    %3109 = vmatpush1.xpose.msra.mxu0 0.0
    %3110 = vmatprep.subr.mxu0 0.0
    %3111 = vmatpush1.xpose.msra.mxu0 0.0
    %3112 = vmatprep.subr.mxu0 0.0
    %3113 = vmatpush1.xpose.msra.mxu0 0.0
    %3114 = vmatprep.subr.mxu0 0.0
    %3115 = vmatpush1.xpose.msra.mxu0 0.0
    %3116 = vmatprep.subr.mxu0 0.0
    %3117 = vmatpush1.xpose.msra.mxu0 0.0
    %3118 = vmatprep.subr.mxu0 0.0
    %3119 = vmatpush1.xpose.msra.mxu0 0.0
    %3120 = vmatprep.subr.mxu0 0.0
    %3121 = vmatpush1.xpose.msra.mxu0 0.0
    %3122 = vmatprep.subr.mxu0 0.0
    %3123 = vmatpush1.xpose.msra.mxu0 0.0
    %3124 = vmatprep.subr.mxu0 0.0
    %3125 = vmatpush1.xpose.msra.mxu0 0.0
    %3126 = vmatprep.subr.mxu0 0.0
    %3127 = vmatpush1.xpose.msra.mxu0 0.0
    %3128 = vmatprep.subr.mxu0 0.0
    %3129 = vmatpush1.xpose.msra.mxu0 0.0
    %3130 = vmatprep.subr.mxu0 0.0
    %3131 = vmatpush1.xpose.msra.mxu0 0.0
    %3132 = vmatprep.subr.mxu0 0.0
    %3133 = vmatpush1.xpose.msra.mxu0 0.0
    %3134 = vmatprep.mubr.f32.mxu0 0.0
    %3135 = vmatmul.mubr.f32.gmra.mrb[0].mxu0 %v3066
    %v3136 = vpop.f32.mrb[0].mxu0
    %v3137 = vadd.f32 0.0, %v3136
    %v3138 = vpop.f32.mrb[0].mxu0
    %3139 = vdwg.mxu0
    %3140 = vrot.lane.b32.xlu0 %v2059, 104
    %v3141 = vpop.permute.xlu0 %3140
    %3142 = vrot.lane.b32.xlu0 %v2059, 72
    %v3143 = vpop.permute.xlu0 %3142
    %v3144 = vsel %vm201, %v3141, 0
    %v3146 = vsel %vm201, %v3143, 0
    %3148 = vmatprep.subr.mxu0 0.0
    %3149 = vmatpush1.xpose.msra.mxu0 %v3146
    %3150 = vmatprep.subr.mxu0 0.0
    %3151 = vmatpush1.xpose.msra.mxu0 0.0
    %3152 = vmatprep.subr.mxu0 0.0
    %3153 = vmatpush1.xpose.msra.mxu0 0.0
    %3154 = vmatprep.subr.mxu0 0.0
    %3155 = vmatpush1.xpose.msra.mxu0 0.0
    %3156 = vmatprep.subr.mxu0 0.0
    %3157 = vmatpush1.xpose.msra.mxu0 0.0
    %3158 = vmatprep.subr.mxu0 0.0
    %3159 = vmatpush1.xpose.msra.mxu0 0.0
    %3160 = vmatprep.subr.mxu0 0.0
    %3161 = vmatpush1.xpose.msra.mxu0 0.0
    %3162 = vmatprep.subr.mxu0 0.0
    %3163 = vmatpush1.xpose.msra.mxu0 0.0
    %3164 = vmatprep.subr.mxu0 0.0
    %3165 = vmatpush1.xpose.msra.mxu0 0.0
    %3166 = vmatprep.subr.mxu0 0.0
    %3167 = vmatpush1.xpose.msra.mxu0 0.0
    %3168 = vmatprep.subr.mxu0 0.0
    %3169 = vmatpush1.xpose.msra.mxu0 0.0
    %3170 = vmatprep.subr.mxu0 0.0
    %3171 = vmatpush1.xpose.msra.mxu0 0.0
    %3172 = vmatprep.subr.mxu0 0.0
    %3173 = vmatpush1.xpose.msra.mxu0 0.0
    %3174 = vmatprep.subr.mxu0 0.0
    %3175 = vmatpush1.xpose.msra.mxu0 0.0
    %3176 = vmatprep.subr.mxu0 0.0
    %3177 = vmatpush1.xpose.msra.mxu0 0.0
    %3178 = vmatprep.subr.mxu0 0.0
    %3179 = vmatpush1.xpose.msra.mxu0 0.0
    %3180 = vmatprep.subr.mxu0 0.0
    %3181 = vmatpush1.xpose.msra.mxu0 0.0
    %3182 = vmatprep.subr.mxu0 0.0
    %3183 = vmatpush1.xpose.msra.mxu0 0.0
    %3184 = vmatprep.subr.mxu0 0.0
    %3185 = vmatpush1.xpose.msra.mxu0 0.0
    %3186 = vmatprep.subr.mxu0 0.0
    %3187 = vmatpush1.xpose.msra.mxu0 0.0
    %3188 = vmatprep.subr.mxu0 0.0
    %3189 = vmatpush1.xpose.msra.mxu0 0.0
    %3190 = vmatprep.subr.mxu0 0.0
    %3191 = vmatpush1.xpose.msra.mxu0 0.0
    %3192 = vmatprep.subr.mxu0 0.0
    %3193 = vmatpush1.xpose.msra.mxu0 0.0
    %3194 = vmatprep.subr.mxu0 0.0
    %3195 = vmatpush1.xpose.msra.mxu0 0.0
    %3196 = vmatprep.subr.mxu0 0.0
    %3197 = vmatpush1.xpose.msra.mxu0 0.0
    %3198 = vmatprep.subr.mxu0 0.0
    %3199 = vmatpush1.xpose.msra.mxu0 0.0
    %3200 = vmatprep.subr.mxu0 0.0
    %3201 = vmatpush1.xpose.msra.mxu0 0.0
    %3202 = vmatprep.subr.mxu0 0.0
    %3203 = vmatpush1.xpose.msra.mxu0 0.0
    %3204 = vmatprep.subr.mxu0 0.0
    %3205 = vmatpush1.xpose.msra.mxu0 0.0
    %3206 = vmatprep.subr.mxu0 0.0
    %3207 = vmatpush1.xpose.msra.mxu0 0.0
    %3208 = vmatprep.subr.mxu0 0.0
    %3209 = vmatpush1.xpose.msra.mxu0 0.0
    %3210 = vmatprep.subr.mxu0 0.0
    %3211 = vmatpush1.xpose.msra.mxu0 0.0
    %3212 = vmatprep.mubr.f32.mxu0 0.0
    %3213 = vmatmul.mubr.f32.gmra.mrb[0].mxu0 %v3144
    %v3214 = vpop.f32.mrb[0].mxu0
    %v3215 = vadd.f32 0.0, %v3214
    %v3216 = vpop.f32.mrb[0].mxu0
    %3217 = vdwg.mxu0
    %v3218 = vmul.f32 %v3137, 0.35355338
    %v3219 = vmul.f32 %v3215, 0.35355338
    %v3220 = vadd.f32 %v3218, %v360
    %v3221 = vadd.f32 %v3219, %v364
    %v3222 = vsel %vm201, %v3220, -inf
    %3223 = vmax.xlane.f32.xlu0 %v3222
    %v3224 = vpop.xlane.xlu0 %3223
    %v3225 = vsel %vm201, %v3221, -inf
    %3226 = vmax.xlane.f32.xlu0 %v3225
    %v3227 = vpop.xlane.xlu0 %3226
    %v3228 = vsub.f32 %v3220, %v3224
    %v3229 = vsub.f32 %v3221, %v3227
    %v3230 = vmul.f32 %v3228, 1.442695
    %v3231 = vpow.pop %v3230
    %v3232 = vmul.f32 %v3229, 1.442695
    %v3233 = vpow.pop %v3232
    %v3234 = vsel %vm201, %v3231, 0.0
    %3235 = vadd.xlane.f32.xlu0 %v3234
    %v3236 = vpop.xlane.xlu0 %3235
    %v3237 = vsel %vm201, %v3233, 0.0
    %3238 = vadd.xlane.f32.xlu0 %v3237
    %v3239 = vpop.xlane.xlu0 %3238
    %v3240 = vrcp.pop %v3236
    %v3241 = vrcp.pop %v3239
    %v3242 = vmul.f32 %v3231, %v3240
    %v3243 = vmul.f32 %v3233, %v3241
    %3244 = vrot.lane.b32.xlu0 %v2054, 40
    %v3245 = vpop.permute.xlu0 %3244
    %v3248 = vsel %vm201, %v3242, 0
    %3250 = vmatprep.subr.mxu0 0.0
    %3251 = vmatpush1.msra.mxu0 %v3245
    %3252 = vmatprep.subr.mxu0 0.0
    %3253 = vmatpush1.msra.mxu0 0.0
    %3254 = vmatprep.subr.mxu0 0.0
    %3255 = vmatpush1.msra.mxu0 0.0
    %3256 = vmatprep.subr.mxu0 0.0
    %3257 = vmatpush1.msra.mxu0 0.0
    %3258 = vmatprep.subr.mxu0 0.0
    %3259 = vmatpush1.msra.mxu0 0.0
    %3260 = vmatprep.subr.mxu0 0.0
    %3261 = vmatpush1.msra.mxu0 0.0
    %3262 = vmatprep.subr.mxu0 0.0
    %3263 = vmatpush1.msra.mxu0 0.0
    %3264 = vmatprep.subr.mxu0 0.0
    %3265 = vmatpush1.msra.mxu0 0.0
    %3266 = vmatprep.subr.mxu0 0.0
    %3267 = vmatpush1.msra.mxu0 0.0
    %3268 = vmatprep.subr.mxu0 0.0
    %3269 = vmatpush1.msra.mxu0 0.0
    %3270 = vmatprep.subr.mxu0 0.0
    %3271 = vmatpush1.msra.mxu0 0.0
    %3272 = vmatprep.subr.mxu0 0.0
    %3273 = vmatpush1.msra.mxu0 0.0
    %3274 = vmatprep.subr.mxu0 0.0
    %3275 = vmatpush1.msra.mxu0 0.0
    %3276 = vmatprep.subr.mxu0 0.0
    %3277 = vmatpush1.msra.mxu0 0.0
    %3278 = vmatprep.subr.mxu0 0.0
    %3279 = vmatpush1.msra.mxu0 0.0
    %3280 = vmatprep.subr.mxu0 0.0
    %3281 = vmatpush1.msra.mxu0 0.0
    %3282 = vmatprep.subr.mxu0 0.0
    %3283 = vmatpush1.msra.mxu0 0.0
    %3284 = vmatprep.subr.mxu0 0.0
    %3285 = vmatpush1.msra.mxu0 0.0
    %3286 = vmatprep.subr.mxu0 0.0
    %3287 = vmatpush1.msra.mxu0 0.0
    %3288 = vmatprep.subr.mxu0 0.0
    %3289 = vmatpush1.msra.mxu0 0.0
    %3290 = vmatprep.subr.mxu0 0.0
    %3291 = vmatpush1.msra.mxu0 0.0
    %3292 = vmatprep.subr.mxu0 0.0
    %3293 = vmatpush1.msra.mxu0 0.0
    %3294 = vmatprep.subr.mxu0 0.0
    %3295 = vmatpush1.msra.mxu0 0.0
    %3296 = vmatprep.subr.mxu0 0.0
    %3297 = vmatpush1.msra.mxu0 0.0
    %3298 = vmatprep.subr.mxu0 0.0
    %3299 = vmatpush1.msra.mxu0 0.0
    %3300 = vmatprep.subr.mxu0 0.0
    %3301 = vmatpush1.msra.mxu0 0.0
    %3302 = vmatprep.subr.mxu0 0.0
    %3303 = vmatpush1.msra.mxu0 0.0
    %3304 = vmatprep.subr.mxu0 0.0
    %3305 = vmatpush1.msra.mxu0 0.0
    %3306 = vmatprep.subr.mxu0 0.0
    %3307 = vmatpush1.msra.mxu0 0.0
    %3308 = vmatprep.subr.mxu0 0.0
    %3309 = vmatpush1.msra.mxu0 0.0
    %3310 = vmatprep.subr.mxu0 0.0
    %3311 = vmatpush1.msra.mxu0 0.0
    %3312 = vmatprep.subr.mxu0 0.0
    %3313 = vmatpush1.msra.mxu0 0.0
    %3314 = vmatprep.mubr.f32.mxu0 0.0
    %3315 = vmatmul.mubr.f32.gmra.mrb[0].mxu0 %v3248
    %v3316 = vpop.f32.mrb[0].mxu0
    %v3317 = vadd.f32 0.0, %v3316
    %v3318 = vpop.f32.mrb[0].mxu0
    %3319 = vdwg.mxu0
    %3320 = vrot.lane.b32.xlu0 %v2059, 40
    %v3321 = vpop.permute.xlu0 %3320
    %v3324 = vsel %vm201, %v3243, 0
    %3326 = vmatprep.subr.mxu0 0.0
    %3327 = vmatpush1.msra.mxu0 %v3321
    %3328 = vmatprep.subr.mxu0 0.0
    %3329 = vmatpush1.msra.mxu0 0.0
    %3330 = vmatprep.subr.mxu0 0.0
    %3331 = vmatpush1.msra.mxu0 0.0
    %3332 = vmatprep.subr.mxu0 0.0
    %3333 = vmatpush1.msra.mxu0 0.0
    %3334 = vmatprep.subr.mxu0 0.0
    %3335 = vmatpush1.msra.mxu0 0.0
    %3336 = vmatprep.subr.mxu0 0.0
    %3337 = vmatpush1.msra.mxu0 0.0
    %3338 = vmatprep.subr.mxu0 0.0
    %3339 = vmatpush1.msra.mxu0 0.0
    %3340 = vmatprep.subr.mxu0 0.0
    %3341 = vmatpush1.msra.mxu0 0.0
    %3342 = vmatprep.subr.mxu0 0.0
    %3343 = vmatpush1.msra.mxu0 0.0
    %3344 = vmatprep.subr.mxu0 0.0
    %3345 = vmatpush1.msra.mxu0 0.0
    %3346 = vmatprep.subr.mxu0 0.0
    %3347 = vmatpush1.msra.mxu0 0.0
    %3348 = vmatprep.subr.mxu0 0.0
    %3349 = vmatpush1.msra.mxu0 0.0
    %3350 = vmatprep.subr.mxu0 0.0
    %3351 = vmatpush1.msra.mxu0 0.0
    %3352 = vmatprep.subr.mxu0 0.0
    %3353 = vmatpush1.msra.mxu0 0.0
    %3354 = vmatprep.subr.mxu0 0.0
    %3355 = vmatpush1.msra.mxu0 0.0
    %3356 = vmatprep.subr.mxu0 0.0
    %3357 = vmatpush1.msra.mxu0 0.0
    %3358 = vmatprep.subr.mxu0 0.0
    %3359 = vmatpush1.msra.mxu0 0.0
    %3360 = vmatprep.subr.mxu0 0.0
    %3361 = vmatpush1.msra.mxu0 0.0
    %3362 = vmatprep.subr.mxu0 0.0
    %3363 = vmatpush1.msra.mxu0 0.0
    %3364 = vmatprep.subr.mxu0 0.0
    %3365 = vmatpush1.msra.mxu0 0.0
    %3366 = vmatprep.subr.mxu0 0.0
    %3367 = vmatpush1.msra.mxu0 0.0
    %3368 = vmatprep.subr.mxu0 0.0
    %3369 = vmatpush1.msra.mxu0 0.0
    %3370 = vmatprep.subr.mxu0 0.0
    %3371 = vmatpush1.msra.mxu0 0.0
    %3372 = vmatprep.subr.mxu0 0.0
    %3373 = vmatpush1.msra.mxu0 0.0
    %3374 = vmatprep.subr.mxu0 0.0
    %3375 = vmatpush1.msra.mxu0 0.0
    %3376 = vmatprep.subr.mxu0 0.0
    %3377 = vmatpush1.msra.mxu0 0.0
    %3378 = vmatprep.subr.mxu0 0.0
    %3379 = vmatpush1.msra.mxu0 0.0
    %3380 = vmatprep.subr.mxu0 0.0
    %3381 = vmatpush1.msra.mxu0 0.0
    %3382 = vmatprep.subr.mxu0 0.0
    %3383 = vmatpush1.msra.mxu0 0.0
    %3384 = vmatprep.subr.mxu0 0.0
    %3385 = vmatpush1.msra.mxu0 0.0
    %3386 = vmatprep.subr.mxu0 0.0
    %3387 = vmatpush1.msra.mxu0 0.0
    %3388 = vmatprep.subr.mxu0 0.0
    %3389 = vmatpush1.msra.mxu0 0.0
    %3390 = vmatprep.mubr.f32.mxu0 0.0
    %3391 = vmatmul.mubr.f32.gmra.mrb[0].mxu0 %v3324
    %v3392 = vpop.f32.mrb[0].mxu0
    %v3393 = vadd.f32 0.0, %v3392
    %v3394 = vpop.f32.mrb[0].mxu0
    %3395 = vdwg.mxu0
    %3398 = vrot.lane.b32.xlu0 %v2649, 8
    %v3399 = vpop.permute.xlu0 %3398
    %3400 = vrot.lane.b32.xlu0 %v2725, 8
    %v3401 = vpop.permute.xlu0 %3400
    %3406 = vrot.lane.b32.xlu0 %v2983, 16
    %v3407 = vpop.permute.xlu0 %3406
    %3408 = vrot.lane.b32.xlu0 %v3059, 16
    %v3409 = vpop.permute.xlu0 %3408
    %3414 = vrot.lane.b32.xlu0 %v3317, 24
    %v3415 = vpop.permute.xlu0 %3414
    %3416 = vrot.lane.b32.xlu0 %v3393, 24
    %v3417 = vpop.permute.xlu0 %3416
    %v3420 = vsel %vm201, %v2315, %v3399
    %v3421 = vsel %vm201, %v2391, %v3401
    %v3422 = vsel %vm1571, %v3420, %v3407
    %v3423 = vsel %vm1571, %v3421, %v3409
    %v3424 = vsel %vm1574, %v3422, %v3415
    %v3425 = vsel %vm1574, %v3423, %v3417
    %s3426 = scalar_lea.vmem %s6, 32
    %v3427 = vld [vmem:[%s3426] sm:$0xff]
    %v3428 = vld [vmem:[%s3426 + $0x8] sm:$0xff]
    %v3429 = vld [vmem:[%s3426 + $0x10] sm:$0xff]
    %v3430 = vld [vmem:[%s3426 + $0x18] sm:$0xff]
    %s3431 = scalar_lea.vmem %s7, 1
    %v3432 = vld [vmem:[%s3431] sm:$0x1]
    %v3434 = vlaneseq
    %v3435 = vshrl.u32 %v3434, 7
    %v3436 = vsub.s32 0, %v3435
    %v3437 = vrot.slane %v3432, %v3436
    %v3440 = vsel %vm62, %v3424, 0
    %v3443 = vsel %vm62, %v3425, 0
    %3445 = vmatprep.subr.mxu0 0.0
    %3446 = vmatpush1.msra.mxu0 %v3427
    %3447 = vmatprep.subr.mxu0 0.0
    %3448 = vmatpush1.msra.mxu0 %v3428
    %3449 = vmatprep.subr.mxu0 0.0
    %3450 = vmatpush1.msra.mxu0 %v3429
    %3451 = vmatprep.subr.mxu0 0.0
    %3452 = vmatpush1.msra.mxu0 %v3430
    %3453 = vmatprep.subr.mxu0 0.0
    %3454 = vmatpush1.msra.mxu0 0.0
    %3455 = vmatprep.subr.mxu0 0.0
    %3456 = vmatpush1.msra.mxu0 0.0
    %3457 = vmatprep.subr.mxu0 0.0
    %3458 = vmatpush1.msra.mxu0 0.0
    %3459 = vmatprep.subr.mxu0 0.0
    %3460 = vmatpush1.msra.mxu0 0.0
    %3461 = vmatprep.subr.mxu0 0.0
    %3462 = vmatpush1.msra.mxu0 0.0
    %3463 = vmatprep.subr.mxu0 0.0
    %3464 = vmatpush1.msra.mxu0 0.0
    %3465 = vmatprep.subr.mxu0 0.0
    %3466 = vmatpush1.msra.mxu0 0.0
    %3467 = vmatprep.subr.mxu0 0.0
    %3468 = vmatpush1.msra.mxu0 0.0
    %3469 = vmatprep.subr.mxu0 0.0
    %3470 = vmatpush1.msra.mxu0 0.0
    %3471 = vmatprep.subr.mxu0 0.0
    %3472 = vmatpush1.msra.mxu0 0.0
    %3473 = vmatprep.subr.mxu0 0.0
    %3474 = vmatpush1.msra.mxu0 0.0
    %3475 = vmatprep.subr.mxu0 0.0
    %3476 = vmatpush1.msra.mxu0 0.0
    %3477 = vmatprep.subr.mxu0 0.0
    %3478 = vmatpush1.msra.mxu0 0.0
    %3479 = vmatprep.subr.mxu0 0.0
    %3480 = vmatpush1.msra.mxu0 0.0
    %3481 = vmatprep.subr.mxu0 0.0
    %3482 = vmatpush1.msra.mxu0 0.0
    %3483 = vmatprep.subr.mxu0 0.0
    %3484 = vmatpush1.msra.mxu0 0.0
    %3485 = vmatprep.subr.mxu0 0.0
    %3486 = vmatpush1.msra.mxu0 0.0
    %3487 = vmatprep.subr.mxu0 0.0
    %3488 = vmatpush1.msra.mxu0 0.0
    %3489 = vmatprep.subr.mxu0 0.0
    %3490 = vmatpush1.msra.mxu0 0.0
    %3491 = vmatprep.subr.mxu0 0.0
    %3492 = vmatpush1.msra.mxu0 0.0
    %3493 = vmatprep.subr.mxu0 0.0
    %3494 = vmatpush1.msra.mxu0 0.0
    %3495 = vmatprep.subr.mxu0 0.0
    %3496 = vmatpush1.msra.mxu0 0.0
    %3497 = vmatprep.subr.mxu0 0.0
    %3498 = vmatpush1.msra.mxu0 0.0
    %3499 = vmatprep.subr.mxu0 0.0
    %3500 = vmatpush1.msra.mxu0 0.0
    %3501 = vmatprep.subr.mxu0 0.0
    %3502 = vmatpush1.msra.mxu0 0.0
    %3503 = vmatprep.subr.mxu0 0.0
    %3504 = vmatpush1.msra.mxu0 0.0
    %3505 = vmatprep.subr.mxu0 0.0
    %3506 = vmatpush1.msra.mxu0 0.0
    %3507 = vmatprep.subr.mxu0 0.0
    %3508 = vmatpush1.msra.mxu0 0.0
    %3509 = vmatprep.mubr.f32.mxu0 0.0
    %3510 = vmatmul.mubr.f32.gmra.mrb[0].mxu0 %v3440
    %v3511 = vpop.f32.mrb[0].mxu0
    %v3512 = vadd.f32 %v3437, %v3511
    %v3513 = vpop.f32.mrb[0].mxu0
    %3514 = vmatprep.mubr.f32.mxu0 0.0
    %3515 = vmatmul.mubr.f32.gmra.mrb[0].mxu0 %v3443
    %v3516 = vpop.f32.mrb[0].mxu0
    %v3517 = vadd.f32 %v3437, %v3516
    %v3518 = vpop.f32.mrb[0].mxu0
    %3519 = vdwg.mxu0
    %v3520 = vadd.f32 %v3512, %v1966
    %v3521 = vadd.f32 %v3517, %v1967
    %s3522 = scalar_lea.vmem %s8, 1
    %v3523 = vld [vmem:[%s3522] sm:$0x1]
    %s3524 = scalar_lea.vmem %s9, 1
    %v3525 = vld [vmem:[%s3524] sm:$0x1]
    %v3526 = vsel %vm62, %v3520, 0.0
    %3527 = vadd.xlane.f32.xlu0 %v3526
    %v3528 = vpop.xlane.xlu0 %3527
    %v3529 = vsel %vm62, %v3521, 0.0
    %3530 = vadd.xlane.f32.xlu0 %v3529
    %v3531 = vpop.xlane.xlu0 %3530
    %v3532 = vmul.f32 %v3528, %v69
    %v3533 = vmul.f32 %v3531, %v69
    %v3534 = vsub.f32 %v3520, %v3532
    %v3535 = vsub.f32 %v3521, %v3533
    %v3536 = vmul.f32 %v3534, %v3534
    %v3537 = vmul.f32 %v3535, %v3535
    %v3538 = vsel %vm62, %v3536, 0.0
    %3539 = vadd.xlane.f32.xlu0 %v3538
    %v3540 = vpop.xlane.xlu0 %3539
    %v3541 = vsel %vm62, %v3537, 0.0
    %3542 = vadd.xlane.f32.xlu0 %v3541
    %v3543 = vpop.xlane.xlu0 %3542
    %v3544 = vmul.f32 %v3540, %v69
    %v3545 = vmul.f32 %v3543, %v69
    %v3546 = vadd.f32 %v3544, 1e-12
    %v3547 = vadd.f32 %v3545, 1e-12
    %v3548 = vrsqrt.pop %v3546
    %v3549 = vrsqrt.pop %v3547
    %v3550 = vmul.f32 %v3534, %v3548
    %v3551 = vmul.f32 %v3535, %v3549
    %v3553 = vlaneseq
    %v3554 = vshrl.u32 %v3553, 7
    %v3555 = vsub.s32 0, %v3554
    %v3556 = vrot.slane %v3523, %v3555
    %v3558 = vmul.f32 %v3550, %v3556
    %v3559 = vmul.f32 %v3551, %v3556
    %v3561 = vlaneseq
    %v3562 = vshrl.u32 %v3561, 7
    %v3563 = vsub.s32 0, %v3562
    %v3564 = vrot.slane %v3525, %v3563
    %v3566 = vadd.f32 %v3558, %v3564
    %v3567 = vadd.f32 %v3559, %v3564
    %s3568 = scalar_lea.vmem %s10, 32
    %v3569 = vld [vmem:[%s3568] sm:$0xff]
    %v3570 = vld [vmem:[%s3568 + $0x8] sm:$0xff]
    %v3571 = vld [vmem:[%s3568 + $0x10] sm:$0xff]
    %v3572 = vld [vmem:[%s3568 + $0x18] sm:$0xff]
    %s3573 = scalar_lea.vmem %s11, 1
    %v3574 = vld [vmem:[%s3573] sm:$0x1]
    %v3576 = vlaneseq
    %v3577 = vshrl.u32 %v3576, 7
    %v3578 = vsub.s32 0, %v3577
    %v3579 = vrot.slane %v3574, %v3578
    %v3582 = vsel %vm62, %v3566, 0
    %v3585 = vsel %vm62, %v3567, 0
    %3587 = vmatprep.subr.mxu0 0.0
    %3588 = vmatpush1.msra.mxu0 %v3569
    %3589 = vmatprep.subr.mxu0 0.0
    %3590 = vmatpush1.msra.mxu0 %v3570
    %3591 = vmatprep.subr.mxu0 0.0
    %3592 = vmatpush1.msra.mxu0 %v3571
    %3593 = vmatprep.subr.mxu0 0.0
    %3594 = vmatpush1.msra.mxu0 %v3572
    %3595 = vmatprep.subr.mxu0 0.0
    %3596 = vmatpush1.msra.mxu0 0.0
    %3597 = vmatprep.subr.mxu0 0.0
    %3598 = vmatpush1.msra.mxu0 0.0
    %3599 = vmatprep.subr.mxu0 0.0
    %3600 = vmatpush1.msra.mxu0 0.0
    %3601 = vmatprep.subr.mxu0 0.0
    %3602 = vmatpush1.msra.mxu0 0.0
    %3603 = vmatprep.subr.mxu0 0.0
    %3604 = vmatpush1.msra.mxu0 0.0
    %3605 = vmatprep.subr.mxu0 0.0
    %3606 = vmatpush1.msra.mxu0 0.0
    %3607 = vmatprep.subr.mxu0 0.0
    %3608 = vmatpush1.msra.mxu0 0.0
    %3609 = vmatprep.subr.mxu0 0.0
    %3610 = vmatpush1.msra.mxu0 0.0
    %3611 = vmatprep.subr.mxu0 0.0
    %3612 = vmatpush1.msra.mxu0 0.0
    %3613 = vmatprep.subr.mxu0 0.0
    %3614 = vmatpush1.msra.mxu0 0.0
    %3615 = vmatprep.subr.mxu0 0.0
    %3616 = vmatpush1.msra.mxu0 0.0
    %3617 = vmatprep.subr.mxu0 0.0
    %3618 = vmatpush1.msra.mxu0 0.0
    %3619 = vmatprep.subr.mxu0 0.0
    %3620 = vmatpush1.msra.mxu0 0.0
    %3621 = vmatprep.subr.mxu0 0.0
    %3622 = vmatpush1.msra.mxu0 0.0
    %3623 = vmatprep.subr.mxu0 0.0
    %3624 = vmatpush1.msra.mxu0 0.0
    %3625 = vmatprep.subr.mxu0 0.0
    %3626 = vmatpush1.msra.mxu0 0.0
    %3627 = vmatprep.subr.mxu0 0.0
    %3628 = vmatpush1.msra.mxu0 0.0
    %3629 = vmatprep.subr.mxu0 0.0
    %3630 = vmatpush1.msra.mxu0 0.0
    %3631 = vmatprep.subr.mxu0 0.0
    %3632 = vmatpush1.msra.mxu0 0.0
    %3633 = vmatprep.subr.mxu0 0.0
    %3634 = vmatpush1.msra.mxu0 0.0
    %3635 = vmatprep.subr.mxu0 0.0
    %3636 = vmatpush1.msra.mxu0 0.0
    %3637 = vmatprep.subr.mxu0 0.0
    %3638 = vmatpush1.msra.mxu0 0.0
    %3639 = vmatprep.subr.mxu0 0.0
    %3640 = vmatpush1.msra.mxu0 0.0
    %3641 = vmatprep.subr.mxu0 0.0
    %3642 = vmatpush1.msra.mxu0 0.0
    %3643 = vmatprep.subr.mxu0 0.0
    %3644 = vmatpush1.msra.mxu0 0.0
    %3645 = vmatprep.subr.mxu0 0.0
    %3646 = vmatpush1.msra.mxu0 0.0
    %3647 = vmatprep.subr.mxu0 0.0
    %3648 = vmatpush1.msra.mxu0 0.0
    %3649 = vmatprep.subr.mxu0 0.0
    %3650 = vmatpush1.msra.mxu0 0.0
    %3651 = vmatprep.mubr.f32.mxu0 0.0
    %3652 = vmatmul.mubr.f32.gmra.mrb[0].mxu0 %v3582
    %v3653 = vpop.f32.mrb[0].mxu0
    %v3654 = vadd.f32 %v3579, %v3653
    %v3655 = vpop.f32.mrb[0].mxu0
    %3656 = vmatprep.mubr.f32.mxu0 0.0
    %3657 = vmatmul.mubr.f32.gmra.mrb[0].mxu0 %v3585
    %v3658 = vpop.f32.mrb[0].mxu0
    %v3659 = vadd.f32 %v3579, %v3658
    %v3660 = vpop.f32.mrb[0].mxu0
    %3661 = vdwg.mxu0
    %v3662 = vmul.f32 %v3654, 0.5
    %v3663 = vmul.f32 %v3659, 0.5
    %v3664 = vmul.f32 %v3654, 0.044715
    %v3665 = vmul.f32 %v3659, 0.044715
    %v3666 = vmul.f32 %v3664, %v3654
    %v3667 = vmul.f32 %v3665, %v3659
    %v3668 = vmul.f32 %v3666, %v3654
    %v3669 = vmul.f32 %v3667, %v3659
    %v3670 = vadd.f32 %v3654, %v3668
    %v3671 = vadd.f32 %v3659, %v3669
    %v3672 = vmul.f32 %v3670, 0.7978846
    %v3673 = vmul.f32 %v3671, 0.7978846
    %v3674 = vtanh.pop %v3672
    %v3675 = vtanh.pop %v3673
    %v3676 = vadd.f32 %v3674, 1.0
    %v3677 = vadd.f32 %v3675, 1.0
    %v3678 = vmul.f32 %v3662, %v3676
    %v3679 = vmul.f32 %v3663, %v3677
    %s3680 = scalar_lea.vmem %s12, 64
    %v3681 = vld [vmem:[%s3680] sm:$0xff]
    %v3682 = vld [vmem:[%s3680 + $0x8] sm:$0xff]
    %v3683 = vld [vmem:[%s3680 + $0x10] sm:$0xff]
    %v3684 = vld [vmem:[%s3680 + $0x18] sm:$0xff]
    %v3685 = vld [vmem:[%s3680 + $0x20] sm:$0xff]
    %v3686 = vld [vmem:[%s3680 + $0x28] sm:$0xff]
    %v3687 = vld [vmem:[%s3680 + $0x30] sm:$0xff]
    %v3688 = vld [vmem:[%s3680 + $0x38] sm:$0xff]
    %s3689 = scalar_lea.vmem %s13, 1
    %v3690 = vld [vmem:[%s3689] sm:$0x1]
    %v3692 = vlaneseq
    %v3693 = vshrl.u32 %v3692, 7
    %v3694 = vsub.s32 0, %v3693
    %v3695 = vrot.slane %v3690, %v3694
    %v3698 = vsel %vm1840, %v3678, 0
    %v3701 = vsel %vm1840, %v3679, 0
    %3703 = vmatprep.subr.mxu0 0.0
    %3704 = vmatpush1.msra.mxu0 %v3681
    %3705 = vmatprep.subr.mxu0 0.0
    %3706 = vmatpush1.msra.mxu0 %v3682
    %3707 = vmatprep.subr.mxu0 0.0
    %3708 = vmatpush1.msra.mxu0 %v3683
    %3709 = vmatprep.subr.mxu0 0.0
    %3710 = vmatpush1.msra.mxu0 %v3684
    %3711 = vmatprep.subr.mxu0 0.0
    %3712 = vmatpush1.msra.mxu0 %v3685
    %3713 = vmatprep.subr.mxu0 0.0
    %3714 = vmatpush1.msra.mxu0 %v3686
    %3715 = vmatprep.subr.mxu0 0.0
    %3716 = vmatpush1.msra.mxu0 %v3687
    %3717 = vmatprep.subr.mxu0 0.0
    %3718 = vmatpush1.msra.mxu0 %v3688
    %3719 = vmatprep.subr.mxu0 0.0
    %3720 = vmatpush1.msra.mxu0 0.0
    %3721 = vmatprep.subr.mxu0 0.0
    %3722 = vmatpush1.msra.mxu0 0.0
    %3723 = vmatprep.subr.mxu0 0.0
    %3724 = vmatpush1.msra.mxu0 0.0
    %3725 = vmatprep.subr.mxu0 0.0
    %3726 = vmatpush1.msra.mxu0 0.0
    %3727 = vmatprep.subr.mxu0 0.0
    %3728 = vmatpush1.msra.mxu0 0.0
    %3729 = vmatprep.subr.mxu0 0.0
    %3730 = vmatpush1.msra.mxu0 0.0
    %3731 = vmatprep.subr.mxu0 0.0
    %3732 = vmatpush1.msra.mxu0 0.0
    %3733 = vmatprep.subr.mxu0 0.0
    %3734 = vmatpush1.msra.mxu0 0.0
    %3735 = vmatprep.subr.mxu0 0.0
    %3736 = vmatpush1.msra.mxu0 0.0
    %3737 = vmatprep.subr.mxu0 0.0
    %3738 = vmatpush1.msra.mxu0 0.0
    %3739 = vmatprep.subr.mxu0 0.0
    %3740 = vmatpush1.msra.mxu0 0.0
    %3741 = vmatprep.subr.mxu0 0.0
    %3742 = vmatpush1.msra.mxu0 0.0
    %3743 = vmatprep.subr.mxu0 0.0
    %3744 = vmatpush1.msra.mxu0 0.0
    %3745 = vmatprep.subr.mxu0 0.0
    %3746 = vmatpush1.msra.mxu0 0.0
    %3747 = vmatprep.subr.mxu0 0.0
    %3748 = vmatpush1.msra.mxu0 0.0
    %3749 = vmatprep.subr.mxu0 0.0
    %3750 = vmatpush1.msra.mxu0 0.0
    %3751 = vmatprep.subr.mxu0 0.0
    %3752 = vmatpush1.msra.mxu0 0.0
    %3753 = vmatprep.subr.mxu0 0.0
    %3754 = vmatpush1.msra.mxu0 0.0
    %3755 = vmatprep.subr.mxu0 0.0
    %3756 = vmatpush1.msra.mxu0 0.0
    %3757 = vmatprep.subr.mxu0 0.0
    %3758 = vmatpush1.msra.mxu0 0.0
    %3759 = vmatprep.subr.mxu0 0.0
    %3760 = vmatpush1.msra.mxu0 0.0
    %3761 = vmatprep.subr.mxu0 0.0
    %3762 = vmatpush1.msra.mxu0 0.0
    %3763 = vmatprep.subr.mxu0 0.0
    %3764 = vmatpush1.msra.mxu0 0.0
    %3765 = vmatprep.subr.mxu0 0.0
    %3766 = vmatpush1.msra.mxu0 0.0
    %3767 = vmatprep.mubr.f32.mxu0 0.0
    %3768 = vmatmul.mubr.f32.gmra.mrb[0].mxu0 %v3698
    %v3769 = vpop.f32.mrb[0].mxu0
    %v3770 = vadd.f32 %v3695, %v3769
    %v3771 = vpop.f32.mrb[0].mxu0
    %3772 = vmatprep.mubr.f32.mxu0 0.0
    %3773 = vmatmul.mubr.f32.gmra.mrb[0].mxu0 %v3701
    %v3774 = vpop.f32.mrb[0].mxu0
    %v3775 = vadd.f32 %v3695, %v3774
    %v3776 = vpop.f32.mrb[0].mxu0
    %3777 = vdwg.mxu0
    %v3778 = vadd.f32 %v3770, %v3566
    %v3779 = vadd.f32 %v3775, %v3567
    %s3780 = scalar_lea.vmem %s14, 1
    %v3781 = vld [vmem:[%s3780] sm:$0x1]
    %s3782 = scalar_lea.vmem %s15, 1
    %v3783 = vld [vmem:[%s3782] sm:$0x1]
    %v3784 = vsel %vm62, %v3778, 0.0
    %3785 = vadd.xlane.f32.xlu0 %v3784
    %v3786 = vpop.xlane.xlu0 %3785
    %v3787 = vsel %vm62, %v3779, 0.0
    %3788 = vadd.xlane.f32.xlu0 %v3787
    %v3789 = vpop.xlane.xlu0 %3788
    %v3790 = vmul.f32 %v3786, %v69
    %v3791 = vmul.f32 %v3789, %v69
    %v3792 = vsub.f32 %v3778, %v3790
    %v3793 = vsub.f32 %v3779, %v3791
    %v3794 = vmul.f32 %v3792, %v3792
    %v3795 = vmul.f32 %v3793, %v3793
    %v3796 = vsel %vm62, %v3794, 0.0
    %3797 = vadd.xlane.f32.xlu0 %v3796
    %v3798 = vpop.xlane.xlu0 %3797
    %v3799 = vsel %vm62, %v3795, 0.0
    %3800 = vadd.xlane.f32.xlu0 %v3799
    %v3801 = vpop.xlane.xlu0 %3800
    %v3802 = vmul.f32 %v3798, %v69
    %v3803 = vmul.f32 %v3801, %v69
    %v3804 = vadd.f32 %v3802, 1e-12
    %v3805 = vadd.f32 %v3803, 1e-12
    %v3806 = vrsqrt.pop %v3804
    %v3807 = vrsqrt.pop %v3805
    %v3808 = vmul.f32 %v3792, %v3806
    %v3809 = vmul.f32 %v3793, %v3807
    %v3811 = vlaneseq
    %v3812 = vshrl.u32 %v3811, 7
    %v3813 = vsub.s32 0, %v3812
    %v3814 = vrot.slane %v3781, %v3813
    %v3816 = vmul.f32 %v3808, %v3814
    %v3817 = vmul.f32 %v3809, %v3814
    %v3819 = vlaneseq
    %v3820 = vshrl.u32 %v3819, 7
    %v3821 = vsub.s32 0, %v3820
    %v3822 = vrot.slane %v3783, %v3821
    %v3824 = vadd.f32 %v3816, %v3822
    %v3825 = vadd.f32 %v3817, %v3822
    %3826 = vrot.lane.b32.xlu0 %v2574, 8
    %v3827 = vpop.permute.xlu0 %3826
    %3828 = vrot.lane.b32.xlu0 %v2575, 8
    %v3829 = vpop.permute.xlu0 %3828
    %3832 = vrot.lane.b32.xlu0 %v2908, 16
    %v3833 = vpop.permute.xlu0 %3832
    %3834 = vrot.lane.b32.xlu0 %v2909, 16
    %v3835 = vpop.permute.xlu0 %3834
    %3838 = vrot.lane.b32.xlu0 %v3242, 24
    %v3839 = vpop.permute.xlu0 %3838
    %3840 = vrot.lane.b32.xlu0 %v3243, 24
    %v3841 = vpop.permute.xlu0 %3840
    %v3844 = vsel %vm201, %v2240, %v3827
    %v3845 = vsel %vm201, %v2241, %v3829
    %v3846 = vsel %vm1571, %v3844, %v3833
    %v3847 = vsel %vm1571, %v3845, %v3835
    %v3848 = vsel %vm1574, %v3846, %v3839
    %v3849 = vsel %vm1574, %v3847, %v3841
    %3850 = vst.msk [vmem:[%s17] sm:$0xff] %vm62, %v3848
    %3851 = vst.msk [vmem:[%s17 + $0x8] sm:$0xff] %vm62, %v3849
    %3852 = vst.msk [vmem:[#allocation2] sm:$0xff] %vm62, %v3824
    %3853 = vst.msk [vmem:[#allocation2 + $0x8] sm:$0xff] %vm62, %v3825
    // Predicated region
    $region66: #{bert_forward.1} parent=1 // pred_check
      _
    $region67: #{bert_forward.1} parent=1 // pred_check_branch
      %3855 = sbr.rel (0) target = $region69
    $region68: #{bert_forward.1} parent=1 // pred_region
      %s3857 = ssub.s32 256, 256
      %3858 = vsyncadd [#allocation3], %s3857
      %s3859 = sshll.u32 [#allocation2], 4
      %s3860 = int_to_ptr.vmem [resolvable:$true] %s3859
      %3865 = dma.vmem_to_hbm [thread:$0]  %s3860, 256, %s16, [#allocation3], 128, 128, 8
    $region69: #{bert_forward.1} parent=1 // pred_fallthru
      _
    // Predicated region
    $region70: #{bert_forward.1} parent=1 // pred_check
      _
    $region71: #{bert_forward.1} parent=1 // pred_check_branch
      %3867 = sbr.rel (0) target = $region73
    $region72: #{bert_forward.1} parent=1 // pred_region
      _
    $region73: #{bert_forward.1} parent=1 // pred_fallthru
      _
    // Predicated region
    $region74: #{bert_forward.1} parent=1 // pred_check
      _
    $region75: #{bert_forward.1} parent=1 // pred_check_branch
      %3869 = sbr.rel (0) target = $region77
    $region76: #{bert_forward.1} parent=1 // pred_region
      %3870 = dma.done [#allocation3], 256
    $region77: #{bert_forward.1} parent=1 // pred_fallthru
      _
    // Predicated region
    $region78: #{bert_forward.1} parent=1 // pred_check
      _
    $region79: #{bert_forward.1} parent=1 // pred_check_branch
      %3872 = sbr.rel (0) target = $region81
    $region80: #{bert_forward.1} parent=1 // pred_region
      _
    $region81: #{bert_forward.1} parent=1 // pred_fallthru
      _
    %3873 = vsyncpa [#allocation3], 1

</llo_original>
